<compile_context>
chip_gen: v5e
topology: v5e:2x2
jax: 0.10.0
libtpu: 0.0.40
codegen_flags: <defaults>
</compile_context>

<pallas_src>
import functools
import numpy as np
import jax
import jax.numpy as jnp
from jax.experimental import pallas as pl
from jax.experimental.pallas import tpu as pltpu

# ----- TabNet hyper-parameters (module defaults, small dims) -----
INPUT_DIM = 16      # number of features F
OUTPUT_DIM = 4      # single-task output dim
N_D = 8
N_A = 8
N_STEPS = 3
GAMMA = 1.3
N_INDEPENDENT = 2
N_SHARED = 2
EPSILON = 1e-15
VBS = 128           # GBN virtual batch size
BN_EPS = 1e-5
SQRT_HALF = float(np.sqrt(0.5))

H = N_D + N_A       # 16 -> GLU block output dim
H2 = 2 * H          # 32 -> GLU fc output dim (split in half by the gate)
# Stacked [H2, H] GLU fcs: shared[1], initial-splitter independent (2), per-step
# independent (2 per step).
N_GLU_STACK = (N_SHARED - 1) + N_INDEPENDENT + N_INDEPENDENT * N_STEPS   # = 9
OUT_ROWS = 8                 # merged output rows: out(4) + entropy(1) + pad(3)
MAX_GROUPS_PER_BLOCK = 4     # lane block cap = 4*VBS = 512 lanes (sweepable)


# ---------------------------------------------------------------------------
# Pallas kernel: one lane block (ngroups GBN virtual batches) of the full
# TabNet encoder + head.  Activations are [channels, lanes] (channels on
# sublanes, batch on lanes).
# ---------------------------------------------------------------------------
def _tabnet_kernel(ngroups, group_size,
                   x_ref, bn0_ref, w_sh0_ref, w_glu_ref, w_att_ref, w_fin_ref,
                   out_ref):
    f32 = jnp.float32
    inv_n = 1.0 / float(group_size)

    def bn(h):
        # Ghost BatchNorm, fresh & train mode (weight=1, bias=0, batch stats,
        # biased variance).  Statistics are per 128-lane virtual-batch group;
        # single pass: sum and sum-of-squares (independent lane reductions).
        parts = []
        for g in range(ngroups):
            lo = g * group_size
            hg = h[:, lo:lo + group_size]
            s1 = jnp.sum(hg, axis=1, keepdims=True)
            s2 = jnp.sum(hg * hg, axis=1, keepdims=True)
            mu = s1 * inv_n
            var = s2 * inv_n - mu * mu          # keep f32 (BN-scale activations)
            parts.append((hg - mu) * jax.lax.rsqrt(var + BN_EPS))
        return parts[0] if ngroups == 1 else jnp.concatenate(parts, axis=1)

    def mm(w, h):
        # f32 MXU matmul: correct on every backend (bf16 x bf16 -> f32 trips
        # the interpreter's CPU dot thunk and is no faster at K <= 16).
        return jnp.dot(w, h, preferred_element_type=f32)

    def glu(h, w):
        y = bn(mm(w, h))
        # 8-sublane-aligned gate split (H = 16): no lane shuffles.
        return y[:H, :] * jax.nn.sigmoid(y[H:, :])

    def feat_transformer(h, k0, k1):
        # shared GLU block (first=True, n_glu=2) + independent block (n_glu=2)
        h = glu(h, w_sh0_ref[...])
        h = (h + glu(h, w_glu_ref[0])) * SQRT_HALF
        h = (h + glu(h, w_glu_ref[k0])) * SQRT_HALF
        h = (h + glu(h, w_glu_ref[k1])) * SQRT_HALF
        return h

    def sparsemax(z):
        # Streaming sort-free sparsemax over the feature (sublane) axis of
        # z: [F, lanes].  Per-lane independent, so it runs on the full widened
        # block; the j-loop avoids the [F, F, lanes] vreg blowup (live values
        # stay at a few [F, lanes] tiles).
        k = jnp.zeros_like(z)
        s = jnp.zeros_like(z)
        for j in range(INPUT_DIM):
            zj = z[j:j + 1, :]                              # [1, lanes]
            ge = (zj >= z).astype(f32)                      # [F, lanes]
            k = k + ge
            s = s + ge * zj
        support = ((1.0 + k * z) > s).astype(f32)
        k_star = jnp.sum(support, axis=0, keepdims=True)        # [1, lanes]
        s_star = jnp.sum(support * z, axis=0, keepdims=True)    # [1, lanes]
        tau = (s_star - 1.0) / k_star    # exact: k_star is a small integer
        return jnp.maximum(z - tau, 0.0)

    # ----- encoder -----
    # encoder.initial_bn is a full-batch (non-ghost) BatchNorm1d; its stats are
    # pre-folded to (scale, shift) so this is a single FMA per tile.
    x = x_ref[...] * bn0_ref[:, 0:1] + bn0_ref[:, 1:2]           # [F, lanes]

    prior = jnp.ones_like(x)
    att = feat_transformer(x, 1, 2)[N_D:, :]                     # [N_A, lanes]

    lanes = x.shape[1]
    res = jnp.zeros((N_D, lanes), dtype=f32)
    ent = jnp.zeros((1, lanes), dtype=f32)

    for step in range(N_STEPS):
        # AttentiveTransformer: fc -> GBN -> mul(prior) -> sparsemax
        # TODO(synk): benchmark a VPU broadcast-MAC against this K=8 MXU dot
        # (and the final mapping) per chip generation (MRF vs MRB pop cost).
        a = mm(w_att_ref[step], att)                             # [F, lanes]
        m = sparsemax(bn(a) * prior)
        ent = ent + jnp.sum(m * jnp.log(m + EPSILON), axis=0, keepdims=True)
        prior = (GAMMA - m) * prior
        out = feat_transformer(m * x, 3 + 2 * step, 4 + 2 * step)
        res = res + jnp.maximum(out[:N_D, :], 0.0)               # ReLU(d)
        att = out[N_D:, :]

    # Final mapping (Linear(n_d, output_dim, bias=False)) and the per-row mask
    # entropy are produced by one augmented matmul: rows 0..3 = out, row 4 =
    # entropy, rows 5..7 = 0 -> a single aligned lane-dense [8, lanes] store.
    stacked = jnp.concatenate([res, ent], axis=0)                # [N_D+1, lanes]
    out_ref[...] = mm(w_fin_ref[...], stacked)                   # [8, lanes]


# ---------------------------------------------------------------------------
# Tiling choice: lanes per grid program (multiple of the GBN group size).
# ---------------------------------------------------------------------------
def _choose_tiling(B):
    """Returns (lanes_per_program, groups_per_program, group_size)."""
    if B <= VBS:
        return B, 1, B          # one GBN chunk of the whole (small) batch
    # TODO(synk): torch.chunk's uneven trailing GBN chunk (B not a multiple of
    # vbs) is not supported; B must be <= vbs or a multiple of vbs.
    assert B % VBS == 0, "batch must be <= vbs or a multiple of vbs"
    ngrp = B // VBS
    g = 1
    for cand in range(min(MAX_GROUPS_PER_BLOCK, ngrp), 0, -1):
        # widest block that still leaves >= 2 programs (v7x: 2 TensorCores)
        if ngrp % cand == 0 and ngrp // cand >= 2:
            g = cand
            break
    return g * VBS, g, VBS


# ---------------------------------------------------------------------------
# One-time parameter re-layout (hoisted out of the per-forward jit path).
# Weights become [out, in] so every kernel matmul is W @ h with batch on lanes;
# same-shape fcs are stacked so the kernel sees only 5 weight operands.
# ---------------------------------------------------------------------------
def prepare_params(params):
    (w_sh0, w_sh1, w_i0, w_i1,
     w_att0, w_att1, w_att2,
     w_f00, w_f01, w_f10, w_f11, w_f20, w_f21, w_fin) = params
    f32 = jnp.float32
    w_sh0T = w_sh0.T.astype(f32)                                  # [H2, F]
    w_gluT = jnp.stack(
        [w.T for w in (w_sh1, w_i0, w_i1,
                       w_f00, w_f01, w_f10, w_f11, w_f20, w_f21)],
        axis=0).astype(f32)                                       # [9, H2, H]
    w_attT = jnp.stack([w.T for w in (w_att0, w_att1, w_att2)],
                       axis=0).astype(f32)                        # [3, F, N_A]
    # Augmented final mapping: rows 0..3 = w_fin.T, row 4 selects the entropy
    # row appended to res, rows 5..7 are zero padding.
    w_fin_aug = jnp.zeros((OUT_ROWS, N_D + 1), f32)
    w_fin_aug = w_fin_aug.at[:OUTPUT_DIM, :N_D].set(w_fin.T.astype(f32))
    w_fin_aug = w_fin_aug.at[OUTPUT_DIM, N_D].set(1.0)
    return w_sh0T, w_gluT, w_attT, w_fin_aug


# ---------------------------------------------------------------------------
# Forward wrapper
# ---------------------------------------------------------------------------
@jax.jit
def tabnet_forward(x, w_sh0T, w_gluT, w_attT, w_fin_aug):
    """Returns (out [B, OUTPUT_DIM], M_loss scalar), like the PyTorch module."""
    B, F = x.shape
    assert F == INPUT_DIM
    lanes, ngroups, group_size = _choose_tiling(B)
    nb = B // lanes

    # Transposed working layout: features on sublanes, batch on lanes.
    # TODO(synk): this is a (tiny) separate XLA transpose of x; an in-kernel
    # [lanes,16]->[16,lanes] XLU transpose would remove the extra HBM pass.
    xT = x.T                                                      # [F, B]

    # encoder.initial_bn (full-batch BatchNorm1d), folded to (scale, shift).
    mu0 = jnp.mean(x, axis=0)
    var0 = jnp.mean((x - mu0[None, :]) ** 2, axis=0)
    scale0 = jax.lax.rsqrt(var0 + BN_EPS)
    bn0 = jnp.stack([scale0, -mu0 * scale0], axis=1)              # [F, 2]

    kernel = functools.partial(_tabnet_kernel, ngroups, group_size)
    merged = pl.pallas_call(
        kernel,
        out_shape=jax.ShapeDtypeStruct((OUT_ROWS, B), jnp.float32),
        grid=(nb,),
        in_specs=[
            pl.BlockSpec((INPUT_DIM, lanes), lambda i: (0, i)),          # x chunk
            pl.BlockSpec((INPUT_DIM, 2), lambda i: (0, 0)),              # init-BN
            pl.BlockSpec((H2, INPUT_DIM), lambda i: (0, 0)),             # shared fc0
            pl.BlockSpec((N_GLU_STACK, H2, H), lambda i: (0, 0, 0)),     # GLU fcs
            pl.BlockSpec((N_STEPS, INPUT_DIM, N_A), lambda i: (0, 0, 0)),  # att fcs
            pl.BlockSpec((OUT_ROWS, N_D + 1), lambda i: (0, 0)),         # final fc
        ],
        out_specs=pl.BlockSpec((OUT_ROWS, lanes), lambda i: (0, i)),
        compiler_params=pltpu.CompilerParams(
            dimension_semantics=("parallel",)),   # blocks shard over v7x cores
    )(xT, bn0, w_sh0T, w_gluT, w_attT, w_fin_aug)

    out = merged[:OUTPUT_DIM, :].T                                # [B, OUTPUT_DIM]
    m_loss = jnp.mean(merged[OUTPUT_DIM, :]) / N_STEPS
    return out, m_loss


# ---------------------------------------------------------------------------
# Deterministic parameter init (shapes from __init__; the custom torch
# initializers only change the scale, so a scaled normal is used here).
# Weights are stored [in, out] (PyTorch nn.Linear.weight transposed).
# ---------------------------------------------------------------------------
def init_params(key):
    def lin(k, fan_in, fan_out):
        return jax.random.normal(k, (fan_in, fan_out), jnp.float32) / np.sqrt(fan_in)

    keys = jax.random.split(key, 14)
    params = [
        lin(keys[0], INPUT_DIM, H2),   # shared fc 0: Linear(F, 2*(n_d+n_a))
        lin(keys[1], H, H2),           # shared fc 1: Linear(n_d+n_a, 2*(n_d+n_a))
        lin(keys[2], H, H2),           # initial splitter independent fc 0
        lin(keys[3], H, H2),           # initial splitter independent fc 1
    ]
    ki = 4
    att_w, feat_w = [], []
    for _ in range(N_STEPS):
        att_w.append(lin(keys[ki], N_A, INPUT_DIM)); ki += 1     # Linear(n_a, F)
        feat_w.append(lin(keys[ki], H, H2)); ki += 1             # step indep fc 0
        feat_w.append(lin(keys[ki], H, H2)); ki += 1             # step indep fc 1
    params += att_w + feat_w
    params.append(lin(keys[13], N_D, OUTPUT_DIM))                # final mapping
    return params


# ---------------------------------------------------------------------------
# Pure-JAX reference (sort-based sparsemax, f32 HIGHEST precision, chunked GBN)
# used as the correctness check.
# ---------------------------------------------------------------------------
def tabnet_reference(x, params):
    (w_sh0, w_sh1, w_i0, w_i1,
     w_att0, w_att1, w_att2,
     w_f00, w_f01, w_f10, w_f11, w_f20, w_f21, w_fin) = params
    hp = jax.lax.Precision.HIGHEST
    B = x.shape[0]

    def bn_full(h):
        mu = jnp.mean(h, axis=0, keepdims=True)
        var = jnp.mean((h - mu) ** 2, axis=0, keepdims=True)
        return (h - mu) / jnp.sqrt(var + BN_EPS)

    def gbn(h):
        nchunks = int(np.ceil(B / VBS))
        if nchunks == 1:
            return bn_full(h)
        return jnp.concatenate([bn_full(c) for c in jnp.split(h, nchunks, axis=0)],
                               axis=0)

    def glu(h, w):
        y = gbn(jnp.dot(h, w, precision=hp))
        return y[:, :H] * jax.nn.sigmoid(y[:, H:])

    def ft(h, wa, wb):
        h = glu(h, w_sh0)
        h = (h + glu(h, w_sh1)) * SQRT_HALF
        h = (h + glu(h, wa)) * SQRT_HALF
        h = (h + glu(h, wb)) * SQRT_HALF
        return h

    def sparsemax(z):
        zs = jnp.sort(z, axis=-1)[:, ::-1]
        cs = jnp.cumsum(zs, axis=-1)
        ks = jnp.arange(1, z.shape[-1] + 1, dtype=jnp.float32)
        cond = 1.0 + ks * zs > cs
        k = jnp.sum(cond, axis=-1, keepdims=True)
        s = jnp.take_along_axis(cs, k.astype(jnp.int32) - 1, axis=-1)
        tau = (s - 1.0) / k
        return jnp.maximum(z - tau, 0.0)

    x = bn_full(x)                      # encoder initial_bn (full batch)
    prior = jnp.ones_like(x)
    att = ft(x, w_i0, w_i1)[:, N_D:]
    w_att = [w_att0, w_att1, w_att2]
    w_f = [(w_f00, w_f01), (w_f10, w_f11), (w_f20, w_f21)]
    res = jnp.zeros((x.shape[0], N_D), jnp.float32)
    m_loss = 0.0
    for s in range(N_STEPS):
        m = sparsemax(gbn(jnp.dot(att, w_att[s], precision=hp)) * prior)
        m_loss = m_loss + jnp.mean(jnp.sum(m * jnp.log(m + EPSILON), axis=1))
        prior = (GAMMA - m) * prior
        out = ft(m * x, *w_f[s])
        res = res + jax.nn.relu(out[:, :N_D])
        att = out[:, N_D:]
    m_loss = m_loss / N_STEPS
    return jnp.dot(res, w_fin, precision=hp), m_loss


if __name__ == "__main__":
    key = jax.random.PRNGKey(0)
    kx, kp = jax.random.split(key)
    params = init_params(kp)
    prepped = prepare_params(params)   # one-time weight re-layout

    # B = vbs (single GBN group), B = 2*vbs (2 programs for v7x's two cores),
    # B = 4*vbs (widened lane block: 2 GBN groups per program, 2 programs).
    for B in (VBS, 2 * VBS, 4 * VBS):
        x = jax.random.normal(jax.random.fold_in(kx, B), (B, INPUT_DIM), jnp.float32)

        out, m_loss = tabnet_forward(x, *prepped)
        out, m_loss = jax.block_until_ready((out, m_loss))

        ref_out, ref_loss = tabnet_reference(x, params)
        np.testing.assert_allclose(np.asarray(out), np.asarray(ref_out),
                                   rtol=1e-2, atol=1e-2)
        np.testing.assert_allclose(float(m_loss), float(ref_loss),
                                   rtol=1e-2, atol=1e-2)

    print("KERNEL_OK")
</pallas_src>

<mosaic_0001>
module attributes {stable_mosaic.version = 11 : i64} {
  func.func @_tabnet_kernel(%arg0: i32, %arg1: memref<16x128xf32, #tpu.memory_space<vmem>>, %arg2: memref<16x2xf32, #tpu.memory_space<vmem>>, %arg3: memref<32x16xf32, #tpu.memory_space<vmem>>, %arg4: memref<9x32x16xf32, #tpu.memory_space<vmem>>, %arg5: memref<3x16x8xf32, #tpu.memory_space<vmem>>, %arg6: memref<8x9xf32, #tpu.memory_space<vmem>>, %arg7: memref<8x128xf32, #tpu.memory_space<vmem>>) attributes {dimension_semantics = [#tpu.dimension_semantics<parallel>], iteration_bounds = array<i64: 1>, scalar_prefetch = 0 : i64, scratch_operands = 0 : i64, tpu.core_type = #tpu.core_type<tc>, window_params = [{transform_indices = @transform_0, window_bounds = array<i64: 16, 128>}, {pipeline_mode = #tpu.pipeline_mode<synchronous>, transform_indices = @transform_1, window_bounds = array<i64: 16, 2>}, {pipeline_mode = #tpu.pipeline_mode<synchronous>, transform_indices = @transform_2, window_bounds = array<i64: 32, 16>}, {pipeline_mode = #tpu.pipeline_mode<synchronous>, transform_indices = @transform_3, window_bounds = array<i64: 9, 32, 16>}, {pipeline_mode = #tpu.pipeline_mode<synchronous>, transform_indices = @transform_4, window_bounds = array<i64: 3, 16, 8>}, {pipeline_mode = #tpu.pipeline_mode<synchronous>, transform_indices = @transform_5, window_bounds = array<i64: 8, 9>}, {transform_indices = @transform_6, window_bounds = array<i64: 8, 128>}]} {
    %c0 = arith.constant 0 : index
    %c0_0 = arith.constant 0 : index
    %0 = vector.load %arg1[%c0, %c0_0] : memref<16x128xf32, #tpu.memory_space<vmem>>, vector<16x128xf32>
    %c0_1 = arith.constant 0 : index
    %c0_2 = arith.constant 0 : index
    %1 = vector.load %arg2[%c0_1, %c0_2] : memref<16x2xf32, #tpu.memory_space<vmem>>, vector<16x1xf32>
    %2 = vector.broadcast %1 : vector<16x1xf32> to vector<16x128xf32>
    %3 = arith.mulf %0, %2 : vector<16x128xf32>
    %c0_3 = arith.constant 0 : index
    %c1 = arith.constant 1 : index
    %4 = vector.load %arg2[%c0_3, %c1] : memref<16x2xf32, #tpu.memory_space<vmem>>, vector<16x1xf32>
    %5 = vector.broadcast %4 : vector<16x1xf32> to vector<16x128xf32>
    %6 = arith.addf %3, %5 : vector<16x128xf32>
    %cst = arith.constant 1.000000e+00 : f32
    %7 = vector.broadcast %cst : f32 to vector<16x128xf32>
    %c0_4 = arith.constant 0 : index
    %c0_5 = arith.constant 0 : index
    %8 = vector.load %arg3[%c0_4, %c0_5] : memref<32x16xf32, #tpu.memory_space<vmem>>, vector<32x16xf32>
    %cst_6 = arith.constant dense<0.000000e+00> : vector<32x128xf32>
    %9 = tpu.matmul %8, %6, %cst_6 {dimension_numbers = #tpu.dot_dimension_numbers<[1], [0], [0], [1], [0, 0, 1, 1], [], []>} : vector<32x16xf32>, vector<16x128xf32>, vector<32x128xf32> -> vector<32x128xf32>
    %cst_7 = arith.constant dense<0.000000e+00> : vector<32xf32>
    %10 = vector.multi_reduction <add>, %9, %cst_7 [1] : vector<32x128xf32> to vector<32xf32>
    %11 = vector.shape_cast %10 : vector<32xf32> to vector<32x1xf32>
    %12 = arith.mulf %9, %9 : vector<32x128xf32>
    %cst_8 = arith.constant dense<0.000000e+00> : vector<32xf32>
    %13 = vector.multi_reduction <add>, %12, %cst_8 [1] : vector<32x128xf32> to vector<32xf32>
    %14 = vector.shape_cast %13 : vector<32xf32> to vector<32x1xf32>
    %cst_9 = arith.constant 7.812500e-03 : f32
    %15 = vector.broadcast %cst_9 : f32 to vector<32x1xf32>
    %16 = arith.mulf %11, %15 : vector<32x1xf32>
    %cst_10 = arith.constant 7.812500e-03 : f32
    %17 = vector.broadcast %cst_10 : f32 to vector<32x1xf32>
    %18 = arith.mulf %14, %17 : vector<32x1xf32>
    %19 = arith.mulf %16, %16 : vector<32x1xf32>
    %20 = arith.subf %18, %19 : vector<32x1xf32>
    %21 = vector.broadcast %16 : vector<32x1xf32> to vector<32x128xf32>
    %22 = arith.subf %9, %21 : vector<32x128xf32>
    %cst_11 = arith.constant 9.99999974E-6 : f32
    %23 = vector.broadcast %cst_11 : f32 to vector<32x1xf32>
    %24 = arith.addf %20, %23 : vector<32x1xf32>
    %25 = math.rsqrt %24 : vector<32x1xf32>
    %26 = vector.broadcast %25 : vector<32x1xf32> to vector<32x128xf32>
    %27 = arith.mulf %22, %26 : vector<32x128xf32>
    %28 = vector.extract_strided_slice %27 {offsets = [0, 0], sizes = [16, 128], strides = [1, 1]} : vector<32x128xf32> to vector<16x128xf32>
    %29 = vector.extract_strided_slice %27 {offsets = [16, 0], sizes = [16, 128], strides = [1, 1]} : vector<32x128xf32> to vector<16x128xf32>
    %30 = arith.negf %29 : vector<16x128xf32>
    %31 = math.exp %30 : vector<16x128xf32>
    %cst_12 = arith.constant 1.000000e+00 : f32
    %32 = vector.broadcast %cst_12 : f32 to vector<16x128xf32>
    %33 = arith.addf %32, %31 : vector<16x128xf32>
    %34 = arith.divf %32, %33 : vector<16x128xf32>
    %35 = arith.mulf %28, %34 : vector<16x128xf32>
    %c0_13 = arith.constant 0 : index
    %c0_14 = arith.constant 0 : index
    %c0_15 = arith.constant 0 : index
    %36 = vector.load %arg4[%c0_13, %c0_14, %c0_15] : memref<9x32x16xf32, #tpu.memory_space<vmem>>, vector<1x32x16xf32>
    %37 = vector.shape_cast %36 : vector<1x32x16xf32> to vector<32x16xf32>
    %cst_16 = arith.constant dense<0.000000e+00> : vector<32x128xf32>
    %38 = tpu.matmul %37, %35, %cst_16 {dimension_numbers = #tpu.dot_dimension_numbers<[1], [0], [0], [1], [0, 0, 1, 1], [], []>} : vector<32x16xf32>, vector<16x128xf32>, vector<32x128xf32> -> vector<32x128xf32>
    %cst_17 = arith.constant dense<0.000000e+00> : vector<32xf32>
    %39 = vector.multi_reduction <add>, %38, %cst_17 [1] : vector<32x128xf32> to vector<32xf32>
    %40 = vector.shape_cast %39 : vector<32xf32> to vector<32x1xf32>
    %41 = arith.mulf %38, %38 : vector<32x128xf32>
    %cst_18 = arith.constant dense<0.000000e+00> : vector<32xf32>
    %42 = vector.multi_reduction <add>, %41, %cst_18 [1] : vector<32x128xf32> to vector<32xf32>
    %43 = vector.shape_cast %42 : vector<32xf32> to vector<32x1xf32>
    %cst_19 = arith.constant 7.812500e-03 : f32
    %44 = vector.broadcast %cst_19 : f32 to vector<32x1xf32>
    %45 = arith.mulf %40, %44 : vector<32x1xf32>
    %cst_20 = arith.constant 7.812500e-03 : f32
    %46 = vector.broadcast %cst_20 : f32 to vector<32x1xf32>
    %47 = arith.mulf %43, %46 : vector<32x1xf32>
    %48 = arith.mulf %45, %45 : vector<32x1xf32>
    %49 = arith.subf %47, %48 : vector<32x1xf32>
    %50 = vector.broadcast %45 : vector<32x1xf32> to vector<32x128xf32>
    %51 = arith.subf %38, %50 : vector<32x128xf32>
    %cst_21 = arith.constant 9.99999974E-6 : f32
    %52 = vector.broadcast %cst_21 : f32 to vector<32x1xf32>
    %53 = arith.addf %49, %52 : vector<32x1xf32>
    %54 = math.rsqrt %53 : vector<32x1xf32>
    %55 = vector.broadcast %54 : vector<32x1xf32> to vector<32x128xf32>
    %56 = arith.mulf %51, %55 : vector<32x128xf32>
    %57 = vector.extract_strided_slice %56 {offsets = [0, 0], sizes = [16, 128], strides = [1, 1]} : vector<32x128xf32> to vector<16x128xf32>
    %58 = vector.extract_strided_slice %56 {offsets = [16, 0], sizes = [16, 128], strides = [1, 1]} : vector<32x128xf32> to vector<16x128xf32>
    %59 = arith.negf %58 : vector<16x128xf32>
    %60 = math.exp %59 : vector<16x128xf32>
    %cst_22 = arith.constant 1.000000e+00 : f32
    %61 = vector.broadcast %cst_22 : f32 to vector<16x128xf32>
    %62 = arith.addf %61, %60 : vector<16x128xf32>
    %63 = arith.divf %61, %62 : vector<16x128xf32>
    %64 = arith.mulf %57, %63 : vector<16x128xf32>
    %65 = arith.addf %35, %64 : vector<16x128xf32>
    %cst_23 = arith.constant 0.707106769 : f32
    %66 = vector.broadcast %cst_23 : f32 to vector<16x128xf32>
    %67 = arith.mulf %65, %66 : vector<16x128xf32>
    %c1_24 = arith.constant 1 : index
    %c0_25 = arith.constant 0 : index
    %c0_26 = arith.constant 0 : index
    %68 = vector.load %arg4[%c1_24, %c0_25, %c0_26] : memref<9x32x16xf32, #tpu.memory_space<vmem>>, vector<1x32x16xf32>
    %69 = vector.shape_cast %68 : vector<1x32x16xf32> to vector<32x16xf32>
    %cst_27 = arith.constant dense<0.000000e+00> : vector<32x128xf32>
    %70 = tpu.matmul %69, %67, %cst_27 {dimension_numbers = #tpu.dot_dimension_numbers<[1], [0], [0], [1], [0, 0, 1, 1], [], []>} : vector<32x16xf32>, vector<16x128xf32>, vector<32x128xf32> -> vector<32x128xf32>
    %cst_28 = arith.constant dense<0.000000e+00> : vector<32xf32>
    %71 = vector.multi_reduction <add>, %70, %cst_28 [1] : vector<32x128xf32> to vector<32xf32>
    %72 = vector.shape_cast %71 : vector<32xf32> to vector<32x1xf32>
    %73 = arith.mulf %70, %70 : vector<32x128xf32>
    %cst_29 = arith.constant dense<0.000000e+00> : vector<32xf32>
    %74 = vector.multi_reduction <add>, %73, %cst_29 [1] : vector<32x128xf32> to vector<32xf32>
    %75 = vector.shape_cast %74 : vector<32xf32> to vector<32x1xf32>
    %cst_30 = arith.constant 7.812500e-03 : f32
    %76 = vector.broadcast %cst_30 : f32 to vector<32x1xf32>
    %77 = arith.mulf %72, %76 : vector<32x1xf32>
    %cst_31 = arith.constant 7.812500e-03 : f32
    %78 = vector.broadcast %cst_31 : f32 to vector<32x1xf32>
    %79 = arith.mulf %75, %78 : vector<32x1xf32>
    %80 = arith.mulf %77, %77 : vector<32x1xf32>
    %81 = arith.subf %79, %80 : vector<32x1xf32>
    %82 = vector.broadcast %77 : vector<32x1xf32> to vector<32x128xf32>
    %83 = arith.subf %70, %82 : vector<32x128xf32>
    %cst_32 = arith.constant 9.99999974E-6 : f32
    %84 = vector.broadcast %cst_32 : f32 to vector<32x1xf32>
    %85 = arith.addf %81, %84 : vector<32x1xf32>
    %86 = math.rsqrt %85 : vector<32x1xf32>
    %87 = vector.broadcast %86 : vector<32x1xf32> to vector<32x128xf32>
    %88 = arith.mulf %83, %87 : vector<32x128xf32>
    %89 = vector.extract_strided_slice %88 {offsets = [0, 0], sizes = [16, 128], strides = [1, 1]} : vector<32x128xf32> to vector<16x128xf32>
    %90 = vector.extract_strided_slice %88 {offsets = [16, 0], sizes = [16, 128], strides = [1, 1]} : vector<32x128xf32> to vector<16x128xf32>
    %91 = arith.negf %90 : vector<16x128xf32>
    %92 = math.exp %91 : vector<16x128xf32>
    %cst_33 = arith.constant 1.000000e+00 : f32
    %93 = vector.broadcast %cst_33 : f32 to vector<16x128xf32>
    %94 = arith.addf %93, %92 : vector<16x128xf32>
    %95 = arith.divf %93, %94 : vector<16x128xf32>
    %96 = arith.mulf %89, %95 : vector<16x128xf32>
    %97 = arith.addf %67, %96 : vector<16x128xf32>
    %cst_34 = arith.constant 0.707106769 : f32
    %98 = vector.broadcast %cst_34 : f32 to vector<16x128xf32>
    %99 = arith.mulf %97, %98 : vector<16x128xf32>
    %c2 = arith.constant 2 : index
    %c0_35 = arith.constant 0 : index
    %c0_36 = arith.constant 0 : index
    %100 = vector.load %arg4[%c2, %c0_35, %c0_36] : memref<9x32x16xf32, #tpu.memory_space<vmem>>, vector<1x32x16xf32>
    %101 = vector.shape_cast %100 : vector<1x32x16xf32> to vector<32x16xf32>
    %cst_37 = arith.constant dense<0.000000e+00> : vector<32x128xf32>
    %102 = tpu.matmul %101, %99, %cst_37 {dimension_numbers = #tpu.dot_dimension_numbers<[1], [0], [0], [1], [0, 0, 1, 1], [], []>} : vector<32x16xf32>, vector<16x128xf32>, vector<32x128xf32> -> vector<32x128xf32>
    %cst_38 = arith.constant dense<0.000000e+00> : vector<32xf32>
    %103 = vector.multi_reduction <add>, %102, %cst_38 [1] : vector<32x128xf32> to vector<32xf32>
    %104 = vector.shape_cast %103 : vector<32xf32> to vector<32x1xf32>
    %105 = arith.mulf %102, %102 : vector<32x128xf32>
    %cst_39 = arith.constant dense<0.000000e+00> : vector<32xf32>
    %106 = vector.multi_reduction <add>, %105, %cst_39 [1] : vector<32x128xf32> to vector<32xf32>
    %107 = vector.shape_cast %106 : vector<32xf32> to vector<32x1xf32>
    %cst_40 = arith.constant 7.812500e-03 : f32
    %108 = vector.broadcast %cst_40 : f32 to vector<32x1xf32>
    %109 = arith.mulf %104, %108 : vector<32x1xf32>
    %cst_41 = arith.constant 7.812500e-03 : f32
    %110 = vector.broadcast %cst_41 : f32 to vector<32x1xf32>
    %111 = arith.mulf %107, %110 : vector<32x1xf32>
    %112 = arith.mulf %109, %109 : vector<32x1xf32>
    %113 = arith.subf %111, %112 : vector<32x1xf32>
    %114 = vector.broadcast %109 : vector<32x1xf32> to vector<32x128xf32>
    %115 = arith.subf %102, %114 : vector<32x128xf32>
    %cst_42 = arith.constant 9.99999974E-6 : f32
    %116 = vector.broadcast %cst_42 : f32 to vector<32x1xf32>
    %117 = arith.addf %113, %116 : vector<32x1xf32>
    %118 = math.rsqrt %117 : vector<32x1xf32>
    %119 = vector.broadcast %118 : vector<32x1xf32> to vector<32x128xf32>
    %120 = arith.mulf %115, %119 : vector<32x128xf32>
    %121 = vector.extract_strided_slice %120 {offsets = [0, 0], sizes = [16, 128], strides = [1, 1]} : vector<32x128xf32> to vector<16x128xf32>
    %122 = vector.extract_strided_slice %120 {offsets = [16, 0], sizes = [16, 128], strides = [1, 1]} : vector<32x128xf32> to vector<16x128xf32>
    %123 = arith.negf %122 : vector<16x128xf32>
    %124 = math.exp %123 : vector<16x128xf32>
    %cst_43 = arith.constant 1.000000e+00 : f32
    %125 = vector.broadcast %cst_43 : f32 to vector<16x128xf32>
    %126 = arith.addf %125, %124 : vector<16x128xf32>
    %127 = arith.divf %125, %126 : vector<16x128xf32>
    %128 = arith.mulf %121, %127 : vector<16x128xf32>
    %129 = arith.addf %99, %128 : vector<16x128xf32>
    %cst_44 = arith.constant 0.707106769 : f32
    %130 = vector.broadcast %cst_44 : f32 to vector<16x128xf32>
    %131 = arith.mulf %129, %130 : vector<16x128xf32>
    %132 = vector.extract_strided_slice %131 {offsets = [8, 0], sizes = [8, 128], strides = [1, 1]} : vector<16x128xf32> to vector<8x128xf32>
    %cst_45 = arith.constant 0.000000e+00 : f32
    %133 = vector.broadcast %cst_45 : f32 to vector<8x128xf32>
    %cst_46 = arith.constant 0.000000e+00 : f32
    %134 = vector.broadcast %cst_46 : f32 to vector<1x128xf32>
    %c0_47 = arith.constant 0 : index
    %c0_48 = arith.constant 0 : index
    %c0_49 = arith.constant 0 : index
    %135 = vector.load %arg5[%c0_47, %c0_48, %c0_49] : memref<3x16x8xf32, #tpu.memory_space<vmem>>, vector<1x16x8xf32>
    %136 = vector.shape_cast %135 : vector<1x16x8xf32> to vector<16x8xf32>
    %cst_50 = arith.constant dense<0.000000e+00> : vector<16x128xf32>
    %137 = tpu.matmul %136, %132, %cst_50 {dimension_numbers = #tpu.dot_dimension_numbers<[1], [0], [0], [1], [0, 0, 1, 1], [], []>} : vector<16x8xf32>, vector<8x128xf32>, vector<16x128xf32> -> vector<16x128xf32>
    %cst_51 = arith.constant dense<0.000000e+00> : vector<16xf32>
    %138 = vector.multi_reduction <add>, %137, %cst_51 [1] : vector<16x128xf32> to vector<16xf32>
    %139 = vector.shape_cast %138 : vector<16xf32> to vector<16x1xf32>
    %140 = arith.mulf %137, %137 : vector<16x128xf32>
    %cst_52 = arith.constant dense<0.000000e+00> : vector<16xf32>
    %141 = vector.multi_reduction <add>, %140, %cst_52 [1] : vector<16x128xf32> to vector<16xf32>
    %142 = vector.shape_cast %141 : vector<16xf32> to vector<16x1xf32>
    %cst_53 = arith.constant 7.812500e-03 : f32
    %143 = vector.broadcast %cst_53 : f32 to vector<16x1xf32>
    %144 = arith.mulf %139, %143 : vector<16x1xf32>
    %cst_54 = arith.constant 7.812500e-03 : f32
    %145 = vector.broadcast %cst_54 : f32 to vector<16x1xf32>
    %146 = arith.mulf %142, %145 : vector<16x1xf32>
    %147 = arith.mulf %144, %144 : vector<16x1xf32>
    %148 = arith.subf %146, %147 : vector<16x1xf32>
    %149 = vector.broadcast %144 : vector<16x1xf32> to vector<16x128xf32>
    %150 = arith.subf %137, %149 : vector<16x128xf32>
    %cst_55 = arith.constant 9.99999974E-6 : f32
    %151 = vector.broadcast %cst_55 : f32 to vector<16x1xf32>
    %152 = arith.addf %148, %151 : vector<16x1xf32>
    %153 = math.rsqrt %152 : vector<16x1xf32>
    %154 = vector.broadcast %153 : vector<16x1xf32> to vector<16x128xf32>
    %155 = arith.mulf %150, %154 : vector<16x128xf32>
    %156 = arith.mulf %155, %7 : vector<16x128xf32>
    %cst_56 = arith.constant 0.000000e+00 : f32
    %157 = vector.broadcast %cst_56 : f32 to vector<16x128xf32>
    %cst_57 = arith.constant 0.000000e+00 : f32
    %158 = vector.broadcast %cst_57 : f32 to vector<16x128xf32>
    %159 = vector.extract_strided_slice %156 {offsets = [0, 0], sizes = [1, 128], strides = [1, 1]} : vector<16x128xf32> to vector<1x128xf32>
    %160 = vector.broadcast %159 : vector<1x128xf32> to vector<16x128xf32>
    %161 = arith.cmpf oge, %160, %156 : vector<16x128xf32>
    %162 = arith.extui %161 : vector<16x128xi1> to vector<16x128xi32>
    %163 = arith.sitofp %162 : vector<16x128xi32> to vector<16x128xf32>
    %164 = arith.addf %157, %163 : vector<16x128xf32>
    %165 = vector.broadcast %159 : vector<1x128xf32> to vector<16x128xf32>
    %166 = arith.mulf %163, %165 : vector<16x128xf32>
    %167 = arith.addf %158, %166 : vector<16x128xf32>
    %168 = vector.extract_strided_slice %156 {offsets = [1, 0], sizes = [1, 128], strides = [1, 1]} : vector<16x128xf32> to vector<1x128xf32>
    %169 = vector.broadcast %168 : vector<1x128xf32> to vector<16x128xf32>
    %170 = arith.cmpf oge, %169, %156 : vector<16x128xf32>
    %171 = arith.extui %170 : vector<16x128xi1> to vector<16x128xi32>
    %172 = arith.sitofp %171 : vector<16x128xi32> to vector<16x128xf32>
    %173 = arith.addf %164, %172 : vector<16x128xf32>
    %174 = vector.broadcast %168 : vector<1x128xf32> to vector<16x128xf32>
    %175 = arith.mulf %172, %174 : vector<16x128xf32>
    %176 = arith.addf %167, %175 : vector<16x128xf32>
    %177 = vector.extract_strided_slice %156 {offsets = [2, 0], sizes = [1, 128], strides = [1, 1]} : vector<16x128xf32> to vector<1x128xf32>
    %178 = vector.broadcast %177 : vector<1x128xf32> to vector<16x128xf32>
    %179 = arith.cmpf oge, %178, %156 : vector<16x128xf32>
    %180 = arith.extui %179 : vector<16x128xi1> to vector<16x128xi32>
    %181 = arith.sitofp %180 : vector<16x128xi32> to vector<16x128xf32>
    %182 = arith.addf %173, %181 : vector<16x128xf32>
    %183 = vector.broadcast %177 : vector<1x128xf32> to vector<16x128xf32>
    %184 = arith.mulf %181, %183 : vector<16x128xf32>
    %185 = arith.addf %176, %184 : vector<16x128xf32>
    %186 = vector.extract_strided_slice %156 {offsets = [3, 0], sizes = [1, 128], strides = [1, 1]} : vector<16x128xf32> to vector<1x128xf32>
    %187 = vector.broadcast %186 : vector<1x128xf32> to vector<16x128xf32>
    %188 = arith.cmpf oge, %187, %156 : vector<16x128xf32>
    %189 = arith.extui %188 : vector<16x128xi1> to vector<16x128xi32>
    %190 = arith.sitofp %189 : vector<16x128xi32> to vector<16x128xf32>
    %191 = arith.addf %182, %190 : vector<16x128xf32>
    %192 = vector.broadcast %186 : vector<1x128xf32> to vector<16x128xf32>
    %193 = arith.mulf %190, %192 : vector<16x128xf32>
    %194 = arith.addf %185, %193 : vector<16x128xf32>
    %195 = vector.extract_strided_slice %156 {offsets = [4, 0], sizes = [1, 128], strides = [1, 1]} : vector<16x128xf32> to vector<1x128xf32>
    %196 = vector.broadcast %195 : vector<1x128xf32> to vector<16x128xf32>
    %197 = arith.cmpf oge, %196, %156 : vector<16x128xf32>
    %198 = arith.extui %197 : vector<16x128xi1> to vector<16x128xi32>
    %199 = arith.sitofp %198 : vector<16x128xi32> to vector<16x128xf32>
    %200 = arith.addf %191, %199 : vector<16x128xf32>
    %201 = vector.broadcast %195 : vector<1x128xf32> to vector<16x128xf32>
    %202 = arith.mulf %199, %201 : vector<16x128xf32>
    %203 = arith.addf %194, %202 : vector<16x128xf32>
    %204 = vector.extract_strided_slice %156 {offsets = [5, 0], sizes = [1, 128], strides = [1, 1]} : vector<16x128xf32> to vector<1x128xf32>
    %205 = vector.broadcast %204 : vector<1x128xf32> to vector<16x128xf32>
    %206 = arith.cmpf oge, %205, %156 : vector<16x128xf32>
    %207 = arith.extui %206 : vector<16x128xi1> to vector<16x128xi32>
    %208 = arith.sitofp %207 : vector<16x128xi32> to vector<16x128xf32>
    %209 = arith.addf %200, %208 : vector<16x128xf32>
    %210 = vector.broadcast %204 : vector<1x128xf32> to vector<16x128xf32>
    %211 = arith.mulf %208, %210 : vector<16x128xf32>
    %212 = arith.addf %203, %211 : vector<16x128xf32>
    %213 = vector.extract_strided_slice %156 {offsets = [6, 0], sizes = [1, 128], strides = [1, 1]} : vector<16x128xf32> to vector<1x128xf32>
    %214 = vector.broadcast %213 : vector<1x128xf32> to vector<16x128xf32>
    %215 = arith.cmpf oge, %214, %156 : vector<16x128xf32>
    %216 = arith.extui %215 : vector<16x128xi1> to vector<16x128xi32>
    %217 = arith.sitofp %216 : vector<16x128xi32> to vector<16x128xf32>
    %218 = arith.addf %209, %217 : vector<16x128xf32>
    %219 = vector.broadcast %213 : vector<1x128xf32> to vector<16x128xf32>
    %220 = arith.mulf %217, %219 : vector<16x128xf32>
    %221 = arith.addf %212, %220 : vector<16x128xf32>
    %222 = vector.extract_strided_slice %156 {offsets = [7, 0], sizes = [1, 128], strides = [1, 1]} : vector<16x128xf32> to vector<1x128xf32>
    %223 = vector.broadcast %222 : vector<1x128xf32> to vector<16x128xf32>
    %224 = arith.cmpf oge, %223, %156 : vector<16x128xf32>
    %225 = arith.extui %224 : vector<16x128xi1> to vector<16x128xi32>
    %226 = arith.sitofp %225 : vector<16x128xi32> to vector<16x128xf32>
    %227 = arith.addf %218, %226 : vector<16x128xf32>
    %228 = vector.broadcast %222 : vector<1x128xf32> to vector<16x128xf32>
    %229 = arith.mulf %226, %228 : vector<16x128xf32>
    %230 = arith.addf %221, %229 : vector<16x128xf32>
    %231 = vector.extract_strided_slice %156 {offsets = [8, 0], sizes = [1, 128], strides = [1, 1]} : vector<16x128xf32> to vector<1x128xf32>
    %232 = vector.broadcast %231 : vector<1x128xf32> to vector<16x128xf32>
    %233 = arith.cmpf oge, %232, %156 : vector<16x128xf32>
    %234 = arith.extui %233 : vector<16x128xi1> to vector<16x128xi32>
    %235 = arith.sitofp %234 : vector<16x128xi32> to vector<16x128xf32>
    %236 = arith.addf %227, %235 : vector<16x128xf32>
    %237 = vector.broadcast %231 : vector<1x128xf32> to vector<16x128xf32>
    %238 = arith.mulf %235, %237 : vector<16x128xf32>
    %239 = arith.addf %230, %238 : vector<16x128xf32>
    %240 = vector.extract_strided_slice %156 {offsets = [9, 0], sizes = [1, 128], strides = [1, 1]} : vector<16x128xf32> to vector<1x128xf32>
    %241 = vector.broadcast %240 : vector<1x128xf32> to vector<16x128xf32>
    %242 = arith.cmpf oge, %241, %156 : vector<16x128xf32>
    %243 = arith.extui %242 : vector<16x128xi1> to vector<16x128xi32>
    %244 = arith.sitofp %243 : vector<16x128xi32> to vector<16x128xf32>
    %245 = arith.addf %236, %244 : vector<16x128xf32>
    %246 = vector.broadcast %240 : vector<1x128xf32> to vector<16x128xf32>
    %247 = arith.mulf %244, %246 : vector<16x128xf32>
    %248 = arith.addf %239, %247 : vector<16x128xf32>
    %249 = vector.extract_strided_slice %156 {offsets = [10, 0], sizes = [1, 128], strides = [1, 1]} : vector<16x128xf32> to vector<1x128xf32>
    %250 = vector.broadcast %249 : vector<1x128xf32> to vector<16x128xf32>
    %251 = arith.cmpf oge, %250, %156 : vector<16x128xf32>
    %252 = arith.extui %251 : vector<16x128xi1> to vector<16x128xi32>
    %253 = arith.sitofp %252 : vector<16x128xi32> to vector<16x128xf32>
    %254 = arith.addf %245, %253 : vector<16x128xf32>
    %255 = vector.broadcast %249 : vector<1x128xf32> to vector<16x128xf32>
    %256 = arith.mulf %253, %255 : vector<16x128xf32>
    %257 = arith.addf %248, %256 : vector<16x128xf32>
    %258 = vector.extract_strided_slice %156 {offsets = [11, 0], sizes = [1, 128], strides = [1, 1]} : vector<16x128xf32> to vector<1x128xf32>
    %259 = vector.broadcast %258 : vector<1x128xf32> to vector<16x128xf32>
    %260 = arith.cmpf oge, %259, %156 : vector<16x128xf32>
    %261 = arith.extui %260 : vector<16x128xi1> to vector<16x128xi32>
    %262 = arith.sitofp %261 : vector<16x128xi32> to vector<16x128xf32>
    %263 = arith.addf %254, %262 : vector<16x128xf32>
    %264 = vector.broadcast %258 : vector<1x128xf32> to vector<16x128xf32>
    %265 = arith.mulf %262, %264 : vector<16x128xf32>
    %266 = arith.addf %257, %265 : vector<16x128xf32>
    %267 = vector.extract_strided_slice %156 {offsets = [12, 0], sizes = [1, 128], strides = [1, 1]} : vector<16x128xf32> to vector<1x128xf32>
    %268 = vector.broadcast %267 : vector<1x128xf32> to vector<16x128xf32>
    %269 = arith.cmpf oge, %268, %156 : vector<16x128xf32>
    %270 = arith.extui %269 : vector<16x128xi1> to vector<16x128xi32>
    %271 = arith.sitofp %270 : vector<16x128xi32> to vector<16x128xf32>
    %272 = arith.addf %263, %271 : vector<16x128xf32>
    %273 = vector.broadcast %267 : vector<1x128xf32> to vector<16x128xf32>
    %274 = arith.mulf %271, %273 : vector<16x128xf32>
    %275 = arith.addf %266, %274 : vector<16x128xf32>
    %276 = vector.extract_strided_slice %156 {offsets = [13, 0], sizes = [1, 128], strides = [1, 1]} : vector<16x128xf32> to vector<1x128xf32>
    %277 = vector.broadcast %276 : vector<1x128xf32> to vector<16x128xf32>
    %278 = arith.cmpf oge, %277, %156 : vector<16x128xf32>
    %279 = arith.extui %278 : vector<16x128xi1> to vector<16x128xi32>
    %280 = arith.sitofp %279 : vector<16x128xi32> to vector<16x128xf32>
    %281 = arith.addf %272, %280 : vector<16x128xf32>
    %282 = vector.broadcast %276 : vector<1x128xf32> to vector<16x128xf32>
    %283 = arith.mulf %280, %282 : vector<16x128xf32>
    %284 = arith.addf %275, %283 : vector<16x128xf32>
    %285 = vector.extract_strided_slice %156 {offsets = [14, 0], sizes = [1, 128], strides = [1, 1]} : vector<16x128xf32> to vector<1x128xf32>
    %286 = vector.broadcast %285 : vector<1x128xf32> to vector<16x128xf32>
    %287 = arith.cmpf oge, %286, %156 : vector<16x128xf32>
    %288 = arith.extui %287 : vector<16x128xi1> to vector<16x128xi32>
    %289 = arith.sitofp %288 : vector<16x128xi32> to vector<16x128xf32>
    %290 = arith.addf %281, %289 : vector<16x128xf32>
    %291 = vector.broadcast %285 : vector<1x128xf32> to vector<16x128xf32>
    %292 = arith.mulf %289, %291 : vector<16x128xf32>
    %293 = arith.addf %284, %292 : vector<16x128xf32>
    %294 = vector.extract_strided_slice %156 {offsets = [15, 0], sizes = [1, 128], strides = [1, 1]} : vector<16x128xf32> to vector<1x128xf32>
    %295 = vector.broadcast %294 : vector<1x128xf32> to vector<16x128xf32>
    %296 = arith.cmpf oge, %295, %156 : vector<16x128xf32>
    %297 = arith.extui %296 : vector<16x128xi1> to vector<16x128xi32>
    %298 = arith.sitofp %297 : vector<16x128xi32> to vector<16x128xf32>
    %299 = arith.addf %290, %298 : vector<16x128xf32>
    %300 = vector.broadcast %294 : vector<1x128xf32> to vector<16x128xf32>
    %301 = arith.mulf %298, %300 : vector<16x128xf32>
    %302 = arith.addf %293, %301 : vector<16x128xf32>
    %303 = arith.mulf %299, %156 : vector<16x128xf32>
    %cst_58 = arith.constant 1.000000e+00 : f32
    %304 = vector.broadcast %cst_58 : f32 to vector<16x128xf32>
    %305 = arith.addf %304, %303 : vector<16x128xf32>
    %306 = arith.cmpf ogt, %305, %302 : vector<16x128xf32>
    %307 = arith.extui %306 : vector<16x128xi1> to vector<16x128xi32>
    %308 = arith.sitofp %307 : vector<16x128xi32> to vector<16x128xf32>
    %cst_59 = arith.constant dense<0.000000e+00> : vector<128xf32>
    %309 = vector.multi_reduction <add>, %308, %cst_59 [0] : vector<16x128xf32> to vector<128xf32>
    %310 = vector.shape_cast %309 : vector<128xf32> to vector<1x128xf32>
    %311 = arith.mulf %308, %156 : vector<16x128xf32>
    %cst_60 = arith.constant dense<0.000000e+00> : vector<128xf32>
    %312 = vector.multi_reduction <add>, %311, %cst_60 [0] : vector<16x128xf32> to vector<128xf32>
    %313 = vector.shape_cast %312 : vector<128xf32> to vector<1x128xf32>
    %cst_61 = arith.constant 1.000000e+00 : f32
    %314 = vector.broadcast %cst_61 : f32 to vector<1x128xf32>
    %315 = arith.subf %313, %314 : vector<1x128xf32>
    %316 = arith.divf %315, %310 : vector<1x128xf32>
    %317 = vector.broadcast %316 : vector<1x128xf32> to vector<16x128xf32>
    %318 = arith.subf %156, %317 : vector<16x128xf32>
    %cst_62 = arith.constant 0.000000e+00 : f32
    %319 = vector.broadcast %cst_62 : f32 to vector<16x128xf32>
    %320 = arith.maximumf %318, %319 : vector<16x128xf32>
    %cst_63 = arith.constant 1.000000e-15 : f32
    %321 = vector.broadcast %cst_63 : f32 to vector<16x128xf32>
    %322 = arith.addf %320, %321 : vector<16x128xf32>
    %323 = math.log %322 : vector<16x128xf32>
    %324 = arith.mulf %320, %323 : vector<16x128xf32>
    %cst_64 = arith.constant dense<0.000000e+00> : vector<128xf32>
    %325 = vector.multi_reduction <add>, %324, %cst_64 [0] : vector<16x128xf32> to vector<128xf32>
    %326 = vector.shape_cast %325 : vector<128xf32> to vector<1x128xf32>
    %327 = arith.addf %134, %326 : vector<1x128xf32>
    %cst_65 = arith.constant 1.300000e+00 : f32
    %328 = vector.broadcast %cst_65 : f32 to vector<16x128xf32>
    %329 = arith.subf %328, %320 : vector<16x128xf32>
    %330 = arith.mulf %329, %7 : vector<16x128xf32>
    %331 = arith.mulf %320, %6 : vector<16x128xf32>
    %c0_66 = arith.constant 0 : index
    %c0_67 = arith.constant 0 : index
    %332 = vector.load %arg3[%c0_66, %c0_67] : memref<32x16xf32, #tpu.memory_space<vmem>>, vector<32x16xf32>
    %cst_68 = arith.constant dense<0.000000e+00> : vector<32x128xf32>
    %333 = tpu.matmul %332, %331, %cst_68 {dimension_numbers = #tpu.dot_dimension_numbers<[1], [0], [0], [1], [0, 0, 1, 1], [], []>} : vector<32x16xf32>, vector<16x128xf32>, vector<32x128xf32> -> vector<32x128xf32>
    %cst_69 = arith.constant dense<0.000000e+00> : vector<32xf32>
    %334 = vector.multi_reduction <add>, %333, %cst_69 [1] : vector<32x128xf32> to vector<32xf32>
    %335 = vector.shape_cast %334 : vector<32xf32> to vector<32x1xf32>
    %336 = arith.mulf %333, %333 : vector<32x128xf32>
    %cst_70 = arith.constant dense<0.000000e+00> : vector<32xf32>
    %337 = vector.multi_reduction <add>, %336, %cst_70 [1] : vector<32x128xf32> to vector<32xf32>
    %338 = vector.shape_cast %337 : vector<32xf32> to vector<32x1xf32>
    %cst_71 = arith.constant 7.812500e-03 : f32
    %339 = vector.broadcast %cst_71 : f32 to vector<32x1xf32>
    %340 = arith.mulf %335, %339 : vector<32x1xf32>
    %cst_72 = arith.constant 7.812500e-03 : f32
    %341 = vector.broadcast %cst_72 : f32 to vector<32x1xf32>
    %342 = arith.mulf %338, %341 : vector<32x1xf32>
    %343 = arith.mulf %340, %340 : vector<32x1xf32>
    %344 = arith.subf %342, %343 : vector<32x1xf32>
    %345 = vector.broadcast %340 : vector<32x1xf32> to vector<32x128xf32>
    %346 = arith.subf %333, %345 : vector<32x128xf32>
    %cst_73 = arith.constant 9.99999974E-6 : f32
    %347 = vector.broadcast %cst_73 : f32 to vector<32x1xf32>
    %348 = arith.addf %344, %347 : vector<32x1xf32>
    %349 = math.rsqrt %348 : vector<32x1xf32>
    %350 = vector.broadcast %349 : vector<32x1xf32> to vector<32x128xf32>
    %351 = arith.mulf %346, %350 : vector<32x128xf32>
    %352 = vector.extract_strided_slice %351 {offsets = [0, 0], sizes = [16, 128], strides = [1, 1]} : vector<32x128xf32> to vector<16x128xf32>
    %353 = vector.extract_strided_slice %351 {offsets = [16, 0], sizes = [16, 128], strides = [1, 1]} : vector<32x128xf32> to vector<16x128xf32>
    %354 = arith.negf %353 : vector<16x128xf32>
    %355 = math.exp %354 : vector<16x128xf32>
    %cst_74 = arith.constant 1.000000e+00 : f32
    %356 = vector.broadcast %cst_74 : f32 to vector<16x128xf32>
    %357 = arith.addf %356, %355 : vector<16x128xf32>
    %358 = arith.divf %356, %357 : vector<16x128xf32>
    %359 = arith.mulf %352, %358 : vector<16x128xf32>
    %c0_75 = arith.constant 0 : index
    %c0_76 = arith.constant 0 : index
    %c0_77 = arith.constant 0 : index
    %360 = vector.load %arg4[%c0_75, %c0_76, %c0_77] : memref<9x32x16xf32, #tpu.memory_space<vmem>>, vector<1x32x16xf32>
    %361 = vector.shape_cast %360 : vector<1x32x16xf32> to vector<32x16xf32>
    %cst_78 = arith.constant dense<0.000000e+00> : vector<32x128xf32>
    %362 = tpu.matmul %361, %359, %cst_78 {dimension_numbers = #tpu.dot_dimension_numbers<[1], [0], [0], [1], [0, 0, 1, 1], [], []>} : vector<32x16xf32>, vector<16x128xf32>, vector<32x128xf32> -> vector<32x128xf32>
    %cst_79 = arith.constant dense<0.000000e+00> : vector<32xf32>
    %363 = vector.multi_reduction <add>, %362, %cst_79 [1] : vector<32x128xf32> to vector<32xf32>
    %364 = vector.shape_cast %363 : vector<32xf32> to vector<32x1xf32>
    %365 = arith.mulf %362, %362 : vector<32x128xf32>
    %cst_80 = arith.constant dense<0.000000e+00> : vector<32xf32>
    %366 = vector.multi_reduction <add>, %365, %cst_80 [1] : vector<32x128xf32> to vector<32xf32>
    %367 = vector.shape_cast %366 : vector<32xf32> to vector<32x1xf32>
    %cst_81 = arith.constant 7.812500e-03 : f32
    %368 = vector.broadcast %cst_81 : f32 to vector<32x1xf32>
    %369 = arith.mulf %364, %368 : vector<32x1xf32>
    %cst_82 = arith.constant 7.812500e-03 : f32
    %370 = vector.broadcast %cst_82 : f32 to vector<32x1xf32>
    %371 = arith.mulf %367, %370 : vector<32x1xf32>
    %372 = arith.mulf %369, %369 : vector<32x1xf32>
    %373 = arith.subf %371, %372 : vector<32x1xf32>
    %374 = vector.broadcast %369 : vector<32x1xf32> to vector<32x128xf32>
    %375 = arith.subf %362, %374 : vector<32x128xf32>
    %cst_83 = arith.constant 9.99999974E-6 : f32
    %376 = vector.broadcast %cst_83 : f32 to vector<32x1xf32>
    %377 = arith.addf %373, %376 : vector<32x1xf32>
    %378 = math.rsqrt %377 : vector<32x1xf32>
    %379 = vector.broadcast %378 : vector<32x1xf32> to vector<32x128xf32>
    %380 = arith.mulf %375, %379 : vector<32x128xf32>
    %381 = vector.extract_strided_slice %380 {offsets = [0, 0], sizes = [16, 128], strides = [1, 1]} : vector<32x128xf32> to vector<16x128xf32>
    %382 = vector.extract_strided_slice %380 {offsets = [16, 0], sizes = [16, 128], strides = [1, 1]} : vector<32x128xf32> to vector<16x128xf32>
    %383 = arith.negf %382 : vector<16x128xf32>
    %384 = math.exp %383 : vector<16x128xf32>
    %cst_84 = arith.constant 1.000000e+00 : f32
    %385 = vector.broadcast %cst_84 : f32 to vector<16x128xf32>
    %386 = arith.addf %385, %384 : vector<16x128xf32>
    %387 = arith.divf %385, %386 : vector<16x128xf32>
    %388 = arith.mulf %381, %387 : vector<16x128xf32>
    %389 = arith.addf %359, %388 : vector<16x128xf32>
    %cst_85 = arith.constant 0.707106769 : f32
    %390 = vector.broadcast %cst_85 : f32 to vector<16x128xf32>
    %391 = arith.mulf %389, %390 : vector<16x128xf32>
    %c3 = arith.constant 3 : index
    %c0_86 = arith.constant 0 : index
    %c0_87 = arith.constant 0 : index
    %392 = vector.load %arg4[%c3, %c0_86, %c0_87] : memref<9x32x16xf32, #tpu.memory_space<vmem>>, vector<1x32x16xf32>
    %393 = vector.shape_cast %392 : vector<1x32x16xf32> to vector<32x16xf32>
    %cst_88 = arith.constant dense<0.000000e+00> : vector<32x128xf32>
    %394 = tpu.matmul %393, %391, %cst_88 {dimension_numbers = #tpu.dot_dimension_numbers<[1], [0], [0], [1], [0, 0, 1, 1], [], []>} : vector<32x16xf32>, vector<16x128xf32>, vector<32x128xf32> -> vector<32x128xf32>
    %cst_89 = arith.constant dense<0.000000e+00> : vector<32xf32>
    %395 = vector.multi_reduction <add>, %394, %cst_89 [1] : vector<32x128xf32> to vector<32xf32>
    %396 = vector.shape_cast %395 : vector<32xf32> to vector<32x1xf32>
    %397 = arith.mulf %394, %394 : vector<32x128xf32>
    %cst_90 = arith.constant dense<0.000000e+00> : vector<32xf32>
    %398 = vector.multi_reduction <add>, %397, %cst_90 [1] : vector<32x128xf32> to vector<32xf32>
    %399 = vector.shape_cast %398 : vector<32xf32> to vector<32x1xf32>
    %cst_91 = arith.constant 7.812500e-03 : f32
    %400 = vector.broadcast %cst_91 : f32 to vector<32x1xf32>
    %401 = arith.mulf %396, %400 : vector<32x1xf32>
    %cst_92 = arith.constant 7.812500e-03 : f32
    %402 = vector.broadcast %cst_92 : f32 to vector<32x1xf32>
    %403 = arith.mulf %399, %402 : vector<32x1xf32>
    %404 = arith.mulf %401, %401 : vector<32x1xf32>
    %405 = arith.subf %403, %404 : vector<32x1xf32>
    %406 = vector.broadcast %401 : vector<32x1xf32> to vector<32x128xf32>
    %407 = arith.subf %394, %406 : vector<32x128xf32>
    %cst_93 = arith.constant 9.99999974E-6 : f32
    %408 = vector.broadcast %cst_93 : f32 to vector<32x1xf32>
    %409 = arith.addf %405, %408 : vector<32x1xf32>
    %410 = math.rsqrt %409 : vector<32x1xf32>
    %411 = vector.broadcast %410 : vector<32x1xf32> to vector<32x128xf32>
    %412 = arith.mulf %407, %411 : vector<32x128xf32>
    %413 = vector.extract_strided_slice %412 {offsets = [0, 0], sizes = [16, 128], strides = [1, 1]} : vector<32x128xf32> to vector<16x128xf32>
    %414 = vector.extract_strided_slice %412 {offsets = [16, 0], sizes = [16, 128], strides = [1, 1]} : vector<32x128xf32> to vector<16x128xf32>
    %415 = arith.negf %414 : vector<16x128xf32>
    %416 = math.exp %415 : vector<16x128xf32>
    %cst_94 = arith.constant 1.000000e+00 : f32
    %417 = vector.broadcast %cst_94 : f32 to vector<16x128xf32>
    %418 = arith.addf %417, %416 : vector<16x128xf32>
    %419 = arith.divf %417, %418 : vector<16x128xf32>
    %420 = arith.mulf %413, %419 : vector<16x128xf32>
    %421 = arith.addf %391, %420 : vector<16x128xf32>
    %cst_95 = arith.constant 0.707106769 : f32
    %422 = vector.broadcast %cst_95 : f32 to vector<16x128xf32>
    %423 = arith.mulf %421, %422 : vector<16x128xf32>
    %c4 = arith.constant 4 : index
    %c0_96 = arith.constant 0 : index
    %c0_97 = arith.constant 0 : index
    %424 = vector.load %arg4[%c4, %c0_96, %c0_97] : memref<9x32x16xf32, #tpu.memory_space<vmem>>, vector<1x32x16xf32>
    %425 = vector.shape_cast %424 : vector<1x32x16xf32> to vector<32x16xf32>
    %cst_98 = arith.constant dense<0.000000e+00> : vector<32x128xf32>
    %426 = tpu.matmul %425, %423, %cst_98 {dimension_numbers = #tpu.dot_dimension_numbers<[1], [0], [0], [1], [0, 0, 1, 1], [], []>} : vector<32x16xf32>, vector<16x128xf32>, vector<32x128xf32> -> vector<32x128xf32>
    %cst_99 = arith.constant dense<0.000000e+00> : vector<32xf32>
    %427 = vector.multi_reduction <add>, %426, %cst_99 [1] : vector<32x128xf32> to vector<32xf32>
    %428 = vector.shape_cast %427 : vector<32xf32> to vector<32x1xf32>
    %429 = arith.mulf %426, %426 : vector<32x128xf32>
    %cst_100 = arith.constant dense<0.000000e+00> : vector<32xf32>
    %430 = vector.multi_reduction <add>, %429, %cst_100 [1] : vector<32x128xf32> to vector<32xf32>
    %431 = vector.shape_cast %430 : vector<32xf32> to vector<32x1xf32>
    %cst_101 = arith.constant 7.812500e-03 : f32
    %432 = vector.broadcast %cst_101 : f32 to vector<32x1xf32>
    %433 = arith.mulf %428, %432 : vector<32x1xf32>
    %cst_102 = arith.constant 7.812500e-03 : f32
    %434 = vector.broadcast %cst_102 : f32 to vector<32x1xf32>
    %435 = arith.mulf %431, %434 : vector<32x1xf32>
    %436 = arith.mulf %433, %433 : vector<32x1xf32>
    %437 = arith.subf %435, %436 : vector<32x1xf32>
    %438 = vector.broadcast %433 : vector<32x1xf32> to vector<32x128xf32>
    %439 = arith.subf %426, %438 : vector<32x128xf32>
    %cst_103 = arith.constant 9.99999974E-6 : f32
    %440 = vector.broadcast %cst_103 : f32 to vector<32x1xf32>
    %441 = arith.addf %437, %440 : vector<32x1xf32>
    %442 = math.rsqrt %441 : vector<32x1xf32>
    %443 = vector.broadcast %442 : vector<32x1xf32> to vector<32x128xf32>
    %444 = arith.mulf %439, %443 : vector<32x128xf32>
    %445 = vector.extract_strided_slice %444 {offsets = [0, 0], sizes = [16, 128], strides = [1, 1]} : vector<32x128xf32> to vector<16x128xf32>
    %446 = vector.extract_strided_slice %444 {offsets = [16, 0], sizes = [16, 128], strides = [1, 1]} : vector<32x128xf32> to vector<16x128xf32>
    %447 = arith.negf %446 : vector<16x128xf32>
    %448 = math.exp %447 : vector<16x128xf32>
    %cst_104 = arith.constant 1.000000e+00 : f32
    %449 = vector.broadcast %cst_104 : f32 to vector<16x128xf32>
    %450 = arith.addf %449, %448 : vector<16x128xf32>
    %451 = arith.divf %449, %450 : vector<16x128xf32>
    %452 = arith.mulf %445, %451 : vector<16x128xf32>
    %453 = arith.addf %423, %452 : vector<16x128xf32>
    %cst_105 = arith.constant 0.707106769 : f32
    %454 = vector.broadcast %cst_105 : f32 to vector<16x128xf32>
    %455 = arith.mulf %453, %454 : vector<16x128xf32>
    %456 = vector.extract_strided_slice %455 {offsets = [0, 0], sizes = [8, 128], strides = [1, 1]} : vector<16x128xf32> to vector<8x128xf32>
    %cst_106 = arith.constant 0.000000e+00 : f32
    %457 = vector.broadcast %cst_106 : f32 to vector<8x128xf32>
    %458 = arith.maximumf %456, %457 : vector<8x128xf32>
    %459 = arith.addf %133, %458 : vector<8x128xf32>
    %460 = vector.extract_strided_slice %455 {offsets = [8, 0], sizes = [8, 128], strides = [1, 1]} : vector<16x128xf32> to vector<8x128xf32>
    %c1_107 = arith.constant 1 : index
    %c0_108 = arith.constant 0 : index
    %c0_109 = arith.constant 0 : index
    %461 = vector.load %arg5[%c1_107, %c0_108, %c0_109] : memref<3x16x8xf32, #tpu.memory_space<vmem>>, vector<1x16x8xf32>
    %462 = vector.shape_cast %461 : vector<1x16x8xf32> to vector<16x8xf32>
    %cst_110 = arith.constant dense<0.000000e+00> : vector<16x128xf32>
    %463 = tpu.matmul %462, %460, %cst_110 {dimension_numbers = #tpu.dot_dimension_numbers<[1], [0], [0], [1], [0, 0, 1, 1], [], []>} : vector<16x8xf32>, vector<8x128xf32>, vector<16x128xf32> -> vector<16x128xf32>
    %cst_111 = arith.constant dense<0.000000e+00> : vector<16xf32>
    %464 = vector.multi_reduction <add>, %463, %cst_111 [1] : vector<16x128xf32> to vector<16xf32>
    %465 = vector.shape_cast %464 : vector<16xf32> to vector<16x1xf32>
    %466 = arith.mulf %463, %463 : vector<16x128xf32>
    %cst_112 = arith.constant dense<0.000000e+00> : vector<16xf32>
    %467 = vector.multi_reduction <add>, %466, %cst_112 [1] : vector<16x128xf32> to vector<16xf32>
    %468 = vector.shape_cast %467 : vector<16xf32> to vector<16x1xf32>
    %cst_113 = arith.constant 7.812500e-03 : f32
    %469 = vector.broadcast %cst_113 : f32 to vector<16x1xf32>
    %470 = arith.mulf %465, %469 : vector<16x1xf32>
    %cst_114 = arith.constant 7.812500e-03 : f32
    %471 = vector.broadcast %cst_114 : f32 to vector<16x1xf32>
    %472 = arith.mulf %468, %471 : vector<16x1xf32>
    %473 = arith.mulf %470, %470 : vector<16x1xf32>
    %474 = arith.subf %472, %473 : vector<16x1xf32>
    %475 = vector.broadcast %470 : vector<16x1xf32> to vector<16x128xf32>
    %476 = arith.subf %463, %475 : vector<16x128xf32>
    %cst_115 = arith.constant 9.99999974E-6 : f32
    %477 = vector.broadcast %cst_115 : f32 to vector<16x1xf32>
    %478 = arith.addf %474, %477 : vector<16x1xf32>
    %479 = math.rsqrt %478 : vector<16x1xf32>
    %480 = vector.broadcast %479 : vector<16x1xf32> to vector<16x128xf32>
    %481 = arith.mulf %476, %480 : vector<16x128xf32>
    %482 = arith.mulf %481, %330 : vector<16x128xf32>
    %cst_116 = arith.constant 0.000000e+00 : f32
    %483 = vector.broadcast %cst_116 : f32 to vector<16x128xf32>
    %cst_117 = arith.constant 0.000000e+00 : f32
    %484 = vector.broadcast %cst_117 : f32 to vector<16x128xf32>
    %485 = vector.extract_strided_slice %482 {offsets = [0, 0], sizes = [1, 128], strides = [1, 1]} : vector<16x128xf32> to vector<1x128xf32>
    %486 = vector.broadcast %485 : vector<1x128xf32> to vector<16x128xf32>
    %487 = arith.cmpf oge, %486, %482 : vector<16x128xf32>
    %488 = arith.extui %487 : vector<16x128xi1> to vector<16x128xi32>
    %489 = arith.sitofp %488 : vector<16x128xi32> to vector<16x128xf32>
    %490 = arith.addf %483, %489 : vector<16x128xf32>
    %491 = vector.broadcast %485 : vector<1x128xf32> to vector<16x128xf32>
    %492 = arith.mulf %489, %491 : vector<16x128xf32>
    %493 = arith.addf %484, %492 : vector<16x128xf32>
    %494 = vector.extract_strided_slice %482 {offsets = [1, 0], sizes = [1, 128], strides = [1, 1]} : vector<16x128xf32> to vector<1x128xf32>
    %495 = vector.broadcast %494 : vector<1x128xf32> to vector<16x128xf32>
    %496 = arith.cmpf oge, %495, %482 : vector<16x128xf32>
    %497 = arith.extui %496 : vector<16x128xi1> to vector<16x128xi32>
    %498 = arith.sitofp %497 : vector<16x128xi32> to vector<16x128xf32>
    %499 = arith.addf %490, %498 : vector<16x128xf32>
    %500 = vector.broadcast %494 : vector<1x128xf32> to vector<16x128xf32>
    %501 = arith.mulf %498, %500 : vector<16x128xf32>
    %502 = arith.addf %493, %501 : vector<16x128xf32>
    %503 = vector.extract_strided_slice %482 {offsets = [2, 0], sizes = [1, 128], strides = [1, 1]} : vector<16x128xf32> to vector<1x128xf32>
    %504 = vector.broadcast %503 : vector<1x128xf32> to vector<16x128xf32>
    %505 = arith.cmpf oge, %504, %482 : vector<16x128xf32>
    %506 = arith.extui %505 : vector<16x128xi1> to vector<16x128xi32>
    %507 = arith.sitofp %506 : vector<16x128xi32> to vector<16x128xf32>
    %508 = arith.addf %499, %507 : vector<16x128xf32>
    %509 = vector.broadcast %503 : vector<1x128xf32> to vector<16x128xf32>
    %510 = arith.mulf %507, %509 : vector<16x128xf32>
    %511 = arith.addf %502, %510 : vector<16x128xf32>
    %512 = vector.extract_strided_slice %482 {offsets = [3, 0], sizes = [1, 128], strides = [1, 1]} : vector<16x128xf32> to vector<1x128xf32>
    %513 = vector.broadcast %512 : vector<1x128xf32> to vector<16x128xf32>
    %514 = arith.cmpf oge, %513, %482 : vector<16x128xf32>
    %515 = arith.extui %514 : vector<16x128xi1> to vector<16x128xi32>
    %516 = arith.sitofp %515 : vector<16x128xi32> to vector<16x128xf32>
    %517 = arith.addf %508, %516 : vector<16x128xf32>
    %518 = vector.broadcast %512 : vector<1x128xf32> to vector<16x128xf32>
    %519 = arith.mulf %516, %518 : vector<16x128xf32>
    %520 = arith.addf %511, %519 : vector<16x128xf32>
    %521 = vector.extract_strided_slice %482 {offsets = [4, 0], sizes = [1, 128], strides = [1, 1]} : vector<16x128xf32> to vector<1x128xf32>
    %522 = vector.broadcast %521 : vector<1x128xf32> to vector<16x128xf32>
    %523 = arith.cmpf oge, %522, %482 : vector<16x128xf32>
    %524 = arith.extui %523 : vector<16x128xi1> to vector<16x128xi32>
    %525 = arith.sitofp %524 : vector<16x128xi32> to vector<16x128xf32>
    %526 = arith.addf %517, %525 : vector<16x128xf32>
    %527 = vector.broadcast %521 : vector<1x128xf32> to vector<16x128xf32>
    %528 = arith.mulf %525, %527 : vector<16x128xf32>
    %529 = arith.addf %520, %528 : vector<16x128xf32>
    %530 = vector.extract_strided_slice %482 {offsets = [5, 0], sizes = [1, 128], strides = [1, 1]} : vector<16x128xf32> to vector<1x128xf32>
    %531 = vector.broadcast %530 : vector<1x128xf32> to vector<16x128xf32>
    %532 = arith.cmpf oge, %531, %482 : vector<16x128xf32>
    %533 = arith.extui %532 : vector<16x128xi1> to vector<16x128xi32>
    %534 = arith.sitofp %533 : vector<16x128xi32> to vector<16x128xf32>
    %535 = arith.addf %526, %534 : vector<16x128xf32>
    %536 = vector.broadcast %530 : vector<1x128xf32> to vector<16x128xf32>
    %537 = arith.mulf %534, %536 : vector<16x128xf32>
    %538 = arith.addf %529, %537 : vector<16x128xf32>
    %539 = vector.extract_strided_slice %482 {offsets = [6, 0], sizes = [1, 128], strides = [1, 1]} : vector<16x128xf32> to vector<1x128xf32>
    %540 = vector.broadcast %539 : vector<1x128xf32> to vector<16x128xf32>
    %541 = arith.cmpf oge, %540, %482 : vector<16x128xf32>
    %542 = arith.extui %541 : vector<16x128xi1> to vector<16x128xi32>
    %543 = arith.sitofp %542 : vector<16x128xi32> to vector<16x128xf32>
    %544 = arith.addf %535, %543 : vector<16x128xf32>
    %545 = vector.broadcast %539 : vector<1x128xf32> to vector<16x128xf32>
    %546 = arith.mulf %543, %545 : vector<16x128xf32>
    %547 = arith.addf %538, %546 : vector<16x128xf32>
    %548 = vector.extract_strided_slice %482 {offsets = [7, 0], sizes = [1, 128], strides = [1, 1]} : vector<16x128xf32> to vector<1x128xf32>
    %549 = vector.broadcast %548 : vector<1x128xf32> to vector<16x128xf32>
    %550 = arith.cmpf oge, %549, %482 : vector<16x128xf32>
    %551 = arith.extui %550 : vector<16x128xi1> to vector<16x128xi32>
    %552 = arith.sitofp %551 : vector<16x128xi32> to vector<16x128xf32>
    %553 = arith.addf %544, %552 : vector<16x128xf32>
    %554 = vector.broadcast %548 : vector<1x128xf32> to vector<16x128xf32>
    %555 = arith.mulf %552, %554 : vector<16x128xf32>
    %556 = arith.addf %547, %555 : vector<16x128xf32>
    %557 = vector.extract_strided_slice %482 {offsets = [8, 0], sizes = [1, 128], strides = [1, 1]} : vector<16x128xf32> to vector<1x128xf32>
    %558 = vector.broadcast %557 : vector<1x128xf32> to vector<16x128xf32>
    %559 = arith.cmpf oge, %558, %482 : vector<16x128xf32>
    %560 = arith.extui %559 : vector<16x128xi1> to vector<16x128xi32>
    %561 = arith.sitofp %560 : vector<16x128xi32> to vector<16x128xf32>
    %562 = arith.addf %553, %561 : vector<16x128xf32>
    %563 = vector.broadcast %557 : vector<1x128xf32> to vector<16x128xf32>
    %564 = arith.mulf %561, %563 : vector<16x128xf32>
    %565 = arith.addf %556, %564 : vector<16x128xf32>
    %566 = vector.extract_strided_slice %482 {offsets = [9, 0], sizes = [1, 128], strides = [1, 1]} : vector<16x128xf32> to vector<1x128xf32>
    %567 = vector.broadcast %566 : vector<1x128xf32> to vector<16x128xf32>
    %568 = arith.cmpf oge, %567, %482 : vector<16x128xf32>
    %569 = arith.extui %568 : vector<16x128xi1> to vector<16x128xi32>
    %570 = arith.sitofp %569 : vector<16x128xi32> to vector<16x128xf32>
    %571 = arith.addf %562, %570 : vector<16x128xf32>
    %572 = vector.broadcast %566 : vector<1x128xf32> to vector<16x128xf32>
    %573 = arith.mulf %570, %572 : vector<16x128xf32>
    %574 = arith.addf %565, %573 : vector<16x128xf32>
    %575 = vector.extract_strided_slice %482 {offsets = [10, 0], sizes = [1, 128], strides = [1, 1]} : vector<16x128xf32> to vector<1x128xf32>
    %576 = vector.broadcast %575 : vector<1x128xf32> to vector<16x128xf32>
    %577 = arith.cmpf oge, %576, %482 : vector<16x128xf32>
    %578 = arith.extui %577 : vector<16x128xi1> to vector<16x128xi32>
    %579 = arith.sitofp %578 : vector<16x128xi32> to vector<16x128xf32>
    %580 = arith.addf %571, %579 : vector<16x128xf32>
    %581 = vector.broadcast %575 : vector<1x128xf32> to vector<16x128xf32>
    %582 = arith.mulf %579, %581 : vector<16x128xf32>
    %583 = arith.addf %574, %582 : vector<16x128xf32>
    %584 = vector.extract_strided_slice %482 {offsets = [11, 0], sizes = [1, 128], strides = [1, 1]} : vector<16x128xf32> to vector<1x128xf32>
    %585 = vector.broadcast %584 : vector<1x128xf32> to vector<16x128xf32>
    %586 = arith.cmpf oge, %585, %482 : vector<16x128xf32>
    %587 = arith.extui %586 : vector<16x128xi1> to vector<16x128xi32>
    %588 = arith.sitofp %587 : vector<16x128xi32> to vector<16x128xf32>
    %589 = arith.addf %580, %588 : vector<16x128xf32>
    %590 = vector.broadcast %584 : vector<1x128xf32> to vector<16x128xf32>
    %591 = arith.mulf %588, %590 : vector<16x128xf32>
    %592 = arith.addf %583, %591 : vector<16x128xf32>
    %593 = vector.extract_strided_slice %482 {offsets = [12, 0], sizes = [1, 128], strides = [1, 1]} : vector<16x128xf32> to vector<1x128xf32>
    %594 = vector.broadcast %593 : vector<1x128xf32> to vector<16x128xf32>
    %595 = arith.cmpf oge, %594, %482 : vector<16x128xf32>
    %596 = arith.extui %595 : vector<16x128xi1> to vector<16x128xi32>
    %597 = arith.sitofp %596 : vector<16x128xi32> to vector<16x128xf32>
    %598 = arith.addf %589, %597 : vector<16x128xf32>
    %599 = vector.broadcast %593 : vector<1x128xf32> to vector<16x128xf32>
    %600 = arith.mulf %597, %599 : vector<16x128xf32>
    %601 = arith.addf %592, %600 : vector<16x128xf32>
    %602 = vector.extract_strided_slice %482 {offsets = [13, 0], sizes = [1, 128], strides = [1, 1]} : vector<16x128xf32> to vector<1x128xf32>
    %603 = vector.broadcast %602 : vector<1x128xf32> to vector<16x128xf32>
    %604 = arith.cmpf oge, %603, %482 : vector<16x128xf32>
    %605 = arith.extui %604 : vector<16x128xi1> to vector<16x128xi32>
    %606 = arith.sitofp %605 : vector<16x128xi32> to vector<16x128xf32>
    %607 = arith.addf %598, %606 : vector<16x128xf32>
    %608 = vector.broadcast %602 : vector<1x128xf32> to vector<16x128xf32>
    %609 = arith.mulf %606, %608 : vector<16x128xf32>
    %610 = arith.addf %601, %609 : vector<16x128xf32>
    %611 = vector.extract_strided_slice %482 {offsets = [14, 0], sizes = [1, 128], strides = [1, 1]} : vector<16x128xf32> to vector<1x128xf32>
    %612 = vector.broadcast %611 : vector<1x128xf32> to vector<16x128xf32>
    %613 = arith.cmpf oge, %612, %482 : vector<16x128xf32>
    %614 = arith.extui %613 : vector<16x128xi1> to vector<16x128xi32>
    %615 = arith.sitofp %614 : vector<16x128xi32> to vector<16x128xf32>
    %616 = arith.addf %607, %615 : vector<16x128xf32>
    %617 = vector.broadcast %611 : vector<1x128xf32> to vector<16x128xf32>
    %618 = arith.mulf %615, %617 : vector<16x128xf32>
    %619 = arith.addf %610, %618 : vector<16x128xf32>
    %620 = vector.extract_strided_slice %482 {offsets = [15, 0], sizes = [1, 128], strides = [1, 1]} : vector<16x128xf32> to vector<1x128xf32>
    %621 = vector.broadcast %620 : vector<1x128xf32> to vector<16x128xf32>
    %622 = arith.cmpf oge, %621, %482 : vector<16x128xf32>
    %623 = arith.extui %622 : vector<16x128xi1> to vector<16x128xi32>
    %624 = arith.sitofp %623 : vector<16x128xi32> to vector<16x128xf32>
    %625 = arith.addf %616, %624 : vector<16x128xf32>
    %626 = vector.broadcast %620 : vector<1x128xf32> to vector<16x128xf32>
    %627 = arith.mulf %624, %626 : vector<16x128xf32>
    %628 = arith.addf %619, %627 : vector<16x128xf32>
    %629 = arith.mulf %625, %482 : vector<16x128xf32>
    %cst_118 = arith.constant 1.000000e+00 : f32
    %630 = vector.broadcast %cst_118 : f32 to vector<16x128xf32>
    %631 = arith.addf %630, %629 : vector<16x128xf32>
    %632 = arith.cmpf ogt, %631, %628 : vector<16x128xf32>
    %633 = arith.extui %632 : vector<16x128xi1> to vector<16x128xi32>
    %634 = arith.sitofp %633 : vector<16x128xi32> to vector<16x128xf32>
    %cst_119 = arith.constant dense<0.000000e+00> : vector<128xf32>
    %635 = vector.multi_reduction <add>, %634, %cst_119 [0] : vector<16x128xf32> to vector<128xf32>
    %636 = vector.shape_cast %635 : vector<128xf32> to vector<1x128xf32>
    %637 = arith.mulf %634, %482 : vector<16x128xf32>
    %cst_120 = arith.constant dense<0.000000e+00> : vector<128xf32>
    %638 = vector.multi_reduction <add>, %637, %cst_120 [0] : vector<16x128xf32> to vector<128xf32>
    %639 = vector.shape_cast %638 : vector<128xf32> to vector<1x128xf32>
    %cst_121 = arith.constant 1.000000e+00 : f32
    %640 = vector.broadcast %cst_121 : f32 to vector<1x128xf32>
    %641 = arith.subf %639, %640 : vector<1x128xf32>
    %642 = arith.divf %641, %636 : vector<1x128xf32>
    %643 = vector.broadcast %642 : vector<1x128xf32> to vector<16x128xf32>
    %644 = arith.subf %482, %643 : vector<16x128xf32>
    %cst_122 = arith.constant 0.000000e+00 : f32
    %645 = vector.broadcast %cst_122 : f32 to vector<16x128xf32>
    %646 = arith.maximumf %644, %645 : vector<16x128xf32>
    %cst_123 = arith.constant 1.000000e-15 : f32
    %647 = vector.broadcast %cst_123 : f32 to vector<16x128xf32>
    %648 = arith.addf %646, %647 : vector<16x128xf32>
    %649 = math.log %648 : vector<16x128xf32>
    %650 = arith.mulf %646, %649 : vector<16x128xf32>
    %cst_124 = arith.constant dense<0.000000e+00> : vector<128xf32>
    %651 = vector.multi_reduction <add>, %650, %cst_124 [0] : vector<16x128xf32> to vector<128xf32>
    %652 = vector.shape_cast %651 : vector<128xf32> to vector<1x128xf32>
    %653 = arith.addf %327, %652 : vector<1x128xf32>
    %cst_125 = arith.constant 1.300000e+00 : f32
    %654 = vector.broadcast %cst_125 : f32 to vector<16x128xf32>
    %655 = arith.subf %654, %646 : vector<16x128xf32>
    %656 = arith.mulf %655, %330 : vector<16x128xf32>
    %657 = arith.mulf %646, %6 : vector<16x128xf32>
    %c0_126 = arith.constant 0 : index
    %c0_127 = arith.constant 0 : index
    %658 = vector.load %arg3[%c0_126, %c0_127] : memref<32x16xf32, #tpu.memory_space<vmem>>, vector<32x16xf32>
    %cst_128 = arith.constant dense<0.000000e+00> : vector<32x128xf32>
    %659 = tpu.matmul %658, %657, %cst_128 {dimension_numbers = #tpu.dot_dimension_numbers<[1], [0], [0], [1], [0, 0, 1, 1], [], []>} : vector<32x16xf32>, vector<16x128xf32>, vector<32x128xf32> -> vector<32x128xf32>
    %cst_129 = arith.constant dense<0.000000e+00> : vector<32xf32>
    %660 = vector.multi_reduction <add>, %659, %cst_129 [1] : vector<32x128xf32> to vector<32xf32>
    %661 = vector.shape_cast %660 : vector<32xf32> to vector<32x1xf32>
    %662 = arith.mulf %659, %659 : vector<32x128xf32>
    %cst_130 = arith.constant dense<0.000000e+00> : vector<32xf32>
    %663 = vector.multi_reduction <add>, %662, %cst_130 [1] : vector<32x128xf32> to vector<32xf32>
    %664 = vector.shape_cast %663 : vector<32xf32> to vector<32x1xf32>
    %cst_131 = arith.constant 7.812500e-03 : f32
    %665 = vector.broadcast %cst_131 : f32 to vector<32x1xf32>
    %666 = arith.mulf %661, %665 : vector<32x1xf32>
    %cst_132 = arith.constant 7.812500e-03 : f32
    %667 = vector.broadcast %cst_132 : f32 to vector<32x1xf32>
    %668 = arith.mulf %664, %667 : vector<32x1xf32>
    %669 = arith.mulf %666, %666 : vector<32x1xf32>
    %670 = arith.subf %668, %669 : vector<32x1xf32>
    %671 = vector.broadcast %666 : vector<32x1xf32> to vector<32x128xf32>
    %672 = arith.subf %659, %671 : vector<32x128xf32>
    %cst_133 = arith.constant 9.99999974E-6 : f32
    %673 = vector.broadcast %cst_133 : f32 to vector<32x1xf32>
    %674 = arith.addf %670, %673 : vector<32x1xf32>
    %675 = math.rsqrt %674 : vector<32x1xf32>
    %676 = vector.broadcast %675 : vector<32x1xf32> to vector<32x128xf32>
    %677 = arith.mulf %672, %676 : vector<32x128xf32>
    %678 = vector.extract_strided_slice %677 {offsets = [0, 0], sizes = [16, 128], strides = [1, 1]} : vector<32x128xf32> to vector<16x128xf32>
    %679 = vector.extract_strided_slice %677 {offsets = [16, 0], sizes = [16, 128], strides = [1, 1]} : vector<32x128xf32> to vector<16x128xf32>
    %680 = arith.negf %679 : vector<16x128xf32>
    %681 = math.exp %680 : vector<16x128xf32>
    %cst_134 = arith.constant 1.000000e+00 : f32
    %682 = vector.broadcast %cst_134 : f32 to vector<16x128xf32>
    %683 = arith.addf %682, %681 : vector<16x128xf32>
    %684 = arith.divf %682, %683 : vector<16x128xf32>
    %685 = arith.mulf %678, %684 : vector<16x128xf32>
    %c0_135 = arith.constant 0 : index
    %c0_136 = arith.constant 0 : index
    %c0_137 = arith.constant 0 : index
    %686 = vector.load %arg4[%c0_135, %c0_136, %c0_137] : memref<9x32x16xf32, #tpu.memory_space<vmem>>, vector<1x32x16xf32>
    %687 = vector.shape_cast %686 : vector<1x32x16xf32> to vector<32x16xf32>
    %cst_138 = arith.constant dense<0.000000e+00> : vector<32x128xf32>
    %688 = tpu.matmul %687, %685, %cst_138 {dimension_numbers = #tpu.dot_dimension_numbers<[1], [0], [0], [1], [0, 0, 1, 1], [], []>} : vector<32x16xf32>, vector<16x128xf32>, vector<32x128xf32> -> vector<32x128xf32>
    %cst_139 = arith.constant dense<0.000000e+00> : vector<32xf32>
    %689 = vector.multi_reduction <add>, %688, %cst_139 [1] : vector<32x128xf32> to vector<32xf32>
    %690 = vector.shape_cast %689 : vector<32xf32> to vector<32x1xf32>
    %691 = arith.mulf %688, %688 : vector<32x128xf32>
    %cst_140 = arith.constant dense<0.000000e+00> : vector<32xf32>
    %692 = vector.multi_reduction <add>, %691, %cst_140 [1] : vector<32x128xf32> to vector<32xf32>
    %693 = vector.shape_cast %692 : vector<32xf32> to vector<32x1xf32>
    %cst_141 = arith.constant 7.812500e-03 : f32
    %694 = vector.broadcast %cst_141 : f32 to vector<32x1xf32>
    %695 = arith.mulf %690, %694 : vector<32x1xf32>
    %cst_142 = arith.constant 7.812500e-03 : f32
    %696 = vector.broadcast %cst_142 : f32 to vector<32x1xf32>
    %697 = arith.mulf %693, %696 : vector<32x1xf32>
    %698 = arith.mulf %695, %695 : vector<32x1xf32>
    %699 = arith.subf %697, %698 : vector<32x1xf32>
    %700 = vector.broadcast %695 : vector<32x1xf32> to vector<32x128xf32>
    %701 = arith.subf %688, %700 : vector<32x128xf32>
    %cst_143 = arith.constant 9.99999974E-6 : f32
    %702 = vector.broadcast %cst_143 : f32 to vector<32x1xf32>
    %703 = arith.addf %699, %702 : vector<32x1xf32>
    %704 = math.rsqrt %703 : vector<32x1xf32>
    %705 = vector.broadcast %704 : vector<32x1xf32> to vector<32x128xf32>
    %706 = arith.mulf %701, %705 : vector<32x128xf32>
    %707 = vector.extract_strided_slice %706 {offsets = [0, 0], sizes = [16, 128], strides = [1, 1]} : vector<32x128xf32> to vector<16x128xf32>
    %708 = vector.extract_strided_slice %706 {offsets = [16, 0], sizes = [16, 128], strides = [1, 1]} : vector<32x128xf32> to vector<16x128xf32>
    %709 = arith.negf %708 : vector<16x128xf32>
    %710 = math.exp %709 : vector<16x128xf32>
    %cst_144 = arith.constant 1.000000e+00 : f32
    %711 = vector.broadcast %cst_144 : f32 to vector<16x128xf32>
    %712 = arith.addf %711, %710 : vector<16x128xf32>
    %713 = arith.divf %711, %712 : vector<16x128xf32>
    %714 = arith.mulf %707, %713 : vector<16x128xf32>
    %715 = arith.addf %685, %714 : vector<16x128xf32>
    %cst_145 = arith.constant 0.707106769 : f32
    %716 = vector.broadcast %cst_145 : f32 to vector<16x128xf32>
    %717 = arith.mulf %715, %716 : vector<16x128xf32>
    %c5 = arith.constant 5 : index
    %c0_146 = arith.constant 0 : index
    %c0_147 = arith.constant 0 : index
    %718 = vector.load %arg4[%c5, %c0_146, %c0_147] : memref<9x32x16xf32, #tpu.memory_space<vmem>>, vector<1x32x16xf32>
    %719 = vector.shape_cast %718 : vector<1x32x16xf32> to vector<32x16xf32>
    %cst_148 = arith.constant dense<0.000000e+00> : vector<32x128xf32>
    %720 = tpu.matmul %719, %717, %cst_148 {dimension_numbers = #tpu.dot_dimension_numbers<[1], [0], [0], [1], [0, 0, 1, 1], [], []>} : vector<32x16xf32>, vector<16x128xf32>, vector<32x128xf32> -> vector<32x128xf32>
    %cst_149 = arith.constant dense<0.000000e+00> : vector<32xf32>
    %721 = vector.multi_reduction <add>, %720, %cst_149 [1] : vector<32x128xf32> to vector<32xf32>
    %722 = vector.shape_cast %721 : vector<32xf32> to vector<32x1xf32>
    %723 = arith.mulf %720, %720 : vector<32x128xf32>
    %cst_150 = arith.constant dense<0.000000e+00> : vector<32xf32>
    %724 = vector.multi_reduction <add>, %723, %cst_150 [1] : vector<32x128xf32> to vector<32xf32>
    %725 = vector.shape_cast %724 : vector<32xf32> to vector<32x1xf32>
    %cst_151 = arith.constant 7.812500e-03 : f32
    %726 = vector.broadcast %cst_151 : f32 to vector<32x1xf32>
    %727 = arith.mulf %722, %726 : vector<32x1xf32>
    %cst_152 = arith.constant 7.812500e-03 : f32
    %728 = vector.broadcast %cst_152 : f32 to vector<32x1xf32>
    %729 = arith.mulf %725, %728 : vector<32x1xf32>
    %730 = arith.mulf %727, %727 : vector<32x1xf32>
    %731 = arith.subf %729, %730 : vector<32x1xf32>
    %732 = vector.broadcast %727 : vector<32x1xf32> to vector<32x128xf32>
    %733 = arith.subf %720, %732 : vector<32x128xf32>
    %cst_153 = arith.constant 9.99999974E-6 : f32
    %734 = vector.broadcast %cst_153 : f32 to vector<32x1xf32>
    %735 = arith.addf %731, %734 : vector<32x1xf32>
    %736 = math.rsqrt %735 : vector<32x1xf32>
    %737 = vector.broadcast %736 : vector<32x1xf32> to vector<32x128xf32>
    %738 = arith.mulf %733, %737 : vector<32x128xf32>
    %739 = vector.extract_strided_slice %738 {offsets = [0, 0], sizes = [16, 128], strides = [1, 1]} : vector<32x128xf32> to vector<16x128xf32>
    %740 = vector.extract_strided_slice %738 {offsets = [16, 0], sizes = [16, 128], strides = [1, 1]} : vector<32x128xf32> to vector<16x128xf32>
    %741 = arith.negf %740 : vector<16x128xf32>
    %742 = math.exp %741 : vector<16x128xf32>
    %cst_154 = arith.constant 1.000000e+00 : f32
    %743 = vector.broadcast %cst_154 : f32 to vector<16x128xf32>
    %744 = arith.addf %743, %742 : vector<16x128xf32>
    %745 = arith.divf %743, %744 : vector<16x128xf32>
    %746 = arith.mulf %739, %745 : vector<16x128xf32>
    %747 = arith.addf %717, %746 : vector<16x128xf32>
    %cst_155 = arith.constant 0.707106769 : f32
    %748 = vector.broadcast %cst_155 : f32 to vector<16x128xf32>
    %749 = arith.mulf %747, %748 : vector<16x128xf32>
    %c6 = arith.constant 6 : index
    %c0_156 = arith.constant 0 : index
    %c0_157 = arith.constant 0 : index
    %750 = vector.load %arg4[%c6, %c0_156, %c0_157] : memref<9x32x16xf32, #tpu.memory_space<vmem>>, vector<1x32x16xf32>
    %751 = vector.shape_cast %750 : vector<1x32x16xf32> to vector<32x16xf32>
    %cst_158 = arith.constant dense<0.000000e+00> : vector<32x128xf32>
    %752 = tpu.matmul %751, %749, %cst_158 {dimension_numbers = #tpu.dot_dimension_numbers<[1], [0], [0], [1], [0, 0, 1, 1], [], []>} : vector<32x16xf32>, vector<16x128xf32>, vector<32x128xf32> -> vector<32x128xf32>
    %cst_159 = arith.constant dense<0.000000e+00> : vector<32xf32>
    %753 = vector.multi_reduction <add>, %752, %cst_159 [1] : vector<32x128xf32> to vector<32xf32>
    %754 = vector.shape_cast %753 : vector<32xf32> to vector<32x1xf32>
    %755 = arith.mulf %752, %752 : vector<32x128xf32>
    %cst_160 = arith.constant dense<0.000000e+00> : vector<32xf32>
    %756 = vector.multi_reduction <add>, %755, %cst_160 [1] : vector<32x128xf32> to vector<32xf32>
    %757 = vector.shape_cast %756 : vector<32xf32> to vector<32x1xf32>
    %cst_161 = arith.constant 7.812500e-03 : f32
    %758 = vector.broadcast %cst_161 : f32 to vector<32x1xf32>
    %759 = arith.mulf %754, %758 : vector<32x1xf32>
    %cst_162 = arith.constant 7.812500e-03 : f32
    %760 = vector.broadcast %cst_162 : f32 to vector<32x1xf32>
    %761 = arith.mulf %757, %760 : vector<32x1xf32>
    %762 = arith.mulf %759, %759 : vector<32x1xf32>
    %763 = arith.subf %761, %762 : vector<32x1xf32>
    %764 = vector.broadcast %759 : vector<32x1xf32> to vector<32x128xf32>
    %765 = arith.subf %752, %764 : vector<32x128xf32>
    %cst_163 = arith.constant 9.99999974E-6 : f32
    %766 = vector.broadcast %cst_163 : f32 to vector<32x1xf32>
    %767 = arith.addf %763, %766 : vector<32x1xf32>
    %768 = math.rsqrt %767 : vector<32x1xf32>
    %769 = vector.broadcast %768 : vector<32x1xf32> to vector<32x128xf32>
    %770 = arith.mulf %765, %769 : vector<32x128xf32>
    %771 = vector.extract_strided_slice %770 {offsets = [0, 0], sizes = [16, 128], strides = [1, 1]} : vector<32x128xf32> to vector<16x128xf32>
    %772 = vector.extract_strided_slice %770 {offsets = [16, 0], sizes = [16, 128], strides = [1, 1]} : vector<32x128xf32> to vector<16x128xf32>
    %773 = arith.negf %772 : vector<16x128xf32>
    %774 = math.exp %773 : vector<16x128xf32>
    %cst_164 = arith.constant 1.000000e+00 : f32
    %775 = vector.broadcast %cst_164 : f32 to vector<16x128xf32>
    %776 = arith.addf %775, %774 : vector<16x128xf32>
    %777 = arith.divf %775, %776 : vector<16x128xf32>
    %778 = arith.mulf %771, %777 : vector<16x128xf32>
    %779 = arith.addf %749, %778 : vector<16x128xf32>
    %cst_165 = arith.constant 0.707106769 : f32
    %780 = vector.broadcast %cst_165 : f32 to vector<16x128xf32>
    %781 = arith.mulf %779, %780 : vector<16x128xf32>
    %782 = vector.extract_strided_slice %781 {offsets = [0, 0], sizes = [8, 128], strides = [1, 1]} : vector<16x128xf32> to vector<8x128xf32>
    %cst_166 = arith.constant 0.000000e+00 : f32
    %783 = vector.broadcast %cst_166 : f32 to vector<8x128xf32>
    %784 = arith.maximumf %782, %783 : vector<8x128xf32>
    %785 = arith.addf %459, %784 : vector<8x128xf32>
    %786 = vector.extract_strided_slice %781 {offsets = [8, 0], sizes = [8, 128], strides = [1, 1]} : vector<16x128xf32> to vector<8x128xf32>
    %c2_167 = arith.constant 2 : index
    %c0_168 = arith.constant 0 : index
    %c0_169 = arith.constant 0 : index
    %787 = vector.load %arg5[%c2_167, %c0_168, %c0_169] : memref<3x16x8xf32, #tpu.memory_space<vmem>>, vector<1x16x8xf32>
    %788 = vector.shape_cast %787 : vector<1x16x8xf32> to vector<16x8xf32>
    %cst_170 = arith.constant dense<0.000000e+00> : vector<16x128xf32>
    %789 = tpu.matmul %788, %786, %cst_170 {dimension_numbers = #tpu.dot_dimension_numbers<[1], [0], [0], [1], [0, 0, 1, 1], [], []>} : vector<16x8xf32>, vector<8x128xf32>, vector<16x128xf32> -> vector<16x128xf32>
    %cst_171 = arith.constant dense<0.000000e+00> : vector<16xf32>
    %790 = vector.multi_reduction <add>, %789, %cst_171 [1] : vector<16x128xf32> to vector<16xf32>
    %791 = vector.shape_cast %790 : vector<16xf32> to vector<16x1xf32>
    %792 = arith.mulf %789, %789 : vector<16x128xf32>
    %cst_172 = arith.constant dense<0.000000e+00> : vector<16xf32>
    %793 = vector.multi_reduction <add>, %792, %cst_172 [1] : vector<16x128xf32> to vector<16xf32>
    %794 = vector.shape_cast %793 : vector<16xf32> to vector<16x1xf32>
    %cst_173 = arith.constant 7.812500e-03 : f32
    %795 = vector.broadcast %cst_173 : f32 to vector<16x1xf32>
    %796 = arith.mulf %791, %795 : vector<16x1xf32>
    %cst_174 = arith.constant 7.812500e-03 : f32
    %797 = vector.broadcast %cst_174 : f32 to vector<16x1xf32>
    %798 = arith.mulf %794, %797 : vector<16x1xf32>
    %799 = arith.mulf %796, %796 : vector<16x1xf32>
    %800 = arith.subf %798, %799 : vector<16x1xf32>
    %801 = vector.broadcast %796 : vector<16x1xf32> to vector<16x128xf32>
    %802 = arith.subf %789, %801 : vector<16x128xf32>
    %cst_175 = arith.constant 9.99999974E-6 : f32
    %803 = vector.broadcast %cst_175 : f32 to vector<16x1xf32>
    %804 = arith.addf %800, %803 : vector<16x1xf32>
    %805 = math.rsqrt %804 : vector<16x1xf32>
    %806 = vector.broadcast %805 : vector<16x1xf32> to vector<16x128xf32>
    %807 = arith.mulf %802, %806 : vector<16x128xf32>
    %808 = arith.mulf %807, %656 : vector<16x128xf32>
    %cst_176 = arith.constant 0.000000e+00 : f32
    %809 = vector.broadcast %cst_176 : f32 to vector<16x128xf32>
    %cst_177 = arith.constant 0.000000e+00 : f32
    %810 = vector.broadcast %cst_177 : f32 to vector<16x128xf32>
    %811 = vector.extract_strided_slice %808 {offsets = [0, 0], sizes = [1, 128], strides = [1, 1]} : vector<16x128xf32> to vector<1x128xf32>
    %812 = vector.broadcast %811 : vector<1x128xf32> to vector<16x128xf32>
    %813 = arith.cmpf oge, %812, %808 : vector<16x128xf32>
    %814 = arith.extui %813 : vector<16x128xi1> to vector<16x128xi32>
    %815 = arith.sitofp %814 : vector<16x128xi32> to vector<16x128xf32>
    %816 = arith.addf %809, %815 : vector<16x128xf32>
    %817 = vector.broadcast %811 : vector<1x128xf32> to vector<16x128xf32>
    %818 = arith.mulf %815, %817 : vector<16x128xf32>
    %819 = arith.addf %810, %818 : vector<16x128xf32>
    %820 = vector.extract_strided_slice %808 {offsets = [1, 0], sizes = [1, 128], strides = [1, 1]} : vector<16x128xf32> to vector<1x128xf32>
    %821 = vector.broadcast %820 : vector<1x128xf32> to vector<16x128xf32>
    %822 = arith.cmpf oge, %821, %808 : vector<16x128xf32>
    %823 = arith.extui %822 : vector<16x128xi1> to vector<16x128xi32>
    %824 = arith.sitofp %823 : vector<16x128xi32> to vector<16x128xf32>
    %825 = arith.addf %816, %824 : vector<16x128xf32>
    %826 = vector.broadcast %820 : vector<1x128xf32> to vector<16x128xf32>
    %827 = arith.mulf %824, %826 : vector<16x128xf32>
    %828 = arith.addf %819, %827 : vector<16x128xf32>
    %829 = vector.extract_strided_slice %808 {offsets = [2, 0], sizes = [1, 128], strides = [1, 1]} : vector<16x128xf32> to vector<1x128xf32>
    %830 = vector.broadcast %829 : vector<1x128xf32> to vector<16x128xf32>
    %831 = arith.cmpf oge, %830, %808 : vector<16x128xf32>
    %832 = arith.extui %831 : vector<16x128xi1> to vector<16x128xi32>
    %833 = arith.sitofp %832 : vector<16x128xi32> to vector<16x128xf32>
    %834 = arith.addf %825, %833 : vector<16x128xf32>
    %835 = vector.broadcast %829 : vector<1x128xf32> to vector<16x128xf32>
    %836 = arith.mulf %833, %835 : vector<16x128xf32>
    %837 = arith.addf %828, %836 : vector<16x128xf32>
    %838 = vector.extract_strided_slice %808 {offsets = [3, 0], sizes = [1, 128], strides = [1, 1]} : vector<16x128xf32> to vector<1x128xf32>
    %839 = vector.broadcast %838 : vector<1x128xf32> to vector<16x128xf32>
    %840 = arith.cmpf oge, %839, %808 : vector<16x128xf32>
    %841 = arith.extui %840 : vector<16x128xi1> to vector<16x128xi32>
    %842 = arith.sitofp %841 : vector<16x128xi32> to vector<16x128xf32>
    %843 = arith.addf %834, %842 : vector<16x128xf32>
    %844 = vector.broadcast %838 : vector<1x128xf32> to vector<16x128xf32>
    %845 = arith.mulf %842, %844 : vector<16x128xf32>
    %846 = arith.addf %837, %845 : vector<16x128xf32>
    %847 = vector.extract_strided_slice %808 {offsets = [4, 0], sizes = [1, 128], strides = [1, 1]} : vector<16x128xf32> to vector<1x128xf32>
    %848 = vector.broadcast %847 : vector<1x128xf32> to vector<16x128xf32>
    %849 = arith.cmpf oge, %848, %808 : vector<16x128xf32>
    %850 = arith.extui %849 : vector<16x128xi1> to vector<16x128xi32>
    %851 = arith.sitofp %850 : vector<16x128xi32> to vector<16x128xf32>
    %852 = arith.addf %843, %851 : vector<16x128xf32>
    %853 = vector.broadcast %847 : vector<1x128xf32> to vector<16x128xf32>
    %854 = arith.mulf %851, %853 : vector<16x128xf32>
    %855 = arith.addf %846, %854 : vector<16x128xf32>
    %856 = vector.extract_strided_slice %808 {offsets = [5, 0], sizes = [1, 128], strides = [1, 1]} : vector<16x128xf32> to vector<1x128xf32>
    %857 = vector.broadcast %856 : vector<1x128xf32> to vector<16x128xf32>
    %858 = arith.cmpf oge, %857, %808 : vector<16x128xf32>
    %859 = arith.extui %858 : vector<16x128xi1> to vector<16x128xi32>
    %860 = arith.sitofp %859 : vector<16x128xi32> to vector<16x128xf32>
    %861 = arith.addf %852, %860 : vector<16x128xf32>
    %862 = vector.broadcast %856 : vector<1x128xf32> to vector<16x128xf32>
    %863 = arith.mulf %860, %862 : vector<16x128xf32>
    %864 = arith.addf %855, %863 : vector<16x128xf32>
    %865 = vector.extract_strided_slice %808 {offsets = [6, 0], sizes = [1, 128], strides = [1, 1]} : vector<16x128xf32> to vector<1x128xf32>
    %866 = vector.broadcast %865 : vector<1x128xf32> to vector<16x128xf32>
    %867 = arith.cmpf oge, %866, %808 : vector<16x128xf32>
    %868 = arith.extui %867 : vector<16x128xi1> to vector<16x128xi32>
    %869 = arith.sitofp %868 : vector<16x128xi32> to vector<16x128xf32>
    %870 = arith.addf %861, %869 : vector<16x128xf32>
    %871 = vector.broadcast %865 : vector<1x128xf32> to vector<16x128xf32>
    %872 = arith.mulf %869, %871 : vector<16x128xf32>
    %873 = arith.addf %864, %872 : vector<16x128xf32>
    %874 = vector.extract_strided_slice %808 {offsets = [7, 0], sizes = [1, 128], strides = [1, 1]} : vector<16x128xf32> to vector<1x128xf32>
    %875 = vector.broadcast %874 : vector<1x128xf32> to vector<16x128xf32>
    %876 = arith.cmpf oge, %875, %808 : vector<16x128xf32>
    %877 = arith.extui %876 : vector<16x128xi1> to vector<16x128xi32>
    %878 = arith.sitofp %877 : vector<16x128xi32> to vector<16x128xf32>
    %879 = arith.addf %870, %878 : vector<16x128xf32>
    %880 = vector.broadcast %874 : vector<1x128xf32> to vector<16x128xf32>
    %881 = arith.mulf %878, %880 : vector<16x128xf32>
    %882 = arith.addf %873, %881 : vector<16x128xf32>
    %883 = vector.extract_strided_slice %808 {offsets = [8, 0], sizes = [1, 128], strides = [1, 1]} : vector<16x128xf32> to vector<1x128xf32>
    %884 = vector.broadcast %883 : vector<1x128xf32> to vector<16x128xf32>
    %885 = arith.cmpf oge, %884, %808 : vector<16x128xf32>
    %886 = arith.extui %885 : vector<16x128xi1> to vector<16x128xi32>
    %887 = arith.sitofp %886 : vector<16x128xi32> to vector<16x128xf32>
    %888 = arith.addf %879, %887 : vector<16x128xf32>
    %889 = vector.broadcast %883 : vector<1x128xf32> to vector<16x128xf32>
    %890 = arith.mulf %887, %889 : vector<16x128xf32>
    %891 = arith.addf %882, %890 : vector<16x128xf32>
    %892 = vector.extract_strided_slice %808 {offsets = [9, 0], sizes = [1, 128], strides = [1, 1]} : vector<16x128xf32> to vector<1x128xf32>
    %893 = vector.broadcast %892 : vector<1x128xf32> to vector<16x128xf32>
    %894 = arith.cmpf oge, %893, %808 : vector<16x128xf32>
    %895 = arith.extui %894 : vector<16x128xi1> to vector<16x128xi32>
    %896 = arith.sitofp %895 : vector<16x128xi32> to vector<16x128xf32>
    %897 = arith.addf %888, %896 : vector<16x128xf32>
    %898 = vector.broadcast %892 : vector<1x128xf32> to vector<16x128xf32>
    %899 = arith.mulf %896, %898 : vector<16x128xf32>
    %900 = arith.addf %891, %899 : vector<16x128xf32>
    %901 = vector.extract_strided_slice %808 {offsets = [10, 0], sizes = [1, 128], strides = [1, 1]} : vector<16x128xf32> to vector<1x128xf32>
    %902 = vector.broadcast %901 : vector<1x128xf32> to vector<16x128xf32>
    %903 = arith.cmpf oge, %902, %808 : vector<16x128xf32>
    %904 = arith.extui %903 : vector<16x128xi1> to vector<16x128xi32>
    %905 = arith.sitofp %904 : vector<16x128xi32> to vector<16x128xf32>
    %906 = arith.addf %897, %905 : vector<16x128xf32>
    %907 = vector.broadcast %901 : vector<1x128xf32> to vector<16x128xf32>
    %908 = arith.mulf %905, %907 : vector<16x128xf32>
    %909 = arith.addf %900, %908 : vector<16x128xf32>
    %910 = vector.extract_strided_slice %808 {offsets = [11, 0], sizes = [1, 128], strides = [1, 1]} : vector<16x128xf32> to vector<1x128xf32>
    %911 = vector.broadcast %910 : vector<1x128xf32> to vector<16x128xf32>
    %912 = arith.cmpf oge, %911, %808 : vector<16x128xf32>
    %913 = arith.extui %912 : vector<16x128xi1> to vector<16x128xi32>
    %914 = arith.sitofp %913 : vector<16x128xi32> to vector<16x128xf32>
    %915 = arith.addf %906, %914 : vector<16x128xf32>
    %916 = vector.broadcast %910 : vector<1x128xf32> to vector<16x128xf32>
    %917 = arith.mulf %914, %916 : vector<16x128xf32>
    %918 = arith.addf %909, %917 : vector<16x128xf32>
    %919 = vector.extract_strided_slice %808 {offsets = [12, 0], sizes = [1, 128], strides = [1, 1]} : vector<16x128xf32> to vector<1x128xf32>
    %920 = vector.broadcast %919 : vector<1x128xf32> to vector<16x128xf32>
    %921 = arith.cmpf oge, %920, %808 : vector<16x128xf32>
    %922 = arith.extui %921 : vector<16x128xi1> to vector<16x128xi32>
    %923 = arith.sitofp %922 : vector<16x128xi32> to vector<16x128xf32>
    %924 = arith.addf %915, %923 : vector<16x128xf32>
    %925 = vector.broadcast %919 : vector<1x128xf32> to vector<16x128xf32>
    %926 = arith.mulf %923, %925 : vector<16x128xf32>
    %927 = arith.addf %918, %926 : vector<16x128xf32>
    %928 = vector.extract_strided_slice %808 {offsets = [13, 0], sizes = [1, 128], strides = [1, 1]} : vector<16x128xf32> to vector<1x128xf32>
    %929 = vector.broadcast %928 : vector<1x128xf32> to vector<16x128xf32>
    %930 = arith.cmpf oge, %929, %808 : vector<16x128xf32>
    %931 = arith.extui %930 : vector<16x128xi1> to vector<16x128xi32>
    %932 = arith.sitofp %931 : vector<16x128xi32> to vector<16x128xf32>
    %933 = arith.addf %924, %932 : vector<16x128xf32>
    %934 = vector.broadcast %928 : vector<1x128xf32> to vector<16x128xf32>
    %935 = arith.mulf %932, %934 : vector<16x128xf32>
    %936 = arith.addf %927, %935 : vector<16x128xf32>
    %937 = vector.extract_strided_slice %808 {offsets = [14, 0], sizes = [1, 128], strides = [1, 1]} : vector<16x128xf32> to vector<1x128xf32>
    %938 = vector.broadcast %937 : vector<1x128xf32> to vector<16x128xf32>
    %939 = arith.cmpf oge, %938, %808 : vector<16x128xf32>
    %940 = arith.extui %939 : vector<16x128xi1> to vector<16x128xi32>
    %941 = arith.sitofp %940 : vector<16x128xi32> to vector<16x128xf32>
    %942 = arith.addf %933, %941 : vector<16x128xf32>
    %943 = vector.broadcast %937 : vector<1x128xf32> to vector<16x128xf32>
    %944 = arith.mulf %941, %943 : vector<16x128xf32>
    %945 = arith.addf %936, %944 : vector<16x128xf32>
    %946 = vector.extract_strided_slice %808 {offsets = [15, 0], sizes = [1, 128], strides = [1, 1]} : vector<16x128xf32> to vector<1x128xf32>
    %947 = vector.broadcast %946 : vector<1x128xf32> to vector<16x128xf32>
    %948 = arith.cmpf oge, %947, %808 : vector<16x128xf32>
    %949 = arith.extui %948 : vector<16x128xi1> to vector<16x128xi32>
    %950 = arith.sitofp %949 : vector<16x128xi32> to vector<16x128xf32>
    %951 = arith.addf %942, %950 : vector<16x128xf32>
    %952 = vector.broadcast %946 : vector<1x128xf32> to vector<16x128xf32>
    %953 = arith.mulf %950, %952 : vector<16x128xf32>
    %954 = arith.addf %945, %953 : vector<16x128xf32>
    %955 = arith.mulf %951, %808 : vector<16x128xf32>
    %cst_178 = arith.constant 1.000000e+00 : f32
    %956 = vector.broadcast %cst_178 : f32 to vector<16x128xf32>
    %957 = arith.addf %956, %955 : vector<16x128xf32>
    %958 = arith.cmpf ogt, %957, %954 : vector<16x128xf32>
    %959 = arith.extui %958 : vector<16x128xi1> to vector<16x128xi32>
    %960 = arith.sitofp %959 : vector<16x128xi32> to vector<16x128xf32>
    %cst_179 = arith.constant dense<0.000000e+00> : vector<128xf32>
    %961 = vector.multi_reduction <add>, %960, %cst_179 [0] : vector<16x128xf32> to vector<128xf32>
    %962 = vector.shape_cast %961 : vector<128xf32> to vector<1x128xf32>
    %963 = arith.mulf %960, %808 : vector<16x128xf32>
    %cst_180 = arith.constant dense<0.000000e+00> : vector<128xf32>
    %964 = vector.multi_reduction <add>, %963, %cst_180 [0] : vector<16x128xf32> to vector<128xf32>
    %965 = vector.shape_cast %964 : vector<128xf32> to vector<1x128xf32>
    %cst_181 = arith.constant 1.000000e+00 : f32
    %966 = vector.broadcast %cst_181 : f32 to vector<1x128xf32>
    %967 = arith.subf %965, %966 : vector<1x128xf32>
    %968 = arith.divf %967, %962 : vector<1x128xf32>
    %969 = vector.broadcast %968 : vector<1x128xf32> to vector<16x128xf32>
    %970 = arith.subf %808, %969 : vector<16x128xf32>
    %cst_182 = arith.constant 0.000000e+00 : f32
    %971 = vector.broadcast %cst_182 : f32 to vector<16x128xf32>
    %972 = arith.maximumf %970, %971 : vector<16x128xf32>
    %cst_183 = arith.constant 1.000000e-15 : f32
    %973 = vector.broadcast %cst_183 : f32 to vector<16x128xf32>
    %974 = arith.addf %972, %973 : vector<16x128xf32>
    %975 = math.log %974 : vector<16x128xf32>
    %976 = arith.mulf %972, %975 : vector<16x128xf32>
    %cst_184 = arith.constant dense<0.000000e+00> : vector<128xf32>
    %977 = vector.multi_reduction <add>, %976, %cst_184 [0] : vector<16x128xf32> to vector<128xf32>
    %978 = vector.shape_cast %977 : vector<128xf32> to vector<1x128xf32>
    %979 = arith.addf %653, %978 : vector<1x128xf32>
    %980 = arith.mulf %972, %6 : vector<16x128xf32>
    %c0_185 = arith.constant 0 : index
    %c0_186 = arith.constant 0 : index
    %981 = vector.load %arg3[%c0_185, %c0_186] : memref<32x16xf32, #tpu.memory_space<vmem>>, vector<32x16xf32>
    %cst_187 = arith.constant dense<0.000000e+00> : vector<32x128xf32>
    %982 = tpu.matmul %981, %980, %cst_187 {dimension_numbers = #tpu.dot_dimension_numbers<[1], [0], [0], [1], [0, 0, 1, 1], [], []>} : vector<32x16xf32>, vector<16x128xf32>, vector<32x128xf32> -> vector<32x128xf32>
    %cst_188 = arith.constant dense<0.000000e+00> : vector<32xf32>
    %983 = vector.multi_reduction <add>, %982, %cst_188 [1] : vector<32x128xf32> to vector<32xf32>
    %984 = vector.shape_cast %983 : vector<32xf32> to vector<32x1xf32>
    %985 = arith.mulf %982, %982 : vector<32x128xf32>
    %cst_189 = arith.constant dense<0.000000e+00> : vector<32xf32>
    %986 = vector.multi_reduction <add>, %985, %cst_189 [1] : vector<32x128xf32> to vector<32xf32>
    %987 = vector.shape_cast %986 : vector<32xf32> to vector<32x1xf32>
    %cst_190 = arith.constant 7.812500e-03 : f32
    %988 = vector.broadcast %cst_190 : f32 to vector<32x1xf32>
    %989 = arith.mulf %984, %988 : vector<32x1xf32>
    %cst_191 = arith.constant 7.812500e-03 : f32
    %990 = vector.broadcast %cst_191 : f32 to vector<32x1xf32>
    %991 = arith.mulf %987, %990 : vector<32x1xf32>
    %992 = arith.mulf %989, %989 : vector<32x1xf32>
    %993 = arith.subf %991, %992 : vector<32x1xf32>
    %994 = vector.broadcast %989 : vector<32x1xf32> to vector<32x128xf32>
    %995 = arith.subf %982, %994 : vector<32x128xf32>
    %cst_192 = arith.constant 9.99999974E-6 : f32
    %996 = vector.broadcast %cst_192 : f32 to vector<32x1xf32>
    %997 = arith.addf %993, %996 : vector<32x1xf32>
    %998 = math.rsqrt %997 : vector<32x1xf32>
    %999 = vector.broadcast %998 : vector<32x1xf32> to vector<32x128xf32>
    %1000 = arith.mulf %995, %999 : vector<32x128xf32>
    %1001 = vector.extract_strided_slice %1000 {offsets = [0, 0], sizes = [16, 128], strides = [1, 1]} : vector<32x128xf32> to vector<16x128xf32>
    %1002 = vector.extract_strided_slice %1000 {offsets = [16, 0], sizes = [16, 128], strides = [1, 1]} : vector<32x128xf32> to vector<16x128xf32>
    %1003 = arith.negf %1002 : vector<16x128xf32>
    %1004 = math.exp %1003 : vector<16x128xf32>
    %cst_193 = arith.constant 1.000000e+00 : f32
    %1005 = vector.broadcast %cst_193 : f32 to vector<16x128xf32>
    %1006 = arith.addf %1005, %1004 : vector<16x128xf32>
    %1007 = arith.divf %1005, %1006 : vector<16x128xf32>
    %1008 = arith.mulf %1001, %1007 : vector<16x128xf32>
    %c0_194 = arith.constant 0 : index
    %c0_195 = arith.constant 0 : index
    %c0_196 = arith.constant 0 : index
    %1009 = vector.load %arg4[%c0_194, %c0_195, %c0_196] : memref<9x32x16xf32, #tpu.memory_space<vmem>>, vector<1x32x16xf32>
    %1010 = vector.shape_cast %1009 : vector<1x32x16xf32> to vector<32x16xf32>
    %cst_197 = arith.constant dense<0.000000e+00> : vector<32x128xf32>
    %1011 = tpu.matmul %1010, %1008, %cst_197 {dimension_numbers = #tpu.dot_dimension_numbers<[1], [0], [0], [1], [0, 0, 1, 1], [], []>} : vector<32x16xf32>, vector<16x128xf32>, vector<32x128xf32> -> vector<32x128xf32>
    %cst_198 = arith.constant dense<0.000000e+00> : vector<32xf32>
    %1012 = vector.multi_reduction <add>, %1011, %cst_198 [1] : vector<32x128xf32> to vector<32xf32>
    %1013 = vector.shape_cast %1012 : vector<32xf32> to vector<32x1xf32>
    %1014 = arith.mulf %1011, %1011 : vector<32x128xf32>
    %cst_199 = arith.constant dense<0.000000e+00> : vector<32xf32>
    %1015 = vector.multi_reduction <add>, %1014, %cst_199 [1] : vector<32x128xf32> to vector<32xf32>
    %1016 = vector.shape_cast %1015 : vector<32xf32> to vector<32x1xf32>
    %cst_200 = arith.constant 7.812500e-03 : f32
    %1017 = vector.broadcast %cst_200 : f32 to vector<32x1xf32>
    %1018 = arith.mulf %1013, %1017 : vector<32x1xf32>
    %cst_201 = arith.constant 7.812500e-03 : f32
    %1019 = vector.broadcast %cst_201 : f32 to vector<32x1xf32>
    %1020 = arith.mulf %1016, %1019 : vector<32x1xf32>
    %1021 = arith.mulf %1018, %1018 : vector<32x1xf32>
    %1022 = arith.subf %1020, %1021 : vector<32x1xf32>
    %1023 = vector.broadcast %1018 : vector<32x1xf32> to vector<32x128xf32>
    %1024 = arith.subf %1011, %1023 : vector<32x128xf32>
    %cst_202 = arith.constant 9.99999974E-6 : f32
    %1025 = vector.broadcast %cst_202 : f32 to vector<32x1xf32>
    %1026 = arith.addf %1022, %1025 : vector<32x1xf32>
    %1027 = math.rsqrt %1026 : vector<32x1xf32>
    %1028 = vector.broadcast %1027 : vector<32x1xf32> to vector<32x128xf32>
    %1029 = arith.mulf %1024, %1028 : vector<32x128xf32>
    %1030 = vector.extract_strided_slice %1029 {offsets = [0, 0], sizes = [16, 128], strides = [1, 1]} : vector<32x128xf32> to vector<16x128xf32>
    %1031 = vector.extract_strided_slice %1029 {offsets = [16, 0], sizes = [16, 128], strides = [1, 1]} : vector<32x128xf32> to vector<16x128xf32>
    %1032 = arith.negf %1031 : vector<16x128xf32>
    %1033 = math.exp %1032 : vector<16x128xf32>
    %cst_203 = arith.constant 1.000000e+00 : f32
    %1034 = vector.broadcast %cst_203 : f32 to vector<16x128xf32>
    %1035 = arith.addf %1034, %1033 : vector<16x128xf32>
    %1036 = arith.divf %1034, %1035 : vector<16x128xf32>
    %1037 = arith.mulf %1030, %1036 : vector<16x128xf32>
    %1038 = arith.addf %1008, %1037 : vector<16x128xf32>
    %cst_204 = arith.constant 0.707106769 : f32
    %1039 = vector.broadcast %cst_204 : f32 to vector<16x128xf32>
    %1040 = arith.mulf %1038, %1039 : vector<16x128xf32>
    %c7 = arith.constant 7 : index
    %c0_205 = arith.constant 0 : index
    %c0_206 = arith.constant 0 : index
    %1041 = vector.load %arg4[%c7, %c0_205, %c0_206] : memref<9x32x16xf32, #tpu.memory_space<vmem>>, vector<1x32x16xf32>
    %1042 = vector.shape_cast %1041 : vector<1x32x16xf32> to vector<32x16xf32>
    %cst_207 = arith.constant dense<0.000000e+00> : vector<32x128xf32>
    %1043 = tpu.matmul %1042, %1040, %cst_207 {dimension_numbers = #tpu.dot_dimension_numbers<[1], [0], [0], [1], [0, 0, 1, 1], [], []>} : vector<32x16xf32>, vector<16x128xf32>, vector<32x128xf32> -> vector<32x128xf32>
    %cst_208 = arith.constant dense<0.000000e+00> : vector<32xf32>
    %1044 = vector.multi_reduction <add>, %1043, %cst_208 [1] : vector<32x128xf32> to vector<32xf32>
    %1045 = vector.shape_cast %1044 : vector<32xf32> to vector<32x1xf32>
    %1046 = arith.mulf %1043, %1043 : vector<32x128xf32>
    %cst_209 = arith.constant dense<0.000000e+00> : vector<32xf32>
    %1047 = vector.multi_reduction <add>, %1046, %cst_209 [1] : vector<32x128xf32> to vector<32xf32>
    %1048 = vector.shape_cast %1047 : vector<32xf32> to vector<32x1xf32>
    %cst_210 = arith.constant 7.812500e-03 : f32
    %1049 = vector.broadcast %cst_210 : f32 to vector<32x1xf32>
    %1050 = arith.mulf %1045, %1049 : vector<32x1xf32>
    %cst_211 = arith.constant 7.812500e-03 : f32
    %1051 = vector.broadcast %cst_211 : f32 to vector<32x1xf32>
    %1052 = arith.mulf %1048, %1051 : vector<32x1xf32>
    %1053 = arith.mulf %1050, %1050 : vector<32x1xf32>
    %1054 = arith.subf %1052, %1053 : vector<32x1xf32>
    %1055 = vector.broadcast %1050 : vector<32x1xf32> to vector<32x128xf32>
    %1056 = arith.subf %1043, %1055 : vector<32x128xf32>
    %cst_212 = arith.constant 9.99999974E-6 : f32
    %1057 = vector.broadcast %cst_212 : f32 to vector<32x1xf32>
    %1058 = arith.addf %1054, %1057 : vector<32x1xf32>
    %1059 = math.rsqrt %1058 : vector<32x1xf32>
    %1060 = vector.broadcast %1059 : vector<32x1xf32> to vector<32x128xf32>
    %1061 = arith.mulf %1056, %1060 : vector<32x128xf32>
    %1062 = vector.extract_strided_slice %1061 {offsets = [0, 0], sizes = [16, 128], strides = [1, 1]} : vector<32x128xf32> to vector<16x128xf32>
    %1063 = vector.extract_strided_slice %1061 {offsets = [16, 0], sizes = [16, 128], strides = [1, 1]} : vector<32x128xf32> to vector<16x128xf32>
    %1064 = arith.negf %1063 : vector<16x128xf32>
    %1065 = math.exp %1064 : vector<16x128xf32>
    %cst_213 = arith.constant 1.000000e+00 : f32
    %1066 = vector.broadcast %cst_213 : f32 to vector<16x128xf32>
    %1067 = arith.addf %1066, %1065 : vector<16x128xf32>
    %1068 = arith.divf %1066, %1067 : vector<16x128xf32>
    %1069 = arith.mulf %1062, %1068 : vector<16x128xf32>
    %1070 = arith.addf %1040, %1069 : vector<16x128xf32>
    %cst_214 = arith.constant 0.707106769 : f32
    %1071 = vector.broadcast %cst_214 : f32 to vector<16x128xf32>
    %1072 = arith.mulf %1070, %1071 : vector<16x128xf32>
    %c8 = arith.constant 8 : index
    %c0_215 = arith.constant 0 : index
    %c0_216 = arith.constant 0 : index
    %1073 = vector.load %arg4[%c8, %c0_215, %c0_216] : memref<9x32x16xf32, #tpu.memory_space<vmem>>, vector<1x32x16xf32>
    %1074 = vector.shape_cast %1073 : vector<1x32x16xf32> to vector<32x16xf32>
    %cst_217 = arith.constant dense<0.000000e+00> : vector<32x128xf32>
    %1075 = tpu.matmul %1074, %1072, %cst_217 {dimension_numbers = #tpu.dot_dimension_numbers<[1], [0], [0], [1], [0, 0, 1, 1], [], []>} : vector<32x16xf32>, vector<16x128xf32>, vector<32x128xf32> -> vector<32x128xf32>
    %cst_218 = arith.constant dense<0.000000e+00> : vector<32xf32>
    %1076 = vector.multi_reduction <add>, %1075, %cst_218 [1] : vector<32x128xf32> to vector<32xf32>
    %1077 = vector.shape_cast %1076 : vector<32xf32> to vector<32x1xf32>
    %1078 = arith.mulf %1075, %1075 : vector<32x128xf32>
    %cst_219 = arith.constant dense<0.000000e+00> : vector<32xf32>
    %1079 = vector.multi_reduction <add>, %1078, %cst_219 [1] : vector<32x128xf32> to vector<32xf32>
    %1080 = vector.shape_cast %1079 : vector<32xf32> to vector<32x1xf32>
    %cst_220 = arith.constant 7.812500e-03 : f32
    %1081 = vector.broadcast %cst_220 : f32 to vector<32x1xf32>
    %1082 = arith.mulf %1077, %1081 : vector<32x1xf32>
    %cst_221 = arith.constant 7.812500e-03 : f32
    %1083 = vector.broadcast %cst_221 : f32 to vector<32x1xf32>
    %1084 = arith.mulf %1080, %1083 : vector<32x1xf32>
    %1085 = arith.mulf %1082, %1082 : vector<32x1xf32>
    %1086 = arith.subf %1084, %1085 : vector<32x1xf32>
    %1087 = vector.broadcast %1082 : vector<32x1xf32> to vector<32x128xf32>
    %1088 = arith.subf %1075, %1087 : vector<32x128xf32>
    %cst_222 = arith.constant 9.99999974E-6 : f32
    %1089 = vector.broadcast %cst_222 : f32 to vector<32x1xf32>
    %1090 = arith.addf %1086, %1089 : vector<32x1xf32>
    %1091 = math.rsqrt %1090 : vector<32x1xf32>
    %1092 = vector.broadcast %1091 : vector<32x1xf32> to vector<32x128xf32>
    %1093 = arith.mulf %1088, %1092 : vector<32x128xf32>
    %1094 = vector.extract_strided_slice %1093 {offsets = [0, 0], sizes = [16, 128], strides = [1, 1]} : vector<32x128xf32> to vector<16x128xf32>
    %1095 = vector.extract_strided_slice %1093 {offsets = [16, 0], sizes = [16, 128], strides = [1, 1]} : vector<32x128xf32> to vector<16x128xf32>
    %1096 = arith.negf %1095 : vector<16x128xf32>
    %1097 = math.exp %1096 : vector<16x128xf32>
    %cst_223 = arith.constant 1.000000e+00 : f32
    %1098 = vector.broadcast %cst_223 : f32 to vector<16x128xf32>
    %1099 = arith.addf %1098, %1097 : vector<16x128xf32>
    %1100 = arith.divf %1098, %1099 : vector<16x128xf32>
    %1101 = arith.mulf %1094, %1100 : vector<16x128xf32>
    %1102 = arith.addf %1072, %1101 : vector<16x128xf32>
    %cst_224 = arith.constant 0.707106769 : f32
    %1103 = vector.broadcast %cst_224 : f32 to vector<16x128xf32>
    %1104 = arith.mulf %1102, %1103 : vector<16x128xf32>
    %1105 = vector.extract_strided_slice %1104 {offsets = [0, 0], sizes = [8, 128], strides = [1, 1]} : vector<16x128xf32> to vector<8x128xf32>
    %cst_225 = arith.constant 0.000000e+00 : f32
    %1106 = vector.broadcast %cst_225 : f32 to vector<8x128xf32>
    %1107 = arith.maximumf %1105, %1106 : vector<8x128xf32>
    %1108 = arith.addf %785, %1107 : vector<8x128xf32>
    %1109 = tpu.concatenate %1108, %979 in 0 : vector<8x128xf32>, vector<1x128xf32> -> vector<9x128xf32>
    %c0_226 = arith.constant 0 : index
    %c0_227 = arith.constant 0 : index
    %1110 = vector.load %arg6[%c0_226, %c0_227] : memref<8x9xf32, #tpu.memory_space<vmem>>, vector<8x9xf32>
    %cst_228 = arith.constant dense<0.000000e+00> : vector<8x128xf32>
    %1111 = tpu.matmul %1110, %1109, %cst_228 {dimension_numbers = #tpu.dot_dimension_numbers<[1], [0], [0], [1], [0, 0, 1, 1], [], []>} : vector<8x9xf32>, vector<9x128xf32>, vector<8x128xf32> -> vector<8x128xf32>
    %c0_229 = arith.constant 0 : index
    %c0_230 = arith.constant 0 : index
    %1112 = vector.load %arg7[%c0_229, %c0_230] : memref<8x128xf32, #tpu.memory_space<vmem>>, vector<8x128xf32>
    tpu.vector_store %arg7[%c0_229, %c0_230], %1111 {strides = array<i32>} : memref<8x128xf32, #tpu.memory_space<vmem>>, vector<8x128xf32>,
    return
  }
  func.func @transform_0(%arg0: i32) -> (i32, i32) {
    %c0_i32 = arith.constant 0 : i32
    %c0_i32_0 = arith.constant 0 : i32
    return %c0_i32, %arg0 : i32, i32
  }
  func.func @transform_1(%arg0: i32) -> (i32, i32) {
    %c0_i32 = arith.constant 0 : i32
    %c0_i32_0 = arith.constant 0 : i32
    %c0_i32_1 = arith.constant 0 : i32
    return %c0_i32, %c0_i32_0 : i32, i32
  }
  func.func @transform_2(%arg0: i32) -> (i32, i32) {
    %c0_i32 = arith.constant 0 : i32
    %c0_i32_0 = arith.constant 0 : i32
    %c0_i32_1 = arith.constant 0 : i32
    return %c0_i32, %c0_i32_0 : i32, i32
  }
  func.func @transform_3(%arg0: i32) -> (i32, i32, i32) {
    %c0_i32 = arith.constant 0 : i32
    %c0_i32_0 = arith.constant 0 : i32
    %c0_i32_1 = arith.constant 0 : i32
    %c0_i32_2 = arith.constant 0 : i32
    return %c0_i32, %c0_i32_0, %c0_i32_1 : i32, i32, i32
  }
  func.func @transform_4(%arg0: i32) -> (i32, i32, i32) {
    %c0_i32 = arith.constant 0 : i32
    %c0_i32_0 = arith.constant 0 : i32
    %c0_i32_1 = arith.constant 0 : i32
    %c0_i32_2 = arith.constant 0 : i32
    return %c0_i32, %c0_i32_0, %c0_i32_1 : i32, i32, i32
  }
  func.func @transform_5(%arg0: i32) -> (i32, i32) {
    %c0_i32 = arith.constant 0 : i32
    %c0_i32_0 = arith.constant 0 : i32
    %c0_i32_1 = arith.constant 0 : i32
    return %c0_i32, %c0_i32_0 : i32, i32
  }
  func.func @transform_6(%arg0: i32) -> (i32, i32) {
    %c0_i32 = arith.constant 0 : i32
    %c0_i32_0 = arith.constant 0 : i32
    return %c0_i32, %arg0 : i32, i32
  }
}

</mosaic_0001>

<llo_original>
// kernel: tabnet_forward.1
$region0: #{tabnet_forward.1}
  #allocation0 [shape = 'u32[]', space=smem, size = 0x4, offset = 0x4, fixed_abs, tag = 'smem constant byte address 0x4 - core index']
  #allocation1 [shape = 'u32[72,128]{1,0:T(1,128)}', space=vmem, size = 0x9000, scoped, tag = 'internal scratch']
  %s0 = inlined_call_operand.vmem [shape: f32[16,128], index: 0, kind: input, shape index: {}]
  %s1 = inlined_call_operand.vmem [shape: f32[16,2], index: 1, kind: input, shape index: {}]
  %s2 = inlined_call_operand.vmem [shape: f32[32,16], index: 2, kind: input, shape index: {}]
  %s3 = inlined_call_operand.vmem [shape: f32[9,32,16], index: 3, kind: input, shape index: {}]
  %s4 = inlined_call_operand.vmem [shape: f32[3,16,8], index: 4, kind: input, shape index: {}]
  %s5 = inlined_call_operand.vmem [shape: f32[8,9], index: 5, kind: input, shape index: {}]
  %s6 = inlined_call_operand.vmem [shape: f32[8,128], index: 6, kind: output, shape index: {}]
  %s7 = sld [smem:[#allocation0]]
  $region34: #{tabnet_forward.1} parent=0
    _
  %s9 = ssub.s32 1, %s7
  %s10 = scalar_select 0, %s9, %s7
  // Predicated region
  $region2: #{tabnet_forward.1} parent=0 // pred_check
    _
  $region3: #{tabnet_forward.1} parent=0 // pred_check_branch
    %12 = sbr.rel (0) target = $region5
  $region4: #{tabnet_forward.1} parent=0 // pred_region
    _
  $region5: #{tabnet_forward.1} parent=0 // pred_fallthru
    _
  // Predicated region
  $region6: #{tabnet_forward.1} parent=0 // pred_check
    _
  $region7: #{tabnet_forward.1} parent=0 // pred_check_branch
    %14 = sbr.rel (0) target = $region9
  $region8: #{tabnet_forward.1} parent=0 // pred_region
    _
  $region9: #{tabnet_forward.1} parent=0 // pred_fallthru
    _
  // Predicated region
  $region10: #{tabnet_forward.1} parent=0 // pred_check
    _
  $region11: #{tabnet_forward.1} parent=0 // pred_check_branch
    %16 = sbr.rel (0) target = $region13
  $region12: #{tabnet_forward.1} parent=0 // pred_region
    _
  $region13: #{tabnet_forward.1} parent=0 // pred_fallthru
    _
  // Predicated region
  $region14: #{tabnet_forward.1} parent=0 // pred_check
    _
  $region15: #{tabnet_forward.1} parent=0 // pred_check_branch
    %18 = sbr.rel (0) target = $region17
  $region16: #{tabnet_forward.1} parent=0 // pred_region
    _
  $region17: #{tabnet_forward.1} parent=0 // pred_fallthru
    _
  // Predicated region
  $region18: #{tabnet_forward.1} parent=0 // pred_check
    _
  $region19: #{tabnet_forward.1} parent=0 // pred_check_branch
    %20 = sbr.rel (0) target = $region21
  $region20: #{tabnet_forward.1} parent=0 // pred_region
    _
  $region21: #{tabnet_forward.1} parent=0 // pred_fallthru
    _
  // Predicated region
  $region22: #{tabnet_forward.1} parent=0 // pred_check
    _
  $region23: #{tabnet_forward.1} parent=0 // pred_check_branch
    %22 = sbr.rel (0) target = $region25
  $region24: #{tabnet_forward.1} parent=0 // pred_region
    _
  $region25: #{tabnet_forward.1} parent=0 // pred_fallthru
    _
  %v23 = vld [vmem:[%s0] sm:$0xff]
  %v24 = vld [vmem:[%s0 + $0x8] sm:$0xff]
  %v25 = vld [vmem:[%s1] sm:$0xff]
  %v26 = vld [vmem:[%s1 + $0x8] sm:$0xff]
  %28 = vset.pattern.permute.xlu0 0
  %29 = vperm.xlu0 %28, %v25
  %v30 = vpop.permute.xlu0 %29
  %33 = vset.pattern.permute.xlu0 0
  %34 = vperm.xlu0 %33, %v26
  %v35 = vpop.permute.xlu0 %34
  %v37 = vmul.f32 %v23, %v30
  %v38 = vmul.f32 %v24, %v35
  %39 = vset.pattern.permute.xlu0 1
  %40 = vperm.xlu0 %39, %v25
  %v41 = vpop.permute.xlu0 %40
  %43 = vset.pattern.permute.xlu0 1
  %44 = vperm.xlu0 %43, %v26
  %v45 = vpop.permute.xlu0 %44
  %v47 = vadd.f32 %v37, %v41
  %v48 = vadd.f32 %v38, %v45
  %v49 = vld [vmem:[%s2] sm:$0xff]
  %v50 = vld [vmem:[%s2 + $0x8] sm:$0xff]
  %v51 = vld [vmem:[%s2 + $0x10] sm:$0xff]
  %v52 = vld [vmem:[%s2 + $0x18] sm:$0xff]
  %vm53 = vcmask 130048
  %v55 = vsel %vm53, %v49, 0
  %v58 = vsel %vm53, %v50, 0
  %v61 = vsel %vm53, %v51, 0
  %v64 = vsel %vm53, %v52, 0
  %66 = vmatpush.msra.mxu0 0.0
  %67 = vmatpush.msra.mxu0 0.0
  %68 = vmatpush.msra.mxu0 0.0
  %69 = vmatpush.msra.mxu0 0.0
  %70 = vmatpush.msra.mxu0 0.0
  %71 = vmatpush.msra.mxu0 0.0
  %72 = vmatpush.msra.mxu0 0.0
  %73 = vmatpush.msra.mxu0 0.0
  %74 = vmatpush.msra.mxu0 0.0
  %75 = vmatpush.msra.mxu0 0.0
  %76 = vmatpush.msra.mxu0 0.0
  %77 = vmatpush.msra.mxu0 0.0
  %78 = vmatpush.msra.mxu0 0.0
  %79 = vmatpush.msra.mxu0 0.0
  %80 = vmatpush.msra.mxu0 %v48
  %81 = vmatpush.msra.mxu0 %v47
  %82 = vmatmul.f32.gmra.mxu0 %v55
  %v83 = vpop.f32.mrf.mxu0
  %v84 = vadd.f32 0.0, %v83
  %85 = vmatmul.f32.gmra.mxu0 %v58
  %v86 = vpop.f32.mrf.mxu0
  %v87 = vadd.f32 0.0, %v86
  %88 = vmatmul.f32.gmra.mxu0 %v61
  %v89 = vpop.f32.mrf.mxu0
  %v90 = vadd.f32 0.0, %v89
  %91 = vmatmul.f32.gmra.mxu0 %v64
  %v92 = vpop.f32.mrf.mxu0
  %v93 = vadd.f32 0.0, %v92
  %94 = vdwg.mxu0
  %95 = vadd.xlane.f32.xlu0 %v84
  %v96 = vpop.xlane.xlu0 %95
  %97 = vadd.xlane.f32.xlu0 %v87
  %v98 = vpop.xlane.xlu0 %97
  %99 = vadd.xlane.f32.xlu0 %v90
  %v100 = vpop.xlane.xlu0 %99
  %101 = vadd.xlane.f32.xlu0 %v93
  %v102 = vpop.xlane.xlu0 %101
  %v103 = vmul.f32 %v84, %v84
  %v104 = vmul.f32 %v87, %v87
  %v105 = vmul.f32 %v90, %v90
  %v106 = vmul.f32 %v93, %v93
  %107 = vadd.xlane.f32.xlu0 %v103
  %v108 = vpop.xlane.xlu0 %107
  %109 = vadd.xlane.f32.xlu0 %v104
  %v110 = vpop.xlane.xlu0 %109
  %111 = vadd.xlane.f32.xlu0 %v105
  %v112 = vpop.xlane.xlu0 %111
  %113 = vadd.xlane.f32.xlu0 %v106
  %v114 = vpop.xlane.xlu0 %113
  %v115 = vmul.f32 %v96, 0.0078125
  %v116 = vmul.f32 %v98, 0.0078125
  %v117 = vmul.f32 %v100, 0.0078125
  %v118 = vmul.f32 %v102, 0.0078125
  %v119 = vmul.f32 %v108, 0.0078125
  %v120 = vmul.f32 %v110, 0.0078125
  %v121 = vmul.f32 %v112, 0.0078125
  %v122 = vmul.f32 %v114, 0.0078125
  %v123 = vmul.f32 %v115, %v115
  %v124 = vmul.f32 %v116, %v116
  %v125 = vmul.f32 %v117, %v117
  %v126 = vmul.f32 %v118, %v118
  %v127 = vsub.f32 %v119, %v123
  %v128 = vsub.f32 %v120, %v124
  %v129 = vsub.f32 %v121, %v125
  %v130 = vsub.f32 %v122, %v126
  %v131 = vsub.f32 %v84, %v115
  %v132 = vsub.f32 %v87, %v116
  %v133 = vsub.f32 %v90, %v117
  %v134 = vsub.f32 %v93, %v118
  %v135 = vadd.f32 %v127, 1e-05
  %v136 = vadd.f32 %v128, 1e-05
  %v137 = vadd.f32 %v129, 1e-05
  %v138 = vadd.f32 %v130, 1e-05
  %v139 = vrsqrt.pop %v135
  %v140 = vmul.f32 %v139, %v135
  %v141 = vmul.f32 %v140, %v139
  %v142 = vmul.f32 0.5, %v141
  %v143 = vsub.f32 1.5, %v142
  %v144 = vmul.f32 %v139, %v143
  %vm145 = vweird.f32 %v135
  %vm146 = vweird.f32 %v139
  %vm147 = vmor %vm145, %vm146
  %v148 = vsel %vm147, %v139, %v144
  %v149 = vrsqrt.pop %v136
  %v150 = vmul.f32 %v149, %v136
  %v151 = vmul.f32 %v150, %v149
  %v152 = vmul.f32 0.5, %v151
  %v153 = vsub.f32 1.5, %v152
  %v154 = vmul.f32 %v149, %v153
  %vm155 = vweird.f32 %v136
  %vm156 = vweird.f32 %v149
  %vm157 = vmor %vm155, %vm156
  %v158 = vsel %vm157, %v149, %v154
  %v159 = vrsqrt.pop %v137
  %v160 = vmul.f32 %v159, %v137
  %v161 = vmul.f32 %v160, %v159
  %v162 = vmul.f32 0.5, %v161
  %v163 = vsub.f32 1.5, %v162
  %v164 = vmul.f32 %v159, %v163
  %vm165 = vweird.f32 %v137
  %vm166 = vweird.f32 %v159
  %vm167 = vmor %vm165, %vm166
  %v168 = vsel %vm167, %v159, %v164
  %v169 = vrsqrt.pop %v138
  %v170 = vmul.f32 %v169, %v138
  %v171 = vmul.f32 %v170, %v169
  %v172 = vmul.f32 0.5, %v171
  %v173 = vsub.f32 1.5, %v172
  %v174 = vmul.f32 %v169, %v173
  %vm175 = vweird.f32 %v138
  %vm176 = vweird.f32 %v169
  %vm177 = vmor %vm175, %vm176
  %v178 = vsel %vm177, %v169, %v174
  %v179 = vmul.f32 %v131, %v148
  %v180 = vmul.f32 %v132, %v158
  %v181 = vmul.f32 %v133, %v168
  %v182 = vmul.f32 %v134, %v178
  %v183 = vxor.u32 %v181, 2147483648
  %v184 = vxor.u32 %v182, 2147483648
  %v185 = vmul.f32 %v183, 1.442695
  %v186 = vpow.pop %v185
  %v187 = vmul.f32 %v184, 1.442695
  %v188 = vpow.pop %v187
  %v189 = vadd.f32 %v186, 1.0
  %v190 = vadd.f32 %v188, 1.0
  %v191 = vrcp.pop %v189
  %v192 = vmul.f32 %v189, %v191
  %v193 = vsub.f32 1.0, %v192
  %v194 = vmul.f32 %v191, %v193
  %v195 = vadd.f32 %v191, %v194
  %vm196 = vweird.f32 %v189
  %vm197 = vweird.f32 %v191
  %vm198 = vmor %vm196, %vm197
  %v199 = vsel %vm198, %v191, %v195
  %v200 = vand.u32 2147483647, %v189
  %vm201 = vcmp.eq.f32.partialorder %v200, 8.507059e+37
  %v202 = vand.u32 %v189, 2147483648
  %v203 = vor.u32 1.1754944e-38, %v202
  %v204 = vsel %vm201, %v203, %v199
  %v205 = vmul.f32 1.0, %v204
  %v206 = vrcp.pop %v190
  %v207 = vmul.f32 %v190, %v206
  %v208 = vsub.f32 1.0, %v207
  %v209 = vmul.f32 %v206, %v208
  %v210 = vadd.f32 %v206, %v209
  %vm211 = vweird.f32 %v190
  %vm212 = vweird.f32 %v206
  %vm213 = vmor %vm211, %vm212
  %v214 = vsel %vm213, %v206, %v210
  %v215 = vand.u32 2147483647, %v190
  %vm216 = vcmp.eq.f32.partialorder %v215, 8.507059e+37
  %v217 = vand.u32 %v190, 2147483648
  %v218 = vor.u32 1.1754944e-38, %v217
  %v219 = vsel %vm216, %v218, %v214
  %v220 = vmul.f32 1.0, %v219
  %v221 = vmul.f32 %v179, %v205
  %v222 = vmul.f32 %v180, %v220
  %v223 = vld [vmem:[%s3] sm:$0xff]
  %v224 = vld [vmem:[%s3 + $0x8] sm:$0xff]
  %v225 = vld [vmem:[%s3 + $0x10] sm:$0xff]
  %v226 = vld [vmem:[%s3 + $0x18] sm:$0xff]
  %v228 = vsel %vm53, %v223, 0
  %v231 = vsel %vm53, %v224, 0
  %v234 = vsel %vm53, %v225, 0
  %v237 = vsel %vm53, %v226, 0
  %239 = vmatpush.msra.mxu0 0.0
  %240 = vmatpush.msra.mxu0 0.0
  %241 = vmatpush.msra.mxu0 0.0
  %242 = vmatpush.msra.mxu0 0.0
  %243 = vmatpush.msra.mxu0 0.0
  %244 = vmatpush.msra.mxu0 0.0
  %245 = vmatpush.msra.mxu0 0.0
  %246 = vmatpush.msra.mxu0 0.0
  %247 = vmatpush.msra.mxu0 0.0
  %248 = vmatpush.msra.mxu0 0.0
  %249 = vmatpush.msra.mxu0 0.0
  %250 = vmatpush.msra.mxu0 0.0
  %251 = vmatpush.msra.mxu0 0.0
  %252 = vmatpush.msra.mxu0 0.0
  %253 = vmatpush.msra.mxu0 %v222
  %254 = vmatpush.msra.mxu0 %v221
  %255 = vmatmul.f32.gmra.mxu0 %v228
  %v256 = vpop.f32.mrf.mxu0
  %v257 = vadd.f32 0.0, %v256
  %258 = vmatmul.f32.gmra.mxu0 %v231
  %v259 = vpop.f32.mrf.mxu0
  %v260 = vadd.f32 0.0, %v259
  %261 = vmatmul.f32.gmra.mxu0 %v234
  %v262 = vpop.f32.mrf.mxu0
  %v263 = vadd.f32 0.0, %v262
  %264 = vmatmul.f32.gmra.mxu0 %v237
  %v265 = vpop.f32.mrf.mxu0
  %v266 = vadd.f32 0.0, %v265
  %267 = vdwg.mxu0
  %268 = vadd.xlane.f32.xlu0 %v257
  %v269 = vpop.xlane.xlu0 %268
  %270 = vadd.xlane.f32.xlu0 %v260
  %v271 = vpop.xlane.xlu0 %270
  %272 = vadd.xlane.f32.xlu0 %v263
  %v273 = vpop.xlane.xlu0 %272
  %274 = vadd.xlane.f32.xlu0 %v266
  %v275 = vpop.xlane.xlu0 %274
  %v276 = vmul.f32 %v257, %v257
  %v277 = vmul.f32 %v260, %v260
  %v278 = vmul.f32 %v263, %v263
  %v279 = vmul.f32 %v266, %v266
  %280 = vadd.xlane.f32.xlu0 %v276
  %v281 = vpop.xlane.xlu0 %280
  %282 = vadd.xlane.f32.xlu0 %v277
  %v283 = vpop.xlane.xlu0 %282
  %284 = vadd.xlane.f32.xlu0 %v278
  %v285 = vpop.xlane.xlu0 %284
  %286 = vadd.xlane.f32.xlu0 %v279
  %v287 = vpop.xlane.xlu0 %286
  %v288 = vmul.f32 %v269, 0.0078125
  %v289 = vmul.f32 %v271, 0.0078125
  %v290 = vmul.f32 %v273, 0.0078125
  %v291 = vmul.f32 %v275, 0.0078125
  %v292 = vmul.f32 %v281, 0.0078125
  %v293 = vmul.f32 %v283, 0.0078125
  %v294 = vmul.f32 %v285, 0.0078125
  %v295 = vmul.f32 %v287, 0.0078125
  %v296 = vmul.f32 %v288, %v288
  %v297 = vmul.f32 %v289, %v289
  %v298 = vmul.f32 %v290, %v290
  %v299 = vmul.f32 %v291, %v291
  %v300 = vsub.f32 %v292, %v296
  %v301 = vsub.f32 %v293, %v297
  %v302 = vsub.f32 %v294, %v298
  %v303 = vsub.f32 %v295, %v299
  %v304 = vsub.f32 %v257, %v288
  %v305 = vsub.f32 %v260, %v289
  %v306 = vsub.f32 %v263, %v290
  %v307 = vsub.f32 %v266, %v291
  %v308 = vadd.f32 %v300, 1e-05
  %v309 = vadd.f32 %v301, 1e-05
  %v310 = vadd.f32 %v302, 1e-05
  %v311 = vadd.f32 %v303, 1e-05
  %v312 = vrsqrt.pop %v308
  %v313 = vmul.f32 %v312, %v308
  %v314 = vmul.f32 %v313, %v312
  %v315 = vmul.f32 0.5, %v314
  %v316 = vsub.f32 1.5, %v315
  %v317 = vmul.f32 %v312, %v316
  %vm318 = vweird.f32 %v308
  %vm319 = vweird.f32 %v312
  %vm320 = vmor %vm318, %vm319
  %v321 = vsel %vm320, %v312, %v317
  %v322 = vrsqrt.pop %v309
  %v323 = vmul.f32 %v322, %v309
  %v324 = vmul.f32 %v323, %v322
  %v325 = vmul.f32 0.5, %v324
  %v326 = vsub.f32 1.5, %v325
  %v327 = vmul.f32 %v322, %v326
  %vm328 = vweird.f32 %v309
  %vm329 = vweird.f32 %v322
  %vm330 = vmor %vm328, %vm329
  %v331 = vsel %vm330, %v322, %v327
  %v332 = vrsqrt.pop %v310
  %v333 = vmul.f32 %v332, %v310
  %v334 = vmul.f32 %v333, %v332
  %v335 = vmul.f32 0.5, %v334
  %v336 = vsub.f32 1.5, %v335
  %v337 = vmul.f32 %v332, %v336
  %vm338 = vweird.f32 %v310
  %vm339 = vweird.f32 %v332
  %vm340 = vmor %vm338, %vm339
  %v341 = vsel %vm340, %v332, %v337
  %v342 = vrsqrt.pop %v311
  %v343 = vmul.f32 %v342, %v311
  %v344 = vmul.f32 %v343, %v342
  %v345 = vmul.f32 0.5, %v344
  %v346 = vsub.f32 1.5, %v345
  %v347 = vmul.f32 %v342, %v346
  %vm348 = vweird.f32 %v311
  %vm349 = vweird.f32 %v342
  %vm350 = vmor %vm348, %vm349
  %v351 = vsel %vm350, %v342, %v347
  %v352 = vmul.f32 %v304, %v321
  %v353 = vmul.f32 %v305, %v331
  %v354 = vmul.f32 %v306, %v341
  %v355 = vmul.f32 %v307, %v351
  %v356 = vxor.u32 %v354, 2147483648
  %v357 = vxor.u32 %v355, 2147483648
  %v358 = vmul.f32 %v356, 1.442695
  %v359 = vpow.pop %v358
  %v360 = vmul.f32 %v357, 1.442695
  %v361 = vpow.pop %v360
  %v362 = vadd.f32 %v359, 1.0
  %v363 = vadd.f32 %v361, 1.0
  %v364 = vrcp.pop %v362
  %v365 = vmul.f32 %v362, %v364
  %v366 = vsub.f32 1.0, %v365
  %v367 = vmul.f32 %v364, %v366
  %v368 = vadd.f32 %v364, %v367
  %vm369 = vweird.f32 %v362
  %vm370 = vweird.f32 %v364
  %vm371 = vmor %vm369, %vm370
  %v372 = vsel %vm371, %v364, %v368
  %v373 = vand.u32 2147483647, %v362
  %vm374 = vcmp.eq.f32.partialorder %v373, 8.507059e+37
  %v375 = vand.u32 %v362, 2147483648
  %v376 = vor.u32 1.1754944e-38, %v375
  %v377 = vsel %vm374, %v376, %v372
  %v378 = vmul.f32 1.0, %v377
  %v379 = vrcp.pop %v363
  %v380 = vmul.f32 %v363, %v379
  %v381 = vsub.f32 1.0, %v380
  %v382 = vmul.f32 %v379, %v381
  %v383 = vadd.f32 %v379, %v382
  %vm384 = vweird.f32 %v363
  %vm385 = vweird.f32 %v379
  %vm386 = vmor %vm384, %vm385
  %v387 = vsel %vm386, %v379, %v383
  %v388 = vand.u32 2147483647, %v363
  %vm389 = vcmp.eq.f32.partialorder %v388, 8.507059e+37
  %v390 = vand.u32 %v363, 2147483648
  %v391 = vor.u32 1.1754944e-38, %v390
  %v392 = vsel %vm389, %v391, %v387
  %v393 = vmul.f32 1.0, %v392
  %v394 = vmul.f32 %v352, %v378
  %v395 = vmul.f32 %v353, %v393
  %v396 = vadd.f32 %v221, %v394
  %v397 = vadd.f32 %v222, %v395
  %v398 = vmul.f32 %v396, 0.70710677
  %v399 = vmul.f32 %v397, 0.70710677
  %s400 = scalar_lea.vmem %s3, 32
  %v401 = vld [vmem:[%s400] sm:$0xff]
  %v402 = vld [vmem:[%s400 + $0x8] sm:$0xff]
  %v403 = vld [vmem:[%s400 + $0x10] sm:$0xff]
  %v404 = vld [vmem:[%s400 + $0x18] sm:$0xff]
  %v406 = vsel %vm53, %v401, 0
  %v409 = vsel %vm53, %v402, 0
  %v412 = vsel %vm53, %v403, 0
  %v415 = vsel %vm53, %v404, 0
  %417 = vmatpush.msra.mxu0 0.0
  %418 = vmatpush.msra.mxu0 0.0
  %419 = vmatpush.msra.mxu0 0.0
  %420 = vmatpush.msra.mxu0 0.0
  %421 = vmatpush.msra.mxu0 0.0
  %422 = vmatpush.msra.mxu0 0.0
  %423 = vmatpush.msra.mxu0 0.0
  %424 = vmatpush.msra.mxu0 0.0
  %425 = vmatpush.msra.mxu0 0.0
  %426 = vmatpush.msra.mxu0 0.0
  %427 = vmatpush.msra.mxu0 0.0
  %428 = vmatpush.msra.mxu0 0.0
  %429 = vmatpush.msra.mxu0 0.0
  %430 = vmatpush.msra.mxu0 0.0
  %431 = vmatpush.msra.mxu0 %v399
  %432 = vmatpush.msra.mxu0 %v398
  %433 = vmatmul.f32.gmra.mxu0 %v406
  %v434 = vpop.f32.mrf.mxu0
  %v435 = vadd.f32 0.0, %v434
  %436 = vmatmul.f32.gmra.mxu0 %v409
  %v437 = vpop.f32.mrf.mxu0
  %v438 = vadd.f32 0.0, %v437
  %439 = vmatmul.f32.gmra.mxu0 %v412
  %v440 = vpop.f32.mrf.mxu0
  %v441 = vadd.f32 0.0, %v440
  %442 = vmatmul.f32.gmra.mxu0 %v415
  %v443 = vpop.f32.mrf.mxu0
  %v444 = vadd.f32 0.0, %v443
  %445 = vdwg.mxu0
  %446 = vadd.xlane.f32.xlu0 %v435
  %v447 = vpop.xlane.xlu0 %446
  %448 = vadd.xlane.f32.xlu0 %v438
  %v449 = vpop.xlane.xlu0 %448
  %450 = vadd.xlane.f32.xlu0 %v441
  %v451 = vpop.xlane.xlu0 %450
  %452 = vadd.xlane.f32.xlu0 %v444
  %v453 = vpop.xlane.xlu0 %452
  %v454 = vmul.f32 %v435, %v435
  %v455 = vmul.f32 %v438, %v438
  %v456 = vmul.f32 %v441, %v441
  %v457 = vmul.f32 %v444, %v444
  %458 = vadd.xlane.f32.xlu0 %v454
  %v459 = vpop.xlane.xlu0 %458
  %460 = vadd.xlane.f32.xlu0 %v455
  %v461 = vpop.xlane.xlu0 %460
  %462 = vadd.xlane.f32.xlu0 %v456
  %v463 = vpop.xlane.xlu0 %462
  %464 = vadd.xlane.f32.xlu0 %v457
  %v465 = vpop.xlane.xlu0 %464
  %v466 = vmul.f32 %v447, 0.0078125
  %v467 = vmul.f32 %v449, 0.0078125
  %v468 = vmul.f32 %v451, 0.0078125
  %v469 = vmul.f32 %v453, 0.0078125
  %v470 = vmul.f32 %v459, 0.0078125
  %v471 = vmul.f32 %v461, 0.0078125
  %v472 = vmul.f32 %v463, 0.0078125
  %v473 = vmul.f32 %v465, 0.0078125
  %v474 = vmul.f32 %v466, %v466
  %v475 = vmul.f32 %v467, %v467
  %v476 = vmul.f32 %v468, %v468
  %v477 = vmul.f32 %v469, %v469
  %v478 = vsub.f32 %v470, %v474
  %v479 = vsub.f32 %v471, %v475
  %v480 = vsub.f32 %v472, %v476
  %v481 = vsub.f32 %v473, %v477
  %v482 = vsub.f32 %v435, %v466
  %v483 = vsub.f32 %v438, %v467
  %v484 = vsub.f32 %v441, %v468
  %v485 = vsub.f32 %v444, %v469
  %v486 = vadd.f32 %v478, 1e-05
  %v487 = vadd.f32 %v479, 1e-05
  %v488 = vadd.f32 %v480, 1e-05
  %v489 = vadd.f32 %v481, 1e-05
  %v490 = vrsqrt.pop %v486
  %v491 = vmul.f32 %v490, %v486
  %v492 = vmul.f32 %v491, %v490
  %v493 = vmul.f32 0.5, %v492
  %v494 = vsub.f32 1.5, %v493
  %v495 = vmul.f32 %v490, %v494
  %vm496 = vweird.f32 %v486
  %vm497 = vweird.f32 %v490
  %vm498 = vmor %vm496, %vm497
  %v499 = vsel %vm498, %v490, %v495
  %v500 = vrsqrt.pop %v487
  %v501 = vmul.f32 %v500, %v487
  %v502 = vmul.f32 %v501, %v500
  %v503 = vmul.f32 0.5, %v502
  %v504 = vsub.f32 1.5, %v503
  %v505 = vmul.f32 %v500, %v504
  %vm506 = vweird.f32 %v487
  %vm507 = vweird.f32 %v500
  %vm508 = vmor %vm506, %vm507
  %v509 = vsel %vm508, %v500, %v505
  %v510 = vrsqrt.pop %v488
  %v511 = vmul.f32 %v510, %v488
  %v512 = vmul.f32 %v511, %v510
  %v513 = vmul.f32 0.5, %v512
  %v514 = vsub.f32 1.5, %v513
  %v515 = vmul.f32 %v510, %v514
  %vm516 = vweird.f32 %v488
  %vm517 = vweird.f32 %v510
  %vm518 = vmor %vm516, %vm517
  %v519 = vsel %vm518, %v510, %v515
  %v520 = vrsqrt.pop %v489
  %v521 = vmul.f32 %v520, %v489
  %v522 = vmul.f32 %v521, %v520
  %v523 = vmul.f32 0.5, %v522
  %v524 = vsub.f32 1.5, %v523
  %v525 = vmul.f32 %v520, %v524
  %vm526 = vweird.f32 %v489
  %vm527 = vweird.f32 %v520
  %vm528 = vmor %vm526, %vm527
  %v529 = vsel %vm528, %v520, %v525
  %v530 = vmul.f32 %v482, %v499
  %v531 = vmul.f32 %v483, %v509
  %v532 = vmul.f32 %v484, %v519
  %v533 = vmul.f32 %v485, %v529
  %v534 = vxor.u32 %v532, 2147483648
  %v535 = vxor.u32 %v533, 2147483648
  %v536 = vmul.f32 %v534, 1.442695
  %v537 = vpow.pop %v536
  %v538 = vmul.f32 %v535, 1.442695
  %v539 = vpow.pop %v538
  %v540 = vadd.f32 %v537, 1.0
  %v541 = vadd.f32 %v539, 1.0
  %v542 = vrcp.pop %v540
  %v543 = vmul.f32 %v540, %v542
  %v544 = vsub.f32 1.0, %v543
  %v545 = vmul.f32 %v542, %v544
  %v546 = vadd.f32 %v542, %v545
  %vm547 = vweird.f32 %v540
  %vm548 = vweird.f32 %v542
  %vm549 = vmor %vm547, %vm548
  %v550 = vsel %vm549, %v542, %v546
  %v551 = vand.u32 2147483647, %v540
  %vm552 = vcmp.eq.f32.partialorder %v551, 8.507059e+37
  %v553 = vand.u32 %v540, 2147483648
  %v554 = vor.u32 1.1754944e-38, %v553
  %v555 = vsel %vm552, %v554, %v550
  %v556 = vmul.f32 1.0, %v555
  %v557 = vrcp.pop %v541
  %v558 = vmul.f32 %v541, %v557
  %v559 = vsub.f32 1.0, %v558
  %v560 = vmul.f32 %v557, %v559
  %v561 = vadd.f32 %v557, %v560
  %vm562 = vweird.f32 %v541
  %vm563 = vweird.f32 %v557
  %vm564 = vmor %vm562, %vm563
  %v565 = vsel %vm564, %v557, %v561
  %v566 = vand.u32 2147483647, %v541
  %vm567 = vcmp.eq.f32.partialorder %v566, 8.507059e+37
  %v568 = vand.u32 %v541, 2147483648
  %v569 = vor.u32 1.1754944e-38, %v568
  %v570 = vsel %vm567, %v569, %v565
  %v571 = vmul.f32 1.0, %v570
  %v572 = vmul.f32 %v530, %v556
  %v573 = vmul.f32 %v531, %v571
  %v574 = vadd.f32 %v398, %v572
  %v575 = vadd.f32 %v399, %v573
  %v576 = vmul.f32 %v574, 0.70710677
  %v577 = vmul.f32 %v575, 0.70710677
  %s578 = scalar_lea.vmem %s3, 64
  %v579 = vld [vmem:[%s578] sm:$0xff]
  %v580 = vld [vmem:[%s578 + $0x8] sm:$0xff]
  %v581 = vld [vmem:[%s578 + $0x10] sm:$0xff]
  %v582 = vld [vmem:[%s578 + $0x18] sm:$0xff]
  %v584 = vsel %vm53, %v579, 0
  %v587 = vsel %vm53, %v580, 0
  %v590 = vsel %vm53, %v581, 0
  %v593 = vsel %vm53, %v582, 0
  %595 = vmatpush.msra.mxu0 0.0
  %596 = vmatpush.msra.mxu0 0.0
  %597 = vmatpush.msra.mxu0 0.0
  %598 = vmatpush.msra.mxu0 0.0
  %599 = vmatpush.msra.mxu0 0.0
  %600 = vmatpush.msra.mxu0 0.0
  %601 = vmatpush.msra.mxu0 0.0
  %602 = vmatpush.msra.mxu0 0.0
  %603 = vmatpush.msra.mxu0 0.0
  %604 = vmatpush.msra.mxu0 0.0
  %605 = vmatpush.msra.mxu0 0.0
  %606 = vmatpush.msra.mxu0 0.0
  %607 = vmatpush.msra.mxu0 0.0
  %608 = vmatpush.msra.mxu0 0.0
  %609 = vmatpush.msra.mxu0 %v577
  %610 = vmatpush.msra.mxu0 %v576
  %611 = vmatmul.f32.gmra.mxu0 %v584
  %v612 = vpop.f32.mrf.mxu0
  %613 = vmatmul.f32.gmra.mxu0 %v587
  %v614 = vpop.f32.mrf.mxu0
  %v615 = vadd.f32 0.0, %v614
  %616 = vmatmul.f32.gmra.mxu0 %v590
  %v617 = vpop.f32.mrf.mxu0
  %618 = vmatmul.f32.gmra.mxu0 %v593
  %v619 = vpop.f32.mrf.mxu0
  %v620 = vadd.f32 0.0, %v619
  %621 = vdwg.mxu0
  %622 = vadd.xlane.f32.xlu0 %v615
  %v623 = vpop.xlane.xlu0 %622
  %624 = vadd.xlane.f32.xlu0 %v620
  %v625 = vpop.xlane.xlu0 %624
  %v626 = vmul.f32 %v615, %v615
  %v627 = vmul.f32 %v620, %v620
  %628 = vadd.xlane.f32.xlu0 %v626
  %v629 = vpop.xlane.xlu0 %628
  %630 = vadd.xlane.f32.xlu0 %v627
  %v631 = vpop.xlane.xlu0 %630
  %v632 = vmul.f32 %v623, 0.0078125
  %v633 = vmul.f32 %v625, 0.0078125
  %v634 = vmul.f32 %v629, 0.0078125
  %v635 = vmul.f32 %v631, 0.0078125
  %v636 = vmul.f32 %v632, %v632
  %v637 = vmul.f32 %v633, %v633
  %v638 = vsub.f32 %v634, %v636
  %v639 = vsub.f32 %v635, %v637
  %v640 = vsub.f32 %v615, %v632
  %v641 = vsub.f32 %v620, %v633
  %v642 = vadd.f32 %v638, 1e-05
  %v643 = vadd.f32 %v639, 1e-05
  %v644 = vrsqrt.pop %v642
  %v645 = vmul.f32 %v644, %v642
  %v646 = vmul.f32 %v645, %v644
  %v647 = vmul.f32 0.5, %v646
  %v648 = vsub.f32 1.5, %v647
  %v649 = vmul.f32 %v644, %v648
  %vm650 = vweird.f32 %v642
  %vm651 = vweird.f32 %v644
  %vm652 = vmor %vm650, %vm651
  %v653 = vsel %vm652, %v644, %v649
  %v654 = vrsqrt.pop %v643
  %v655 = vmul.f32 %v654, %v643
  %v656 = vmul.f32 %v655, %v654
  %v657 = vmul.f32 0.5, %v656
  %v658 = vsub.f32 1.5, %v657
  %v659 = vmul.f32 %v654, %v658
  %vm660 = vweird.f32 %v643
  %vm661 = vweird.f32 %v654
  %vm662 = vmor %vm660, %vm661
  %v663 = vsel %vm662, %v654, %v659
  %v664 = vmul.f32 %v640, %v653
  %v665 = vmul.f32 %v641, %v663
  %v666 = vxor.u32 %v665, 2147483648
  %v667 = vmul.f32 %v666, 1.442695
  %v668 = vpow.pop %v667
  %v669 = vadd.f32 %v668, 1.0
  %v670 = vrcp.pop %v669
  %v671 = vmul.f32 %v669, %v670
  %v672 = vsub.f32 1.0, %v671
  %v673 = vmul.f32 %v670, %v672
  %v674 = vadd.f32 %v670, %v673
  %vm675 = vweird.f32 %v669
  %vm676 = vweird.f32 %v670
  %vm677 = vmor %vm675, %vm676
  %v678 = vsel %vm677, %v670, %v674
  %v679 = vand.u32 2147483647, %v669
  %vm680 = vcmp.eq.f32.partialorder %v679, 8.507059e+37
  %v681 = vand.u32 %v669, 2147483648
  %v682 = vor.u32 1.1754944e-38, %v681
  %v683 = vsel %vm680, %v682, %v678
  %v684 = vmul.f32 1.0, %v683
  %v685 = vmul.f32 %v664, %v684
  %v686 = vadd.f32 %v577, %v685
  %v687 = vmul.f32 %v686, 0.70710677
  %v688 = vld [vmem:[%s4] sm:$0xff]
  %v689 = vld [vmem:[%s4 + $0x8] sm:$0xff]
  %vm690 = vcmask 64512
  %v692 = vsel %vm690, %v688, 0
  %v695 = vsel %vm690, %v689, 0
  %697 = vmatpush.msra.mxu0 0.0
  %698 = vmatpush.msra.mxu0 0.0
  %699 = vmatpush.msra.mxu0 0.0
  %700 = vmatpush.msra.mxu0 0.0
  %701 = vmatpush.msra.mxu0 0.0
  %702 = vmatpush.msra.mxu0 0.0
  %703 = vmatpush.msra.mxu0 0.0
  %704 = vmatpush.msra.mxu0 0.0
  %705 = vmatpush.msra.mxu0 0.0
  %706 = vmatpush.msra.mxu0 0.0
  %707 = vmatpush.msra.mxu0 0.0
  %708 = vmatpush.msra.mxu0 0.0
  %709 = vmatpush.msra.mxu0 0.0
  %710 = vmatpush.msra.mxu0 0.0
  %711 = vmatpush.msra.mxu0 0.0
  %712 = vmatpush.msra.mxu0 %v687
  %713 = vmatmul.f32.gmra.mxu0 %v692
  %v714 = vpop.f32.mrf.mxu0
  %v715 = vadd.f32 0.0, %v714
  %716 = vmatmul.f32.gmra.mxu0 %v695
  %v717 = vpop.f32.mrf.mxu0
  %v718 = vadd.f32 0.0, %v717
  %719 = vdwg.mxu0
  %720 = vadd.xlane.f32.xlu0 %v715
  %v721 = vpop.xlane.xlu0 %720
  %722 = vadd.xlane.f32.xlu0 %v718
  %v723 = vpop.xlane.xlu0 %722
  %v724 = vmul.f32 %v715, %v715
  %v725 = vmul.f32 %v718, %v718
  %726 = vadd.xlane.f32.xlu0 %v724
  %v727 = vpop.xlane.xlu0 %726
  %728 = vadd.xlane.f32.xlu0 %v725
  %v729 = vpop.xlane.xlu0 %728
  %v730 = vmul.f32 %v721, 0.0078125
  %v731 = vmul.f32 %v723, 0.0078125
  %v732 = vmul.f32 %v727, 0.0078125
  %v733 = vmul.f32 %v729, 0.0078125
  %v734 = vmul.f32 %v730, %v730
  %v735 = vmul.f32 %v731, %v731
  %v736 = vsub.f32 %v732, %v734
  %v737 = vsub.f32 %v733, %v735
  %v738 = vsub.f32 %v715, %v730
  %v739 = vsub.f32 %v718, %v731
  %v740 = vadd.f32 %v736, 1e-05
  %v741 = vadd.f32 %v737, 1e-05
  %v742 = vrsqrt.pop %v740
  %v743 = vmul.f32 %v742, %v740
  %v744 = vmul.f32 %v743, %v742
  %v745 = vmul.f32 0.5, %v744
  %v746 = vsub.f32 1.5, %v745
  %v747 = vmul.f32 %v742, %v746
  %vm748 = vweird.f32 %v740
  %vm749 = vweird.f32 %v742
  %vm750 = vmor %vm748, %vm749
  %v751 = vsel %vm750, %v742, %v747
  %v752 = vrsqrt.pop %v741
  %v753 = vmul.f32 %v752, %v741
  %v754 = vmul.f32 %v753, %v752
  %v755 = vmul.f32 0.5, %v754
  %v756 = vsub.f32 1.5, %v755
  %v757 = vmul.f32 %v752, %v756
  %vm758 = vweird.f32 %v741
  %vm759 = vweird.f32 %v752
  %vm760 = vmor %vm758, %vm759
  %v761 = vsel %vm760, %v752, %v757
  %v762 = vmul.f32 %v738, %v751
  %v763 = vmul.f32 %v739, %v761
  %v764 = vperm.slane %v762, 0
  %vm765 = vcmp.ge.f32.partialorder %v764, %v762
  %vm766 = vcmp.ge.f32.partialorder %v764, %v763
  %v767 = vsel %vm765, 1, 0
  %v768 = vsel %vm766, 1, 0
  %v769 = vcvt.s32.f32 %v767
  %v770 = vcvt.s32.f32 %v768
  %v771 = vadd.f32 %v769, 0.0
  %v772 = vadd.f32 %v770, 0.0
  %v773 = vmul.f32 %v769, %v764
  %v774 = vmul.f32 %v770, %v764
  %v775 = vadd.f32 %v773, 0.0
  %v776 = vadd.f32 %v774, 0.0
  %v777 = vperm.slane %v762, 1
  %vm778 = vcmp.ge.f32.partialorder %v777, %v762
  %vm779 = vcmp.ge.f32.partialorder %v777, %v763
  %v780 = vsel %vm778, 1, 0
  %v781 = vsel %vm779, 1, 0
  %v782 = vcvt.s32.f32 %v780
  %v783 = vcvt.s32.f32 %v781
  %v784 = vadd.f32 %v771, %v782
  %v785 = vadd.f32 %v772, %v783
  %v786 = vmul.f32 %v782, %v777
  %v787 = vmul.f32 %v783, %v777
  %v788 = vadd.f32 %v775, %v786
  %v789 = vadd.f32 %v776, %v787
  %v790 = vperm.slane %v762, 2
  %vm791 = vcmp.ge.f32.partialorder %v790, %v762
  %vm792 = vcmp.ge.f32.partialorder %v790, %v763
  %v793 = vsel %vm791, 1, 0
  %v794 = vsel %vm792, 1, 0
  %v795 = vcvt.s32.f32 %v793
  %v796 = vcvt.s32.f32 %v794
  %v797 = vadd.f32 %v784, %v795
  %v798 = vadd.f32 %v785, %v796
  %v799 = vmul.f32 %v795, %v790
  %v800 = vmul.f32 %v796, %v790
  %v801 = vadd.f32 %v788, %v799
  %v802 = vadd.f32 %v789, %v800
  %v803 = vperm.slane %v762, 3
  %vm804 = vcmp.ge.f32.partialorder %v803, %v762
  %vm805 = vcmp.ge.f32.partialorder %v803, %v763
  %v806 = vsel %vm804, 1, 0
  %v807 = vsel %vm805, 1, 0
  %v808 = vcvt.s32.f32 %v806
  %v809 = vcvt.s32.f32 %v807
  %v810 = vadd.f32 %v797, %v808
  %v811 = vadd.f32 %v798, %v809
  %v812 = vmul.f32 %v808, %v803
  %v813 = vmul.f32 %v809, %v803
  %v814 = vadd.f32 %v801, %v812
  %v815 = vadd.f32 %v802, %v813
  %v816 = vperm.slane %v762, 4
  %vm817 = vcmp.ge.f32.partialorder %v816, %v762
  %vm818 = vcmp.ge.f32.partialorder %v816, %v763
  %v819 = vsel %vm817, 1, 0
  %v820 = vsel %vm818, 1, 0
  %v821 = vcvt.s32.f32 %v819
  %v822 = vcvt.s32.f32 %v820
  %v823 = vadd.f32 %v810, %v821
  %v824 = vadd.f32 %v811, %v822
  %v825 = vmul.f32 %v821, %v816
  %v826 = vmul.f32 %v822, %v816
  %v827 = vadd.f32 %v814, %v825
  %v828 = vadd.f32 %v815, %v826
  %v829 = vperm.slane %v762, 5
  %vm830 = vcmp.ge.f32.partialorder %v829, %v762
  %vm831 = vcmp.ge.f32.partialorder %v829, %v763
  %v832 = vsel %vm830, 1, 0
  %v833 = vsel %vm831, 1, 0
  %v834 = vcvt.s32.f32 %v832
  %v835 = vcvt.s32.f32 %v833
  %v836 = vadd.f32 %v823, %v834
  %v837 = vadd.f32 %v824, %v835
  %v838 = vmul.f32 %v834, %v829
  %v839 = vmul.f32 %v835, %v829
  %v840 = vadd.f32 %v827, %v838
  %v841 = vadd.f32 %v828, %v839
  %v842 = vperm.slane %v762, 6
  %vm843 = vcmp.ge.f32.partialorder %v842, %v762
  %vm844 = vcmp.ge.f32.partialorder %v842, %v763
  %v845 = vsel %vm843, 1, 0
  %v846 = vsel %vm844, 1, 0
  %v847 = vcvt.s32.f32 %v845
  %v848 = vcvt.s32.f32 %v846
  %v849 = vadd.f32 %v836, %v847
  %v850 = vadd.f32 %v837, %v848
  %v851 = vmul.f32 %v847, %v842
  %v852 = vmul.f32 %v848, %v842
  %v853 = vadd.f32 %v840, %v851
  %v854 = vadd.f32 %v841, %v852
  %v855 = vperm.slane %v762, 7
  %vm856 = vcmp.ge.f32.partialorder %v855, %v762
  %vm857 = vcmp.ge.f32.partialorder %v855, %v763
  %v858 = vsel %vm856, 1, 0
  %v859 = vsel %vm857, 1, 0
  %v860 = vcvt.s32.f32 %v858
  %v861 = vcvt.s32.f32 %v859
  %v862 = vadd.f32 %v849, %v860
  %v863 = vadd.f32 %v850, %v861
  %v864 = vmul.f32 %v860, %v855
  %v865 = vmul.f32 %v861, %v855
  %v866 = vadd.f32 %v853, %v864
  %v867 = vadd.f32 %v854, %v865
  %v868 = vperm.slane %v763, 0
  %vm869 = vcmp.ge.f32.partialorder %v868, %v762
  %vm870 = vcmp.ge.f32.partialorder %v868, %v763
  %v871 = vsel %vm869, 1, 0
  %v872 = vsel %vm870, 1, 0
  %v873 = vcvt.s32.f32 %v871
  %v874 = vcvt.s32.f32 %v872
  %v875 = vadd.f32 %v862, %v873
  %v876 = vadd.f32 %v863, %v874
  %v877 = vmul.f32 %v873, %v868
  %v878 = vmul.f32 %v874, %v868
  %v879 = vadd.f32 %v866, %v877
  %v880 = vadd.f32 %v867, %v878
  %v881 = vperm.slane %v763, 1
  %vm882 = vcmp.ge.f32.partialorder %v881, %v762
  %vm883 = vcmp.ge.f32.partialorder %v881, %v763
  %v884 = vsel %vm882, 1, 0
  %v885 = vsel %vm883, 1, 0
  %v886 = vcvt.s32.f32 %v884
  %v887 = vcvt.s32.f32 %v885
  %v888 = vadd.f32 %v875, %v886
  %v889 = vadd.f32 %v876, %v887
  %v890 = vmul.f32 %v886, %v881
  %v891 = vmul.f32 %v887, %v881
  %v892 = vadd.f32 %v879, %v890
  %v893 = vadd.f32 %v880, %v891
  %v894 = vperm.slane %v763, 2
  %vm895 = vcmp.ge.f32.partialorder %v894, %v762
  %vm896 = vcmp.ge.f32.partialorder %v894, %v763
  %v897 = vsel %vm895, 1, 0
  %v898 = vsel %vm896, 1, 0
  %v899 = vcvt.s32.f32 %v897
  %v900 = vcvt.s32.f32 %v898
  %v901 = vadd.f32 %v888, %v899
  %v902 = vadd.f32 %v889, %v900
  %v903 = vmul.f32 %v899, %v894
  %v904 = vmul.f32 %v900, %v894
  %v905 = vadd.f32 %v892, %v903
  %v906 = vadd.f32 %v893, %v904
  %v907 = vperm.slane %v763, 3
  %vm908 = vcmp.ge.f32.partialorder %v907, %v762
  %vm909 = vcmp.ge.f32.partialorder %v907, %v763
  %v910 = vsel %vm908, 1, 0
  %v911 = vsel %vm909, 1, 0
  %v912 = vcvt.s32.f32 %v910
  %v913 = vcvt.s32.f32 %v911
  %v914 = vadd.f32 %v901, %v912
  %v915 = vadd.f32 %v902, %v913
  %v916 = vmul.f32 %v912, %v907
  %v917 = vmul.f32 %v913, %v907
  %v918 = vadd.f32 %v905, %v916
  %v919 = vadd.f32 %v906, %v917
  %v920 = vperm.slane %v763, 4
  %vm921 = vcmp.ge.f32.partialorder %v920, %v762
  %vm922 = vcmp.ge.f32.partialorder %v920, %v763
  %v923 = vsel %vm921, 1, 0
  %v924 = vsel %vm922, 1, 0
  %v925 = vcvt.s32.f32 %v923
  %v926 = vcvt.s32.f32 %v924
  %v927 = vadd.f32 %v914, %v925
  %v928 = vadd.f32 %v915, %v926
  %v929 = vmul.f32 %v925, %v920
  %v930 = vmul.f32 %v926, %v920
  %v931 = vadd.f32 %v918, %v929
  %v932 = vadd.f32 %v919, %v930
  %v933 = vperm.slane %v763, 5
  %vm934 = vcmp.ge.f32.partialorder %v933, %v762
  %vm935 = vcmp.ge.f32.partialorder %v933, %v763
  %v936 = vsel %vm934, 1, 0
  %v937 = vsel %vm935, 1, 0
  %v938 = vcvt.s32.f32 %v936
  %v939 = vcvt.s32.f32 %v937
  %v940 = vadd.f32 %v927, %v938
  %v941 = vadd.f32 %v928, %v939
  %v942 = vmul.f32 %v938, %v933
  %v943 = vmul.f32 %v939, %v933
  %v944 = vadd.f32 %v931, %v942
  %v945 = vadd.f32 %v932, %v943
  %v946 = vperm.slane %v763, 6
  %vm947 = vcmp.ge.f32.partialorder %v946, %v762
  %vm948 = vcmp.ge.f32.partialorder %v946, %v763
  %v949 = vsel %vm947, 1, 0
  %v950 = vsel %vm948, 1, 0
  %v951 = vcvt.s32.f32 %v949
  %v952 = vcvt.s32.f32 %v950
  %v953 = vadd.f32 %v940, %v951
  %v954 = vadd.f32 %v941, %v952
  %v955 = vmul.f32 %v951, %v946
  %v956 = vmul.f32 %v952, %v946
  %v957 = vadd.f32 %v944, %v955
  %v958 = vadd.f32 %v945, %v956
  %v959 = vperm.slane %v763, 7
  %vm960 = vcmp.ge.f32.partialorder %v959, %v762
  %vm961 = vcmp.ge.f32.partialorder %v959, %v763
  %v962 = vsel %vm960, 1, 0
  %v963 = vsel %vm961, 1, 0
  %v964 = vcvt.s32.f32 %v962
  %v965 = vcvt.s32.f32 %v963
  %v966 = vadd.f32 %v953, %v964
  %v967 = vadd.f32 %v954, %v965
  %v968 = vmul.f32 %v964, %v959
  %v969 = vmul.f32 %v965, %v959
  %v970 = vadd.f32 %v957, %v968
  %v971 = vadd.f32 %v958, %v969
  %v972 = vmul.f32 %v966, %v762
  %v973 = vmul.f32 %v967, %v763
  %v974 = vadd.f32 %v972, 1.0
  %v975 = vadd.f32 %v973, 1.0
  %vm976 = vcmp.gt.f32.partialorder %v974, %v970
  %vm977 = vcmp.gt.f32.partialorder %v975, %v971
  %v978 = vsel %vm976, 1, 0
  %v979 = vsel %vm977, 1, 0
  %v980 = vcvt.s32.f32 %v978
  %v981 = vcvt.s32.f32 %v979
  %v982 = vadd.f32 %v980, %v981
  %v983 = vrot.slane %v982, 4
  %v984 = vadd.f32 %v982, %v983
  %v985 = vrot.slane %v984, 2
  %v986 = vadd.f32 %v984, %v985
  %v987 = vrot.slane %v986, 1
  %v988 = vadd.f32 %v986, %v987
  %v989 = vmul.f32 %v980, %v762
  %v990 = vmul.f32 %v981, %v763
  %v991 = vadd.f32 %v989, %v990
  %v992 = vrot.slane %v991, 4
  %v993 = vadd.f32 %v991, %v992
  %v994 = vrot.slane %v993, 2
  %v995 = vadd.f32 %v993, %v994
  %v996 = vrot.slane %v995, 1
  %v997 = vadd.f32 %v995, %v996
  %v998 = vsub.f32 %v997, 1.0
  %v999 = vrcp.pop %v988
  %v1000 = vmul.f32 %v988, %v999
  %v1001 = vsub.f32 1.0, %v1000
  %v1002 = vmul.f32 %v999, %v1001
  %v1003 = vadd.f32 %v999, %v1002
  %vm1004 = vweird.f32 %v988
  %vm1005 = vweird.f32 %v999
  %vm1006 = vmor %vm1004, %vm1005
  %v1007 = vsel %vm1006, %v999, %v1003
  %v1008 = vand.u32 2147483647, %v988
  %vm1009 = vcmp.eq.f32.partialorder %v1008, 8.507059e+37
  %v1010 = vand.u32 %v988, 2147483648
  %v1011 = vor.u32 1.1754944e-38, %v1010
  %v1012 = vsel %vm1009, %v1011, %v1007
  %v1013 = vmul.f32 %v998, %v1012
  %v1014 = vsub.f32 %v762, %v1013
  %v1015 = vsub.f32 %v763, %v1013
  %v1016 = vmax.f32 %v1014, 0.0
  %v1017 = vmax.f32 %v1015, 0.0
  %v1018 = vadd.f32 %v1016, 1e-15
  %v1019 = vadd.f32 %v1017, 1e-15
  %v1020 = vlog2.pop %v1018
  %v1021 = vmul.f32 %v1020, 0.6931472
  %v1022 = vlog2.pop %v1019
  %v1023 = vmul.f32 %v1022, 0.6931472
  %v1024 = vmul.f32 %v1016, %v1021
  %v1025 = vmul.f32 %v1017, %v1023
  %v1026 = vadd.f32 %v1024, %v1025
  %v1027 = vrot.slane %v1026, 4
  %v1028 = vadd.f32 %v1026, %v1027
  %v1029 = vrot.slane %v1028, 2
  %v1030 = vadd.f32 %v1028, %v1029
  %v1031 = vrot.slane %v1030, 1
  %v1032 = vadd.f32 %v1030, %v1031
  %v1033 = vadd.f32 %v1032, 0.0
  %v1034 = vsub.f32 1.3, %v1016
  %v1035 = vsub.f32 1.3, %v1017
  %v1036 = vmul.f32 %v1016, %v47
  %v1037 = vmul.f32 %v1017, %v48
  %1038 = vmatpush.msra.mxu0 0.0
  %1039 = vmatpush.msra.mxu0 0.0
  %1040 = vmatpush.msra.mxu0 0.0
  %1041 = vmatpush.msra.mxu0 0.0
  %1042 = vmatpush.msra.mxu0 0.0
  %1043 = vmatpush.msra.mxu0 0.0
  %1044 = vmatpush.msra.mxu0 0.0
  %1045 = vmatpush.msra.mxu0 0.0
  %1046 = vmatpush.msra.mxu0 0.0
  %1047 = vmatpush.msra.mxu0 0.0
  %1048 = vmatpush.msra.mxu0 0.0
  %1049 = vmatpush.msra.mxu0 0.0
  %1050 = vmatpush.msra.mxu0 0.0
  %1051 = vmatpush.msra.mxu0 0.0
  %1052 = vmatpush.msra.mxu0 %v1037
  %1053 = vmatpush.msra.mxu0 %v1036
  %1054 = vmatmul.f32.gmra.mxu0 %v55
  %v1055 = vpop.f32.mrf.mxu0
  %v1056 = vadd.f32 0.0, %v1055
  %1057 = vmatmul.f32.gmra.mxu0 %v58
  %v1058 = vpop.f32.mrf.mxu0
  %v1059 = vadd.f32 0.0, %v1058
  %1060 = vmatmul.f32.gmra.mxu0 %v61
  %v1061 = vpop.f32.mrf.mxu0
  %v1062 = vadd.f32 0.0, %v1061
  %1063 = vmatmul.f32.gmra.mxu0 %v64
  %v1064 = vpop.f32.mrf.mxu0
  %v1065 = vadd.f32 0.0, %v1064
  %1066 = vdwg.mxu0
  %1067 = vadd.xlane.f32.xlu0 %v1056
  %v1068 = vpop.xlane.xlu0 %1067
  %1069 = vadd.xlane.f32.xlu0 %v1059
  %v1070 = vpop.xlane.xlu0 %1069
  %1071 = vadd.xlane.f32.xlu0 %v1062
  %v1072 = vpop.xlane.xlu0 %1071
  %1073 = vadd.xlane.f32.xlu0 %v1065
  %v1074 = vpop.xlane.xlu0 %1073
  %v1075 = vmul.f32 %v1056, %v1056
  %v1076 = vmul.f32 %v1059, %v1059
  %v1077 = vmul.f32 %v1062, %v1062
  %v1078 = vmul.f32 %v1065, %v1065
  %1079 = vadd.xlane.f32.xlu0 %v1075
  %v1080 = vpop.xlane.xlu0 %1079
  %1081 = vadd.xlane.f32.xlu0 %v1076
  %v1082 = vpop.xlane.xlu0 %1081
  %1083 = vadd.xlane.f32.xlu0 %v1077
  %v1084 = vpop.xlane.xlu0 %1083
  %1085 = vadd.xlane.f32.xlu0 %v1078
  %v1086 = vpop.xlane.xlu0 %1085
  %v1087 = vmul.f32 %v1068, 0.0078125
  %v1088 = vmul.f32 %v1070, 0.0078125
  %v1089 = vmul.f32 %v1072, 0.0078125
  %v1090 = vmul.f32 %v1074, 0.0078125
  %v1091 = vmul.f32 %v1080, 0.0078125
  %v1092 = vmul.f32 %v1082, 0.0078125
  %v1093 = vmul.f32 %v1084, 0.0078125
  %v1094 = vmul.f32 %v1086, 0.0078125
  %v1095 = vmul.f32 %v1087, %v1087
  %v1096 = vmul.f32 %v1088, %v1088
  %v1097 = vmul.f32 %v1089, %v1089
  %v1098 = vmul.f32 %v1090, %v1090
  %v1099 = vsub.f32 %v1091, %v1095
  %v1100 = vsub.f32 %v1092, %v1096
  %v1101 = vsub.f32 %v1093, %v1097
  %v1102 = vsub.f32 %v1094, %v1098
  %v1103 = vsub.f32 %v1056, %v1087
  %v1104 = vsub.f32 %v1059, %v1088
  %v1105 = vsub.f32 %v1062, %v1089
  %v1106 = vsub.f32 %v1065, %v1090
  %v1107 = vadd.f32 %v1099, 1e-05
  %v1108 = vadd.f32 %v1100, 1e-05
  %v1109 = vadd.f32 %v1101, 1e-05
  %v1110 = vadd.f32 %v1102, 1e-05
  %v1111 = vrsqrt.pop %v1107
  %v1112 = vmul.f32 %v1111, %v1107
  %v1113 = vmul.f32 %v1112, %v1111
  %v1114 = vmul.f32 0.5, %v1113
  %v1115 = vsub.f32 1.5, %v1114
  %v1116 = vmul.f32 %v1111, %v1115
  %vm1117 = vweird.f32 %v1107
  %vm1118 = vweird.f32 %v1111
  %vm1119 = vmor %vm1117, %vm1118
  %v1120 = vsel %vm1119, %v1111, %v1116
  %v1121 = vrsqrt.pop %v1108
  %v1122 = vmul.f32 %v1121, %v1108
  %v1123 = vmul.f32 %v1122, %v1121
  %v1124 = vmul.f32 0.5, %v1123
  %v1125 = vsub.f32 1.5, %v1124
  %v1126 = vmul.f32 %v1121, %v1125
  %vm1127 = vweird.f32 %v1108
  %vm1128 = vweird.f32 %v1121
  %vm1129 = vmor %vm1127, %vm1128
  %v1130 = vsel %vm1129, %v1121, %v1126
  %v1131 = vrsqrt.pop %v1109
  %v1132 = vmul.f32 %v1131, %v1109
  %v1133 = vmul.f32 %v1132, %v1131
  %v1134 = vmul.f32 0.5, %v1133
  %v1135 = vsub.f32 1.5, %v1134
  %v1136 = vmul.f32 %v1131, %v1135
  %vm1137 = vweird.f32 %v1109
  %vm1138 = vweird.f32 %v1131
  %vm1139 = vmor %vm1137, %vm1138
  %v1140 = vsel %vm1139, %v1131, %v1136
  %v1141 = vrsqrt.pop %v1110
  %v1142 = vmul.f32 %v1141, %v1110
  %v1143 = vmul.f32 %v1142, %v1141
  %v1144 = vmul.f32 0.5, %v1143
  %v1145 = vsub.f32 1.5, %v1144
  %v1146 = vmul.f32 %v1141, %v1145
  %vm1147 = vweird.f32 %v1110
  %vm1148 = vweird.f32 %v1141
  %vm1149 = vmor %vm1147, %vm1148
  %v1150 = vsel %vm1149, %v1141, %v1146
  %v1151 = vmul.f32 %v1103, %v1120
  %v1152 = vmul.f32 %v1104, %v1130
  %v1153 = vmul.f32 %v1105, %v1140
  %v1154 = vmul.f32 %v1106, %v1150
  %v1155 = vxor.u32 %v1153, 2147483648
  %v1156 = vxor.u32 %v1154, 2147483648
  %v1157 = vmul.f32 %v1155, 1.442695
  %v1158 = vpow.pop %v1157
  %v1159 = vmul.f32 %v1156, 1.442695
  %v1160 = vpow.pop %v1159
  %v1161 = vadd.f32 %v1158, 1.0
  %v1162 = vadd.f32 %v1160, 1.0
  %v1163 = vrcp.pop %v1161
  %v1164 = vmul.f32 %v1161, %v1163
  %v1165 = vsub.f32 1.0, %v1164
  %v1166 = vmul.f32 %v1163, %v1165
  %v1167 = vadd.f32 %v1163, %v1166
  %vm1168 = vweird.f32 %v1161
  %vm1169 = vweird.f32 %v1163
  %vm1170 = vmor %vm1168, %vm1169
  %v1171 = vsel %vm1170, %v1163, %v1167
  %v1172 = vand.u32 2147483647, %v1161
  %vm1173 = vcmp.eq.f32.partialorder %v1172, 8.507059e+37
  %v1174 = vand.u32 %v1161, 2147483648
  %v1175 = vor.u32 1.1754944e-38, %v1174
  %v1176 = vsel %vm1173, %v1175, %v1171
  %v1177 = vmul.f32 1.0, %v1176
  %v1178 = vrcp.pop %v1162
  %v1179 = vmul.f32 %v1162, %v1178
  %v1180 = vsub.f32 1.0, %v1179
  %v1181 = vmul.f32 %v1178, %v1180
  %v1182 = vadd.f32 %v1178, %v1181
  %vm1183 = vweird.f32 %v1162
  %vm1184 = vweird.f32 %v1178
  %vm1185 = vmor %vm1183, %vm1184
  %v1186 = vsel %vm1185, %v1178, %v1182
  %v1187 = vand.u32 2147483647, %v1162
  %vm1188 = vcmp.eq.f32.partialorder %v1187, 8.507059e+37
  %v1189 = vand.u32 %v1162, 2147483648
  %v1190 = vor.u32 1.1754944e-38, %v1189
  %v1191 = vsel %vm1188, %v1190, %v1186
  %v1192 = vmul.f32 1.0, %v1191
  %v1193 = vmul.f32 %v1151, %v1177
  %v1194 = vmul.f32 %v1152, %v1192
  %1195 = vmatpush.msra.mxu0 0.0
  %1196 = vmatpush.msra.mxu0 0.0
  %1197 = vmatpush.msra.mxu0 0.0
  %1198 = vmatpush.msra.mxu0 0.0
  %1199 = vmatpush.msra.mxu0 0.0
  %1200 = vmatpush.msra.mxu0 0.0
  %1201 = vmatpush.msra.mxu0 0.0
  %1202 = vmatpush.msra.mxu0 0.0
  %1203 = vmatpush.msra.mxu0 0.0
  %1204 = vmatpush.msra.mxu0 0.0
  %1205 = vmatpush.msra.mxu0 0.0
  %1206 = vmatpush.msra.mxu0 0.0
  %1207 = vmatpush.msra.mxu0 0.0
  %1208 = vmatpush.msra.mxu0 0.0
  %1209 = vmatpush.msra.mxu0 %v1194
  %1210 = vmatpush.msra.mxu0 %v1193
  %1211 = vmatmul.f32.gmra.mxu0 %v228
  %v1212 = vpop.f32.mrf.mxu0
  %v1213 = vadd.f32 0.0, %v1212
  %1214 = vmatmul.f32.gmra.mxu0 %v231
  %v1215 = vpop.f32.mrf.mxu0
  %v1216 = vadd.f32 0.0, %v1215
  %1217 = vmatmul.f32.gmra.mxu0 %v234
  %v1218 = vpop.f32.mrf.mxu0
  %v1219 = vadd.f32 0.0, %v1218
  %1220 = vmatmul.f32.gmra.mxu0 %v237
  %v1221 = vpop.f32.mrf.mxu0
  %v1222 = vadd.f32 0.0, %v1221
  %1223 = vdwg.mxu0
  %1224 = vadd.xlane.f32.xlu0 %v1213
  %v1225 = vpop.xlane.xlu0 %1224
  %1226 = vadd.xlane.f32.xlu0 %v1216
  %v1227 = vpop.xlane.xlu0 %1226
  %1228 = vadd.xlane.f32.xlu0 %v1219
  %v1229 = vpop.xlane.xlu0 %1228
  %1230 = vadd.xlane.f32.xlu0 %v1222
  %v1231 = vpop.xlane.xlu0 %1230
  %v1232 = vmul.f32 %v1213, %v1213
  %v1233 = vmul.f32 %v1216, %v1216
  %v1234 = vmul.f32 %v1219, %v1219
  %v1235 = vmul.f32 %v1222, %v1222
  %1236 = vadd.xlane.f32.xlu0 %v1232
  %v1237 = vpop.xlane.xlu0 %1236
  %1238 = vadd.xlane.f32.xlu0 %v1233
  %v1239 = vpop.xlane.xlu0 %1238
  %1240 = vadd.xlane.f32.xlu0 %v1234
  %v1241 = vpop.xlane.xlu0 %1240
  %1242 = vadd.xlane.f32.xlu0 %v1235
  %v1243 = vpop.xlane.xlu0 %1242
  %v1244 = vmul.f32 %v1225, 0.0078125
  %v1245 = vmul.f32 %v1227, 0.0078125
  %v1246 = vmul.f32 %v1229, 0.0078125
  %v1247 = vmul.f32 %v1231, 0.0078125
  %v1248 = vmul.f32 %v1237, 0.0078125
  %v1249 = vmul.f32 %v1239, 0.0078125
  %v1250 = vmul.f32 %v1241, 0.0078125
  %v1251 = vmul.f32 %v1243, 0.0078125
  %v1252 = vmul.f32 %v1244, %v1244
  %v1253 = vmul.f32 %v1245, %v1245
  %v1254 = vmul.f32 %v1246, %v1246
  %v1255 = vmul.f32 %v1247, %v1247
  %v1256 = vsub.f32 %v1248, %v1252
  %v1257 = vsub.f32 %v1249, %v1253
  %v1258 = vsub.f32 %v1250, %v1254
  %v1259 = vsub.f32 %v1251, %v1255
  %v1260 = vsub.f32 %v1213, %v1244
  %v1261 = vsub.f32 %v1216, %v1245
  %v1262 = vsub.f32 %v1219, %v1246
  %v1263 = vsub.f32 %v1222, %v1247
  %v1264 = vadd.f32 %v1256, 1e-05
  %v1265 = vadd.f32 %v1257, 1e-05
  %v1266 = vadd.f32 %v1258, 1e-05
  %v1267 = vadd.f32 %v1259, 1e-05
  %v1268 = vrsqrt.pop %v1264
  %v1269 = vmul.f32 %v1268, %v1264
  %v1270 = vmul.f32 %v1269, %v1268
  %v1271 = vmul.f32 0.5, %v1270
  %v1272 = vsub.f32 1.5, %v1271
  %v1273 = vmul.f32 %v1268, %v1272
  %vm1274 = vweird.f32 %v1264
  %vm1275 = vweird.f32 %v1268
  %vm1276 = vmor %vm1274, %vm1275
  %v1277 = vsel %vm1276, %v1268, %v1273
  %v1278 = vrsqrt.pop %v1265
  %v1279 = vmul.f32 %v1278, %v1265
  %v1280 = vmul.f32 %v1279, %v1278
  %v1281 = vmul.f32 0.5, %v1280
  %v1282 = vsub.f32 1.5, %v1281
  %v1283 = vmul.f32 %v1278, %v1282
  %vm1284 = vweird.f32 %v1265
  %vm1285 = vweird.f32 %v1278
  %vm1286 = vmor %vm1284, %vm1285
  %v1287 = vsel %vm1286, %v1278, %v1283
  %v1288 = vrsqrt.pop %v1266
  %v1289 = vmul.f32 %v1288, %v1266
  %v1290 = vmul.f32 %v1289, %v1288
  %v1291 = vmul.f32 0.5, %v1290
  %v1292 = vsub.f32 1.5, %v1291
  %v1293 = vmul.f32 %v1288, %v1292
  %vm1294 = vweird.f32 %v1266
  %vm1295 = vweird.f32 %v1288
  %vm1296 = vmor %vm1294, %vm1295
  %v1297 = vsel %vm1296, %v1288, %v1293
  %v1298 = vrsqrt.pop %v1267
  %v1299 = vmul.f32 %v1298, %v1267
  %v1300 = vmul.f32 %v1299, %v1298
  %v1301 = vmul.f32 0.5, %v1300
  %v1302 = vsub.f32 1.5, %v1301
  %v1303 = vmul.f32 %v1298, %v1302
  %vm1304 = vweird.f32 %v1267
  %vm1305 = vweird.f32 %v1298
  %vm1306 = vmor %vm1304, %vm1305
  %v1307 = vsel %vm1306, %v1298, %v1303
  %v1308 = vmul.f32 %v1260, %v1277
  %v1309 = vmul.f32 %v1261, %v1287
  %v1310 = vmul.f32 %v1262, %v1297
  %v1311 = vmul.f32 %v1263, %v1307
  %v1312 = vxor.u32 %v1310, 2147483648
  %v1313 = vxor.u32 %v1311, 2147483648
  %v1314 = vmul.f32 %v1312, 1.442695
  %v1315 = vpow.pop %v1314
  %v1316 = vmul.f32 %v1313, 1.442695
  %v1317 = vpow.pop %v1316
  %v1318 = vadd.f32 %v1315, 1.0
  %v1319 = vadd.f32 %v1317, 1.0
  %v1320 = vrcp.pop %v1318
  %v1321 = vmul.f32 %v1318, %v1320
  %v1322 = vsub.f32 1.0, %v1321
  %v1323 = vmul.f32 %v1320, %v1322
  %v1324 = vadd.f32 %v1320, %v1323
  %vm1325 = vweird.f32 %v1318
  %vm1326 = vweird.f32 %v1320
  %vm1327 = vmor %vm1325, %vm1326
  %v1328 = vsel %vm1327, %v1320, %v1324
  %v1329 = vand.u32 2147483647, %v1318
  %vm1330 = vcmp.eq.f32.partialorder %v1329, 8.507059e+37
  %v1331 = vand.u32 %v1318, 2147483648
  %v1332 = vor.u32 1.1754944e-38, %v1331
  %v1333 = vsel %vm1330, %v1332, %v1328
  %v1334 = vmul.f32 1.0, %v1333
  %v1335 = vrcp.pop %v1319
  %v1336 = vmul.f32 %v1319, %v1335
  %v1337 = vsub.f32 1.0, %v1336
  %v1338 = vmul.f32 %v1335, %v1337
  %v1339 = vadd.f32 %v1335, %v1338
  %vm1340 = vweird.f32 %v1319
  %vm1341 = vweird.f32 %v1335
  %vm1342 = vmor %vm1340, %vm1341
  %v1343 = vsel %vm1342, %v1335, %v1339
  %v1344 = vand.u32 2147483647, %v1319
  %vm1345 = vcmp.eq.f32.partialorder %v1344, 8.507059e+37
  %v1346 = vand.u32 %v1319, 2147483648
  %v1347 = vor.u32 1.1754944e-38, %v1346
  %v1348 = vsel %vm1345, %v1347, %v1343
  %v1349 = vmul.f32 1.0, %v1348
  %v1350 = vmul.f32 %v1308, %v1334
  %v1351 = vmul.f32 %v1309, %v1349
  %v1352 = vadd.f32 %v1193, %v1350
  %v1353 = vadd.f32 %v1194, %v1351
  %v1354 = vmul.f32 %v1352, 0.70710677
  %v1355 = vmul.f32 %v1353, 0.70710677
  %s1356 = scalar_lea.vmem %s3, 96
  %v1357 = vld [vmem:[%s1356] sm:$0xff]
  %v1358 = vld [vmem:[%s1356 + $0x8] sm:$0xff]
  %v1359 = vld [vmem:[%s1356 + $0x10] sm:$0xff]
  %v1360 = vld [vmem:[%s1356 + $0x18] sm:$0xff]
  %v1362 = vsel %vm53, %v1357, 0
  %v1365 = vsel %vm53, %v1358, 0
  %v1368 = vsel %vm53, %v1359, 0
  %v1371 = vsel %vm53, %v1360, 0
  %1373 = vmatpush.msra.mxu0 0.0
  %1374 = vmatpush.msra.mxu0 0.0
  %1375 = vmatpush.msra.mxu0 0.0
  %1376 = vmatpush.msra.mxu0 0.0
  %1377 = vmatpush.msra.mxu0 0.0
  %1378 = vmatpush.msra.mxu0 0.0
  %1379 = vmatpush.msra.mxu0 0.0
  %1380 = vmatpush.msra.mxu0 0.0
  %1381 = vmatpush.msra.mxu0 0.0
  %1382 = vmatpush.msra.mxu0 0.0
  %1383 = vmatpush.msra.mxu0 0.0
  %1384 = vmatpush.msra.mxu0 0.0
  %1385 = vmatpush.msra.mxu0 0.0
  %1386 = vmatpush.msra.mxu0 0.0
  %1387 = vmatpush.msra.mxu0 %v1355
  %1388 = vmatpush.msra.mxu0 %v1354
  %1389 = vmatmul.f32.gmra.mxu0 %v1362
  %v1390 = vpop.f32.mrf.mxu0
  %v1391 = vadd.f32 0.0, %v1390
  %1392 = vmatmul.f32.gmra.mxu0 %v1365
  %v1393 = vpop.f32.mrf.mxu0
  %v1394 = vadd.f32 0.0, %v1393
  %1395 = vmatmul.f32.gmra.mxu0 %v1368
  %v1396 = vpop.f32.mrf.mxu0
  %v1397 = vadd.f32 0.0, %v1396
  %1398 = vmatmul.f32.gmra.mxu0 %v1371
  %v1399 = vpop.f32.mrf.mxu0
  %v1400 = vadd.f32 0.0, %v1399
  %1401 = vdwg.mxu0
  %1402 = vadd.xlane.f32.xlu0 %v1391
  %v1403 = vpop.xlane.xlu0 %1402
  %1404 = vadd.xlane.f32.xlu0 %v1394
  %v1405 = vpop.xlane.xlu0 %1404
  %1406 = vadd.xlane.f32.xlu0 %v1397
  %v1407 = vpop.xlane.xlu0 %1406
  %1408 = vadd.xlane.f32.xlu0 %v1400
  %v1409 = vpop.xlane.xlu0 %1408
  %v1410 = vmul.f32 %v1391, %v1391
  %v1411 = vmul.f32 %v1394, %v1394
  %v1412 = vmul.f32 %v1397, %v1397
  %v1413 = vmul.f32 %v1400, %v1400
  %1414 = vadd.xlane.f32.xlu0 %v1410
  %v1415 = vpop.xlane.xlu0 %1414
  %1416 = vadd.xlane.f32.xlu0 %v1411
  %v1417 = vpop.xlane.xlu0 %1416
  %1418 = vadd.xlane.f32.xlu0 %v1412
  %v1419 = vpop.xlane.xlu0 %1418
  %1420 = vadd.xlane.f32.xlu0 %v1413
  %v1421 = vpop.xlane.xlu0 %1420
  %v1422 = vmul.f32 %v1403, 0.0078125
  %v1423 = vmul.f32 %v1405, 0.0078125
  %v1424 = vmul.f32 %v1407, 0.0078125
  %v1425 = vmul.f32 %v1409, 0.0078125
  %v1426 = vmul.f32 %v1415, 0.0078125
  %v1427 = vmul.f32 %v1417, 0.0078125
  %v1428 = vmul.f32 %v1419, 0.0078125
  %v1429 = vmul.f32 %v1421, 0.0078125
  %v1430 = vmul.f32 %v1422, %v1422
  %v1431 = vmul.f32 %v1423, %v1423
  %v1432 = vmul.f32 %v1424, %v1424
  %v1433 = vmul.f32 %v1425, %v1425
  %v1434 = vsub.f32 %v1426, %v1430
  %v1435 = vsub.f32 %v1427, %v1431
  %v1436 = vsub.f32 %v1428, %v1432
  %v1437 = vsub.f32 %v1429, %v1433
  %v1438 = vsub.f32 %v1391, %v1422
  %v1439 = vsub.f32 %v1394, %v1423
  %v1440 = vsub.f32 %v1397, %v1424
  %v1441 = vsub.f32 %v1400, %v1425
  %v1442 = vadd.f32 %v1434, 1e-05
  %v1443 = vadd.f32 %v1435, 1e-05
  %v1444 = vadd.f32 %v1436, 1e-05
  %v1445 = vadd.f32 %v1437, 1e-05
  %v1446 = vrsqrt.pop %v1442
  %v1447 = vmul.f32 %v1446, %v1442
  %v1448 = vmul.f32 %v1447, %v1446
  %v1449 = vmul.f32 0.5, %v1448
  %v1450 = vsub.f32 1.5, %v1449
  %v1451 = vmul.f32 %v1446, %v1450
  %vm1452 = vweird.f32 %v1442
  %vm1453 = vweird.f32 %v1446
  %vm1454 = vmor %vm1452, %vm1453
  %v1455 = vsel %vm1454, %v1446, %v1451
  %v1456 = vrsqrt.pop %v1443
  %v1457 = vmul.f32 %v1456, %v1443
  %v1458 = vmul.f32 %v1457, %v1456
  %v1459 = vmul.f32 0.5, %v1458
  %v1460 = vsub.f32 1.5, %v1459
  %v1461 = vmul.f32 %v1456, %v1460
  %vm1462 = vweird.f32 %v1443
  %vm1463 = vweird.f32 %v1456
  %vm1464 = vmor %vm1462, %vm1463
  %v1465 = vsel %vm1464, %v1456, %v1461
  %v1466 = vrsqrt.pop %v1444
  %v1467 = vmul.f32 %v1466, %v1444
  %v1468 = vmul.f32 %v1467, %v1466
  %v1469 = vmul.f32 0.5, %v1468
  %v1470 = vsub.f32 1.5, %v1469
  %v1471 = vmul.f32 %v1466, %v1470
  %vm1472 = vweird.f32 %v1444
  %vm1473 = vweird.f32 %v1466
  %vm1474 = vmor %vm1472, %vm1473
  %v1475 = vsel %vm1474, %v1466, %v1471
  %v1476 = vrsqrt.pop %v1445
  %v1477 = vmul.f32 %v1476, %v1445
  %v1478 = vmul.f32 %v1477, %v1476
  %v1479 = vmul.f32 0.5, %v1478
  %v1480 = vsub.f32 1.5, %v1479
  %v1481 = vmul.f32 %v1476, %v1480
  %vm1482 = vweird.f32 %v1445
  %vm1483 = vweird.f32 %v1476
  %vm1484 = vmor %vm1482, %vm1483
  %v1485 = vsel %vm1484, %v1476, %v1481
  %v1486 = vmul.f32 %v1438, %v1455
  %v1487 = vmul.f32 %v1439, %v1465
  %v1488 = vmul.f32 %v1440, %v1475
  %v1489 = vmul.f32 %v1441, %v1485
  %v1490 = vxor.u32 %v1488, 2147483648
  %v1491 = vxor.u32 %v1489, 2147483648
  %v1492 = vmul.f32 %v1490, 1.442695
  %v1493 = vpow.pop %v1492
  %v1494 = vmul.f32 %v1491, 1.442695
  %v1495 = vpow.pop %v1494
  %v1496 = vadd.f32 %v1493, 1.0
  %v1497 = vadd.f32 %v1495, 1.0
  %v1498 = vrcp.pop %v1496
  %v1499 = vmul.f32 %v1496, %v1498
  %v1500 = vsub.f32 1.0, %v1499
  %v1501 = vmul.f32 %v1498, %v1500
  %v1502 = vadd.f32 %v1498, %v1501
  %vm1503 = vweird.f32 %v1496
  %vm1504 = vweird.f32 %v1498
  %vm1505 = vmor %vm1503, %vm1504
  %v1506 = vsel %vm1505, %v1498, %v1502
  %v1507 = vand.u32 2147483647, %v1496
  %vm1508 = vcmp.eq.f32.partialorder %v1507, 8.507059e+37
  %v1509 = vand.u32 %v1496, 2147483648
  %v1510 = vor.u32 1.1754944e-38, %v1509
  %v1511 = vsel %vm1508, %v1510, %v1506
  %v1512 = vmul.f32 1.0, %v1511
  %v1513 = vrcp.pop %v1497
  %v1514 = vmul.f32 %v1497, %v1513
  %v1515 = vsub.f32 1.0, %v1514
  %v1516 = vmul.f32 %v1513, %v1515
  %v1517 = vadd.f32 %v1513, %v1516
  %vm1518 = vweird.f32 %v1497
  %vm1519 = vweird.f32 %v1513
  %vm1520 = vmor %vm1518, %vm1519
  %v1521 = vsel %vm1520, %v1513, %v1517
  %v1522 = vand.u32 2147483647, %v1497
  %vm1523 = vcmp.eq.f32.partialorder %v1522, 8.507059e+37
  %v1524 = vand.u32 %v1497, 2147483648
  %v1525 = vor.u32 1.1754944e-38, %v1524
  %v1526 = vsel %vm1523, %v1525, %v1521
  %v1527 = vmul.f32 1.0, %v1526
  %v1528 = vmul.f32 %v1486, %v1512
  %v1529 = vmul.f32 %v1487, %v1527
  %v1530 = vadd.f32 %v1354, %v1528
  %v1531 = vadd.f32 %v1355, %v1529
  %v1532 = vmul.f32 %v1530, 0.70710677
  %v1533 = vmul.f32 %v1531, 0.70710677
  %s1534 = scalar_lea.vmem %s3, 128
  %v1535 = vld [vmem:[%s1534] sm:$0xff]
  %v1536 = vld [vmem:[%s1534 + $0x8] sm:$0xff]
  %v1537 = vld [vmem:[%s1534 + $0x10] sm:$0xff]
  %v1538 = vld [vmem:[%s1534 + $0x18] sm:$0xff]
  %v1540 = vsel %vm53, %v1535, 0
  %v1543 = vsel %vm53, %v1536, 0
  %v1546 = vsel %vm53, %v1537, 0
  %v1549 = vsel %vm53, %v1538, 0
  %1551 = vmatpush.msra.mxu0 0.0
  %1552 = vmatpush.msra.mxu0 0.0
  %1553 = vmatpush.msra.mxu0 0.0
  %1554 = vmatpush.msra.mxu0 0.0
  %1555 = vmatpush.msra.mxu0 0.0
  %1556 = vmatpush.msra.mxu0 0.0
  %1557 = vmatpush.msra.mxu0 0.0
  %1558 = vmatpush.msra.mxu0 0.0
  %1559 = vmatpush.msra.mxu0 0.0
  %1560 = vmatpush.msra.mxu0 0.0
  %1561 = vmatpush.msra.mxu0 0.0
  %1562 = vmatpush.msra.mxu0 0.0
  %1563 = vmatpush.msra.mxu0 0.0
  %1564 = vmatpush.msra.mxu0 0.0
  %1565 = vmatpush.msra.mxu0 %v1533
  %1566 = vmatpush.msra.mxu0 %v1532
  %1567 = vmatmul.f32.gmra.mxu0 %v1540
  %v1568 = vpop.f32.mrf.mxu0
  %v1569 = vadd.f32 0.0, %v1568
  %1570 = vmatmul.f32.gmra.mxu0 %v1543
  %v1571 = vpop.f32.mrf.mxu0
  %v1572 = vadd.f32 0.0, %v1571
  %1573 = vmatmul.f32.gmra.mxu0 %v1546
  %v1574 = vpop.f32.mrf.mxu0
  %v1575 = vadd.f32 0.0, %v1574
  %1576 = vmatmul.f32.gmra.mxu0 %v1549
  %v1577 = vpop.f32.mrf.mxu0
  %v1578 = vadd.f32 0.0, %v1577
  %1579 = vdwg.mxu0
  %1580 = vadd.xlane.f32.xlu0 %v1569
  %v1581 = vpop.xlane.xlu0 %1580
  %1582 = vadd.xlane.f32.xlu0 %v1572
  %v1583 = vpop.xlane.xlu0 %1582
  %1584 = vadd.xlane.f32.xlu0 %v1575
  %v1585 = vpop.xlane.xlu0 %1584
  %1586 = vadd.xlane.f32.xlu0 %v1578
  %v1587 = vpop.xlane.xlu0 %1586
  %v1588 = vmul.f32 %v1569, %v1569
  %v1589 = vmul.f32 %v1572, %v1572
  %v1590 = vmul.f32 %v1575, %v1575
  %v1591 = vmul.f32 %v1578, %v1578
  %1592 = vadd.xlane.f32.xlu0 %v1588
  %v1593 = vpop.xlane.xlu0 %1592
  %1594 = vadd.xlane.f32.xlu0 %v1589
  %v1595 = vpop.xlane.xlu0 %1594
  %1596 = vadd.xlane.f32.xlu0 %v1590
  %v1597 = vpop.xlane.xlu0 %1596
  %1598 = vadd.xlane.f32.xlu0 %v1591
  %v1599 = vpop.xlane.xlu0 %1598
  %v1600 = vmul.f32 %v1581, 0.0078125
  %v1601 = vmul.f32 %v1583, 0.0078125
  %v1602 = vmul.f32 %v1585, 0.0078125
  %v1603 = vmul.f32 %v1587, 0.0078125
  %v1604 = vmul.f32 %v1593, 0.0078125
  %v1605 = vmul.f32 %v1595, 0.0078125
  %v1606 = vmul.f32 %v1597, 0.0078125
  %v1607 = vmul.f32 %v1599, 0.0078125
  %v1608 = vmul.f32 %v1600, %v1600
  %v1609 = vmul.f32 %v1601, %v1601
  %v1610 = vmul.f32 %v1602, %v1602
  %v1611 = vmul.f32 %v1603, %v1603
  %v1612 = vsub.f32 %v1604, %v1608
  %v1613 = vsub.f32 %v1605, %v1609
  %v1614 = vsub.f32 %v1606, %v1610
  %v1615 = vsub.f32 %v1607, %v1611
  %v1616 = vsub.f32 %v1569, %v1600
  %v1617 = vsub.f32 %v1572, %v1601
  %v1618 = vsub.f32 %v1575, %v1602
  %v1619 = vsub.f32 %v1578, %v1603
  %v1620 = vadd.f32 %v1612, 1e-05
  %v1621 = vadd.f32 %v1613, 1e-05
  %v1622 = vadd.f32 %v1614, 1e-05
  %v1623 = vadd.f32 %v1615, 1e-05
  %v1624 = vrsqrt.pop %v1620
  %v1625 = vmul.f32 %v1624, %v1620
  %v1626 = vmul.f32 %v1625, %v1624
  %v1627 = vmul.f32 0.5, %v1626
  %v1628 = vsub.f32 1.5, %v1627
  %v1629 = vmul.f32 %v1624, %v1628
  %vm1630 = vweird.f32 %v1620
  %vm1631 = vweird.f32 %v1624
  %vm1632 = vmor %vm1630, %vm1631
  %v1633 = vsel %vm1632, %v1624, %v1629
  %v1634 = vrsqrt.pop %v1621
  %v1635 = vmul.f32 %v1634, %v1621
  %v1636 = vmul.f32 %v1635, %v1634
  %v1637 = vmul.f32 0.5, %v1636
  %v1638 = vsub.f32 1.5, %v1637
  %v1639 = vmul.f32 %v1634, %v1638
  %vm1640 = vweird.f32 %v1621
  %vm1641 = vweird.f32 %v1634
  %vm1642 = vmor %vm1640, %vm1641
  %v1643 = vsel %vm1642, %v1634, %v1639
  %v1644 = vrsqrt.pop %v1622
  %v1645 = vmul.f32 %v1644, %v1622
  %v1646 = vmul.f32 %v1645, %v1644
  %v1647 = vmul.f32 0.5, %v1646
  %v1648 = vsub.f32 1.5, %v1647
  %v1649 = vmul.f32 %v1644, %v1648
  %vm1650 = vweird.f32 %v1622
  %vm1651 = vweird.f32 %v1644
  %vm1652 = vmor %vm1650, %vm1651
  %v1653 = vsel %vm1652, %v1644, %v1649
  %v1654 = vrsqrt.pop %v1623
  %v1655 = vmul.f32 %v1654, %v1623
  %v1656 = vmul.f32 %v1655, %v1654
  %v1657 = vmul.f32 0.5, %v1656
  %v1658 = vsub.f32 1.5, %v1657
  %v1659 = vmul.f32 %v1654, %v1658
  %vm1660 = vweird.f32 %v1623
  %vm1661 = vweird.f32 %v1654
  %vm1662 = vmor %vm1660, %vm1661
  %v1663 = vsel %vm1662, %v1654, %v1659
  %v1664 = vmul.f32 %v1616, %v1633
  %v1665 = vmul.f32 %v1617, %v1643
  %v1666 = vmul.f32 %v1618, %v1653
  %v1667 = vmul.f32 %v1619, %v1663
  %v1668 = vxor.u32 %v1666, 2147483648
  %v1669 = vxor.u32 %v1667, 2147483648
  %v1670 = vmul.f32 %v1668, 1.442695
  %v1671 = vpow.pop %v1670
  %v1672 = vmul.f32 %v1669, 1.442695
  %v1673 = vpow.pop %v1672
  %v1674 = vadd.f32 %v1671, 1.0
  %v1675 = vadd.f32 %v1673, 1.0
  %v1676 = vrcp.pop %v1674
  %v1677 = vmul.f32 %v1674, %v1676
  %v1678 = vsub.f32 1.0, %v1677
  %v1679 = vmul.f32 %v1676, %v1678
  %v1680 = vadd.f32 %v1676, %v1679
  %vm1681 = vweird.f32 %v1674
  %vm1682 = vweird.f32 %v1676
  %vm1683 = vmor %vm1681, %vm1682
  %v1684 = vsel %vm1683, %v1676, %v1680
  %v1685 = vand.u32 2147483647, %v1674
  %vm1686 = vcmp.eq.f32.partialorder %v1685, 8.507059e+37
  %v1687 = vand.u32 %v1674, 2147483648
  %v1688 = vor.u32 1.1754944e-38, %v1687
  %v1689 = vsel %vm1686, %v1688, %v1684
  %v1690 = vmul.f32 1.0, %v1689
  %v1691 = vrcp.pop %v1675
  %v1692 = vmul.f32 %v1675, %v1691
  %v1693 = vsub.f32 1.0, %v1692
  %v1694 = vmul.f32 %v1691, %v1693
  %v1695 = vadd.f32 %v1691, %v1694
  %vm1696 = vweird.f32 %v1675
  %vm1697 = vweird.f32 %v1691
  %vm1698 = vmor %vm1696, %vm1697
  %v1699 = vsel %vm1698, %v1691, %v1695
  %v1700 = vand.u32 2147483647, %v1675
  %vm1701 = vcmp.eq.f32.partialorder %v1700, 8.507059e+37
  %v1702 = vand.u32 %v1675, 2147483648
  %v1703 = vor.u32 1.1754944e-38, %v1702
  %v1704 = vsel %vm1701, %v1703, %v1699
  %v1705 = vmul.f32 1.0, %v1704
  %v1706 = vmul.f32 %v1664, %v1690
  %v1707 = vmul.f32 %v1665, %v1705
  %v1708 = vadd.f32 %v1532, %v1706
  %v1709 = vadd.f32 %v1533, %v1707
  %v1710 = vmul.f32 %v1708, 0.70710677
  %v1711 = vmul.f32 %v1709, 0.70710677
  %v1712 = vmax.f32 %v1710, 0.0
  %v1713 = vadd.f32 %v1712, 0.0
  %s1714 = scalar_lea.vmem %s4, 16
  %v1715 = vld [vmem:[%s1714] sm:$0xff]
  %v1716 = vld [vmem:[%s1714 + $0x8] sm:$0xff]
  %v1718 = vsel %vm690, %v1715, 0
  %v1721 = vsel %vm690, %v1716, 0
  %1723 = vmatpush.msra.mxu0 0.0
  %1724 = vmatpush.msra.mxu0 0.0
  %1725 = vmatpush.msra.mxu0 0.0
  %1726 = vmatpush.msra.mxu0 0.0
  %1727 = vmatpush.msra.mxu0 0.0
  %1728 = vmatpush.msra.mxu0 0.0
  %1729 = vmatpush.msra.mxu0 0.0
  %1730 = vmatpush.msra.mxu0 0.0
  %1731 = vmatpush.msra.mxu0 0.0
  %1732 = vmatpush.msra.mxu0 0.0
  %1733 = vmatpush.msra.mxu0 0.0
  %1734 = vmatpush.msra.mxu0 0.0
  %1735 = vmatpush.msra.mxu0 0.0
  %1736 = vmatpush.msra.mxu0 0.0
  %1737 = vmatpush.msra.mxu0 0.0
  %1738 = vmatpush.msra.mxu0 %v1711
  %1739 = vmatmul.f32.gmra.mxu0 %v1718
  %v1740 = vpop.f32.mrf.mxu0
  %v1741 = vadd.f32 0.0, %v1740
  %1742 = vmatmul.f32.gmra.mxu0 %v1721
  %v1743 = vpop.f32.mrf.mxu0
  %v1744 = vadd.f32 0.0, %v1743
  %1745 = vdwg.mxu0
  %1746 = vadd.xlane.f32.xlu0 %v1741
  %v1747 = vpop.xlane.xlu0 %1746
  %1748 = vadd.xlane.f32.xlu0 %v1744
  %v1749 = vpop.xlane.xlu0 %1748
  %v1750 = vmul.f32 %v1741, %v1741
  %v1751 = vmul.f32 %v1744, %v1744
  %1752 = vadd.xlane.f32.xlu0 %v1750
  %v1753 = vpop.xlane.xlu0 %1752
  %1754 = vadd.xlane.f32.xlu0 %v1751
  %v1755 = vpop.xlane.xlu0 %1754
  %v1756 = vmul.f32 %v1747, 0.0078125
  %v1757 = vmul.f32 %v1749, 0.0078125
  %v1758 = vmul.f32 %v1753, 0.0078125
  %v1759 = vmul.f32 %v1755, 0.0078125
  %v1760 = vmul.f32 %v1756, %v1756
  %v1761 = vmul.f32 %v1757, %v1757
  %v1762 = vsub.f32 %v1758, %v1760
  %v1763 = vsub.f32 %v1759, %v1761
  %v1764 = vsub.f32 %v1741, %v1756
  %v1765 = vsub.f32 %v1744, %v1757
  %v1766 = vadd.f32 %v1762, 1e-05
  %v1767 = vadd.f32 %v1763, 1e-05
  %v1768 = vrsqrt.pop %v1766
  %v1769 = vmul.f32 %v1768, %v1766
  %v1770 = vmul.f32 %v1769, %v1768
  %v1771 = vmul.f32 0.5, %v1770
  %v1772 = vsub.f32 1.5, %v1771
  %v1773 = vmul.f32 %v1768, %v1772
  %vm1774 = vweird.f32 %v1766
  %vm1775 = vweird.f32 %v1768
  %vm1776 = vmor %vm1774, %vm1775
  %v1777 = vsel %vm1776, %v1768, %v1773
  %v1778 = vrsqrt.pop %v1767
  %v1779 = vmul.f32 %v1778, %v1767
  %v1780 = vmul.f32 %v1779, %v1778
  %v1781 = vmul.f32 0.5, %v1780
  %v1782 = vsub.f32 1.5, %v1781
  %v1783 = vmul.f32 %v1778, %v1782
  %vm1784 = vweird.f32 %v1767
  %vm1785 = vweird.f32 %v1778
  %vm1786 = vmor %vm1784, %vm1785
  %v1787 = vsel %vm1786, %v1778, %v1783
  %v1788 = vmul.f32 %v1764, %v1777
  %v1789 = vmul.f32 %v1765, %v1787
  %v1790 = vmul.f32 %v1788, %v1034
  %v1791 = vmul.f32 %v1789, %v1035
  %v1792 = vperm.slane %v1790, 0
  %vm1793 = vcmp.ge.f32.partialorder %v1792, %v1790
  %vm1794 = vcmp.ge.f32.partialorder %v1792, %v1791
  %v1795 = vsel %vm1793, 1, 0
  %v1796 = vsel %vm1794, 1, 0
  %v1797 = vcvt.s32.f32 %v1795
  %v1798 = vcvt.s32.f32 %v1796
  %v1799 = vadd.f32 %v1797, 0.0
  %v1800 = vadd.f32 %v1798, 0.0
  %v1801 = vmul.f32 %v1797, %v1792
  %v1802 = vmul.f32 %v1798, %v1792
  %v1803 = vadd.f32 %v1801, 0.0
  %v1804 = vadd.f32 %v1802, 0.0
  %v1805 = vperm.slane %v1790, 1
  %vm1806 = vcmp.ge.f32.partialorder %v1805, %v1790
  %vm1807 = vcmp.ge.f32.partialorder %v1805, %v1791
  %v1808 = vsel %vm1806, 1, 0
  %v1809 = vsel %vm1807, 1, 0
  %v1810 = vcvt.s32.f32 %v1808
  %v1811 = vcvt.s32.f32 %v1809
  %v1812 = vadd.f32 %v1799, %v1810
  %v1813 = vadd.f32 %v1800, %v1811
  %v1814 = vmul.f32 %v1810, %v1805
  %v1815 = vmul.f32 %v1811, %v1805
  %v1816 = vadd.f32 %v1803, %v1814
  %v1817 = vadd.f32 %v1804, %v1815
  %v1818 = vperm.slane %v1790, 2
  %vm1819 = vcmp.ge.f32.partialorder %v1818, %v1790
  %vm1820 = vcmp.ge.f32.partialorder %v1818, %v1791
  %v1821 = vsel %vm1819, 1, 0
  %v1822 = vsel %vm1820, 1, 0
  %v1823 = vcvt.s32.f32 %v1821
  %v1824 = vcvt.s32.f32 %v1822
  %v1825 = vadd.f32 %v1812, %v1823
  %v1826 = vadd.f32 %v1813, %v1824
  %v1827 = vmul.f32 %v1823, %v1818
  %v1828 = vmul.f32 %v1824, %v1818
  %v1829 = vadd.f32 %v1816, %v1827
  %v1830 = vadd.f32 %v1817, %v1828
  %v1831 = vperm.slane %v1790, 3
  %vm1832 = vcmp.ge.f32.partialorder %v1831, %v1790
  %vm1833 = vcmp.ge.f32.partialorder %v1831, %v1791
  %v1834 = vsel %vm1832, 1, 0
  %v1835 = vsel %vm1833, 1, 0
  %v1836 = vcvt.s32.f32 %v1834
  %v1837 = vcvt.s32.f32 %v1835
  %v1838 = vadd.f32 %v1825, %v1836
  %v1839 = vadd.f32 %v1826, %v1837
  %v1840 = vmul.f32 %v1836, %v1831
  %v1841 = vmul.f32 %v1837, %v1831
  %v1842 = vadd.f32 %v1829, %v1840
  %v1843 = vadd.f32 %v1830, %v1841
  %v1844 = vperm.slane %v1790, 4
  %vm1845 = vcmp.ge.f32.partialorder %v1844, %v1790
  %vm1846 = vcmp.ge.f32.partialorder %v1844, %v1791
  %v1847 = vsel %vm1845, 1, 0
  %v1848 = vsel %vm1846, 1, 0
  %v1849 = vcvt.s32.f32 %v1847
  %v1850 = vcvt.s32.f32 %v1848
  %v1851 = vadd.f32 %v1838, %v1849
  %v1852 = vadd.f32 %v1839, %v1850
  %v1853 = vmul.f32 %v1849, %v1844
  %v1854 = vmul.f32 %v1850, %v1844
  %v1855 = vadd.f32 %v1842, %v1853
  %v1856 = vadd.f32 %v1843, %v1854
  %v1857 = vperm.slane %v1790, 5
  %vm1858 = vcmp.ge.f32.partialorder %v1857, %v1790
  %vm1859 = vcmp.ge.f32.partialorder %v1857, %v1791
  %v1860 = vsel %vm1858, 1, 0
  %v1861 = vsel %vm1859, 1, 0
  %v1862 = vcvt.s32.f32 %v1860
  %v1863 = vcvt.s32.f32 %v1861
  %v1864 = vadd.f32 %v1851, %v1862
  %v1865 = vadd.f32 %v1852, %v1863
  %v1866 = vmul.f32 %v1862, %v1857
  %v1867 = vmul.f32 %v1863, %v1857
  %v1868 = vadd.f32 %v1855, %v1866
  %v1869 = vadd.f32 %v1856, %v1867
  %v1870 = vperm.slane %v1790, 6
  %vm1871 = vcmp.ge.f32.partialorder %v1870, %v1790
  %vm1872 = vcmp.ge.f32.partialorder %v1870, %v1791
  %v1873 = vsel %vm1871, 1, 0
  %v1874 = vsel %vm1872, 1, 0
  %v1875 = vcvt.s32.f32 %v1873
  %v1876 = vcvt.s32.f32 %v1874
  %v1877 = vadd.f32 %v1864, %v1875
  %v1878 = vadd.f32 %v1865, %v1876
  %v1879 = vmul.f32 %v1875, %v1870
  %v1880 = vmul.f32 %v1876, %v1870
  %v1881 = vadd.f32 %v1868, %v1879
  %v1882 = vadd.f32 %v1869, %v1880
  %v1883 = vperm.slane %v1790, 7
  %vm1884 = vcmp.ge.f32.partialorder %v1883, %v1790
  %vm1885 = vcmp.ge.f32.partialorder %v1883, %v1791
  %v1886 = vsel %vm1884, 1, 0
  %v1887 = vsel %vm1885, 1, 0
  %v1888 = vcvt.s32.f32 %v1886
  %v1889 = vcvt.s32.f32 %v1887
  %v1890 = vadd.f32 %v1877, %v1888
  %v1891 = vadd.f32 %v1878, %v1889
  %v1892 = vmul.f32 %v1888, %v1883
  %v1893 = vmul.f32 %v1889, %v1883
  %v1894 = vadd.f32 %v1881, %v1892
  %v1895 = vadd.f32 %v1882, %v1893
  %v1896 = vperm.slane %v1791, 0
  %vm1897 = vcmp.ge.f32.partialorder %v1896, %v1790
  %vm1898 = vcmp.ge.f32.partialorder %v1896, %v1791
  %v1899 = vsel %vm1897, 1, 0
  %v1900 = vsel %vm1898, 1, 0
  %v1901 = vcvt.s32.f32 %v1899
  %v1902 = vcvt.s32.f32 %v1900
  %v1903 = vadd.f32 %v1890, %v1901
  %v1904 = vadd.f32 %v1891, %v1902
  %v1905 = vmul.f32 %v1901, %v1896
  %v1906 = vmul.f32 %v1902, %v1896
  %v1907 = vadd.f32 %v1894, %v1905
  %v1908 = vadd.f32 %v1895, %v1906
  %v1909 = vperm.slane %v1791, 1
  %vm1910 = vcmp.ge.f32.partialorder %v1909, %v1790
  %vm1911 = vcmp.ge.f32.partialorder %v1909, %v1791
  %v1912 = vsel %vm1910, 1, 0
  %v1913 = vsel %vm1911, 1, 0
  %v1914 = vcvt.s32.f32 %v1912
  %v1915 = vcvt.s32.f32 %v1913
  %v1916 = vadd.f32 %v1903, %v1914
  %v1917 = vadd.f32 %v1904, %v1915
  %v1918 = vmul.f32 %v1914, %v1909
  %v1919 = vmul.f32 %v1915, %v1909
  %v1920 = vadd.f32 %v1907, %v1918
  %v1921 = vadd.f32 %v1908, %v1919
  %v1922 = vperm.slane %v1791, 2
  %vm1923 = vcmp.ge.f32.partialorder %v1922, %v1790
  %vm1924 = vcmp.ge.f32.partialorder %v1922, %v1791
  %v1925 = vsel %vm1923, 1, 0
  %v1926 = vsel %vm1924, 1, 0
  %v1927 = vcvt.s32.f32 %v1925
  %v1928 = vcvt.s32.f32 %v1926
  %v1929 = vadd.f32 %v1916, %v1927
  %v1930 = vadd.f32 %v1917, %v1928
  %v1931 = vmul.f32 %v1927, %v1922
  %v1932 = vmul.f32 %v1928, %v1922
  %v1933 = vadd.f32 %v1920, %v1931
  %v1934 = vadd.f32 %v1921, %v1932
  %v1935 = vperm.slane %v1791, 3
  %vm1936 = vcmp.ge.f32.partialorder %v1935, %v1790
  %vm1937 = vcmp.ge.f32.partialorder %v1935, %v1791
  %v1938 = vsel %vm1936, 1, 0
  %v1939 = vsel %vm1937, 1, 0
  %v1940 = vcvt.s32.f32 %v1938
  %v1941 = vcvt.s32.f32 %v1939
  %v1942 = vadd.f32 %v1929, %v1940
  %v1943 = vadd.f32 %v1930, %v1941
  %v1944 = vmul.f32 %v1940, %v1935
  %v1945 = vmul.f32 %v1941, %v1935
  %v1946 = vadd.f32 %v1933, %v1944
  %v1947 = vadd.f32 %v1934, %v1945
  %v1948 = vperm.slane %v1791, 4
  %vm1949 = vcmp.ge.f32.partialorder %v1948, %v1790
  %vm1950 = vcmp.ge.f32.partialorder %v1948, %v1791
  %v1951 = vsel %vm1949, 1, 0
  %v1952 = vsel %vm1950, 1, 0
  %v1953 = vcvt.s32.f32 %v1951
  %v1954 = vcvt.s32.f32 %v1952
  %v1955 = vadd.f32 %v1942, %v1953
  %v1956 = vadd.f32 %v1943, %v1954
  %v1957 = vmul.f32 %v1953, %v1948
  %v1958 = vmul.f32 %v1954, %v1948
  %v1959 = vadd.f32 %v1946, %v1957
  %v1960 = vadd.f32 %v1947, %v1958
  %v1961 = vperm.slane %v1791, 5
  %vm1962 = vcmp.ge.f32.partialorder %v1961, %v1790
  %vm1963 = vcmp.ge.f32.partialorder %v1961, %v1791
  %v1964 = vsel %vm1962, 1, 0
  %v1965 = vsel %vm1963, 1, 0
  %v1966 = vcvt.s32.f32 %v1964
  %v1967 = vcvt.s32.f32 %v1965
  %v1968 = vadd.f32 %v1955, %v1966
  %v1969 = vadd.f32 %v1956, %v1967
  %v1970 = vmul.f32 %v1966, %v1961
  %v1971 = vmul.f32 %v1967, %v1961
  %v1972 = vadd.f32 %v1959, %v1970
  %v1973 = vadd.f32 %v1960, %v1971
  %v1974 = vperm.slane %v1791, 6
  %vm1975 = vcmp.ge.f32.partialorder %v1974, %v1790
  %vm1976 = vcmp.ge.f32.partialorder %v1974, %v1791
  %v1977 = vsel %vm1975, 1, 0
  %v1978 = vsel %vm1976, 1, 0
  %v1979 = vcvt.s32.f32 %v1977
  %v1980 = vcvt.s32.f32 %v1978
  %v1981 = vadd.f32 %v1968, %v1979
  %v1982 = vadd.f32 %v1969, %v1980
  %v1983 = vmul.f32 %v1979, %v1974
  %v1984 = vmul.f32 %v1980, %v1974
  %v1985 = vadd.f32 %v1972, %v1983
  %v1986 = vadd.f32 %v1973, %v1984
  %v1987 = vperm.slane %v1791, 7
  %vm1988 = vcmp.ge.f32.partialorder %v1987, %v1790
  %vm1989 = vcmp.ge.f32.partialorder %v1987, %v1791
  %v1990 = vsel %vm1988, 1, 0
  %v1991 = vsel %vm1989, 1, 0
  %v1992 = vcvt.s32.f32 %v1990
  %v1993 = vcvt.s32.f32 %v1991
  %v1994 = vadd.f32 %v1981, %v1992
  %v1995 = vadd.f32 %v1982, %v1993
  %v1996 = vmul.f32 %v1992, %v1987
  %v1997 = vmul.f32 %v1993, %v1987
  %v1998 = vadd.f32 %v1985, %v1996
  %v1999 = vadd.f32 %v1986, %v1997
  %v2000 = vmul.f32 %v1994, %v1790
  %v2001 = vmul.f32 %v1995, %v1791
  %v2002 = vadd.f32 %v2000, 1.0
  %v2003 = vadd.f32 %v2001, 1.0
  %vm2004 = vcmp.gt.f32.partialorder %v2002, %v1998
  %vm2005 = vcmp.gt.f32.partialorder %v2003, %v1999
  %v2006 = vsel %vm2004, 1, 0
  %v2007 = vsel %vm2005, 1, 0
  %v2008 = vcvt.s32.f32 %v2006
  %v2009 = vcvt.s32.f32 %v2007
  %v2010 = vadd.f32 %v2008, %v2009
  %v2011 = vrot.slane %v2010, 4
  %v2012 = vadd.f32 %v2010, %v2011
  %v2013 = vrot.slane %v2012, 2
  %v2014 = vadd.f32 %v2012, %v2013
  %v2015 = vrot.slane %v2014, 1
  %v2016 = vadd.f32 %v2014, %v2015
  %v2017 = vmul.f32 %v2008, %v1790
  %v2018 = vmul.f32 %v2009, %v1791
  %v2019 = vadd.f32 %v2017, %v2018
  %v2020 = vrot.slane %v2019, 4
  %v2021 = vadd.f32 %v2019, %v2020
  %v2022 = vrot.slane %v2021, 2
  %v2023 = vadd.f32 %v2021, %v2022
  %v2024 = vrot.slane %v2023, 1
  %v2025 = vadd.f32 %v2023, %v2024
  %v2026 = vsub.f32 %v2025, 1.0
  %v2027 = vrcp.pop %v2016
  %v2028 = vmul.f32 %v2016, %v2027
  %v2029 = vsub.f32 1.0, %v2028
  %v2030 = vmul.f32 %v2027, %v2029
  %v2031 = vadd.f32 %v2027, %v2030
  %vm2032 = vweird.f32 %v2016
  %vm2033 = vweird.f32 %v2027
  %vm2034 = vmor %vm2032, %vm2033
  %v2035 = vsel %vm2034, %v2027, %v2031
  %v2036 = vand.u32 2147483647, %v2016
  %vm2037 = vcmp.eq.f32.partialorder %v2036, 8.507059e+37
  %v2038 = vand.u32 %v2016, 2147483648
  %v2039 = vor.u32 1.1754944e-38, %v2038
  %v2040 = vsel %vm2037, %v2039, %v2035
  %v2041 = vmul.f32 %v2026, %v2040
  %v2042 = vsub.f32 %v1790, %v2041
  %v2043 = vsub.f32 %v1791, %v2041
  %v2044 = vmax.f32 %v2042, 0.0
  %v2045 = vmax.f32 %v2043, 0.0
  %v2046 = vadd.f32 %v2044, 1e-15
  %v2047 = vadd.f32 %v2045, 1e-15
  %v2048 = vlog2.pop %v2046
  %v2049 = vmul.f32 %v2048, 0.6931472
  %v2050 = vlog2.pop %v2047
  %v2051 = vmul.f32 %v2050, 0.6931472
  %v2052 = vmul.f32 %v2044, %v2049
  %v2053 = vmul.f32 %v2045, %v2051
  %v2054 = vadd.f32 %v2052, %v2053
  %v2055 = vrot.slane %v2054, 4
  %v2056 = vadd.f32 %v2054, %v2055
  %v2057 = vrot.slane %v2056, 2
  %v2058 = vadd.f32 %v2056, %v2057
  %v2059 = vrot.slane %v2058, 1
  %v2060 = vadd.f32 %v2058, %v2059
  %v2061 = vadd.f32 %v1033, %v2060
  %v2062 = vsub.f32 1.3, %v2044
  %v2063 = vsub.f32 1.3, %v2045
  %v2064 = vmul.f32 %v2062, %v1034
  %v2065 = vmul.f32 %v2063, %v1035
  %v2066 = vmul.f32 %v2044, %v47
  %v2067 = vmul.f32 %v2045, %v48
  %2068 = vmatpush.msra.mxu0 0.0
  %2069 = vmatpush.msra.mxu0 0.0
  %2070 = vmatpush.msra.mxu0 0.0
  %2071 = vmatpush.msra.mxu0 0.0
  %2072 = vmatpush.msra.mxu0 0.0
  %2073 = vmatpush.msra.mxu0 0.0
  %2074 = vmatpush.msra.mxu0 0.0
  %2075 = vmatpush.msra.mxu0 0.0
  %2076 = vmatpush.msra.mxu0 0.0
  %2077 = vmatpush.msra.mxu0 0.0
  %2078 = vmatpush.msra.mxu0 0.0
  %2079 = vmatpush.msra.mxu0 0.0
  %2080 = vmatpush.msra.mxu0 0.0
  %2081 = vmatpush.msra.mxu0 0.0
  %2082 = vmatpush.msra.mxu0 %v2067
  %2083 = vmatpush.msra.mxu0 %v2066
  %2084 = vmatmul.f32.gmra.mxu0 %v55
  %v2085 = vpop.f32.mrf.mxu0
  %v2086 = vadd.f32 0.0, %v2085
  %2087 = vmatmul.f32.gmra.mxu0 %v58
  %v2088 = vpop.f32.mrf.mxu0
  %v2089 = vadd.f32 0.0, %v2088
  %2090 = vmatmul.f32.gmra.mxu0 %v61
  %v2091 = vpop.f32.mrf.mxu0
  %v2092 = vadd.f32 0.0, %v2091
  %2093 = vmatmul.f32.gmra.mxu0 %v64
  %v2094 = vpop.f32.mrf.mxu0
  %v2095 = vadd.f32 0.0, %v2094
  %2096 = vdwg.mxu0
  %2097 = vadd.xlane.f32.xlu0 %v2086
  %v2098 = vpop.xlane.xlu0 %2097
  %2099 = vadd.xlane.f32.xlu0 %v2089
  %v2100 = vpop.xlane.xlu0 %2099
  %2101 = vadd.xlane.f32.xlu0 %v2092
  %v2102 = vpop.xlane.xlu0 %2101
  %2103 = vadd.xlane.f32.xlu0 %v2095
  %v2104 = vpop.xlane.xlu0 %2103
  %v2105 = vmul.f32 %v2086, %v2086
  %v2106 = vmul.f32 %v2089, %v2089
  %v2107 = vmul.f32 %v2092, %v2092
  %v2108 = vmul.f32 %v2095, %v2095
  %2109 = vadd.xlane.f32.xlu0 %v2105
  %v2110 = vpop.xlane.xlu0 %2109
  %2111 = vadd.xlane.f32.xlu0 %v2106
  %v2112 = vpop.xlane.xlu0 %2111
  %2113 = vadd.xlane.f32.xlu0 %v2107
  %v2114 = vpop.xlane.xlu0 %2113
  %2115 = vadd.xlane.f32.xlu0 %v2108
  %v2116 = vpop.xlane.xlu0 %2115
  %v2117 = vmul.f32 %v2098, 0.0078125
  %v2118 = vmul.f32 %v2100, 0.0078125
  %v2119 = vmul.f32 %v2102, 0.0078125
  %v2120 = vmul.f32 %v2104, 0.0078125
  %v2121 = vmul.f32 %v2110, 0.0078125
  %v2122 = vmul.f32 %v2112, 0.0078125
  %v2123 = vmul.f32 %v2114, 0.0078125
  %v2124 = vmul.f32 %v2116, 0.0078125
  %v2125 = vmul.f32 %v2117, %v2117
  %v2126 = vmul.f32 %v2118, %v2118
  %v2127 = vmul.f32 %v2119, %v2119
  %v2128 = vmul.f32 %v2120, %v2120
  %v2129 = vsub.f32 %v2121, %v2125
  %v2130 = vsub.f32 %v2122, %v2126
  %v2131 = vsub.f32 %v2123, %v2127
  %v2132 = vsub.f32 %v2124, %v2128
  %v2133 = vsub.f32 %v2086, %v2117
  %v2134 = vsub.f32 %v2089, %v2118
  %v2135 = vsub.f32 %v2092, %v2119
  %v2136 = vsub.f32 %v2095, %v2120
  %v2137 = vadd.f32 %v2129, 1e-05
  %v2138 = vadd.f32 %v2130, 1e-05
  %v2139 = vadd.f32 %v2131, 1e-05
  %v2140 = vadd.f32 %v2132, 1e-05
  %v2141 = vrsqrt.pop %v2137
  %v2142 = vmul.f32 %v2141, %v2137
  %v2143 = vmul.f32 %v2142, %v2141
  %v2144 = vmul.f32 0.5, %v2143
  %v2145 = vsub.f32 1.5, %v2144
  %v2146 = vmul.f32 %v2141, %v2145
  %vm2147 = vweird.f32 %v2137
  %vm2148 = vweird.f32 %v2141
  %vm2149 = vmor %vm2147, %vm2148
  %v2150 = vsel %vm2149, %v2141, %v2146
  %v2151 = vrsqrt.pop %v2138
  %v2152 = vmul.f32 %v2151, %v2138
  %v2153 = vmul.f32 %v2152, %v2151
  %v2154 = vmul.f32 0.5, %v2153
  %v2155 = vsub.f32 1.5, %v2154
  %v2156 = vmul.f32 %v2151, %v2155
  %vm2157 = vweird.f32 %v2138
  %vm2158 = vweird.f32 %v2151
  %vm2159 = vmor %vm2157, %vm2158
  %v2160 = vsel %vm2159, %v2151, %v2156
  %v2161 = vrsqrt.pop %v2139
  %v2162 = vmul.f32 %v2161, %v2139
  %v2163 = vmul.f32 %v2162, %v2161
  %v2164 = vmul.f32 0.5, %v2163
  %v2165 = vsub.f32 1.5, %v2164
  %v2166 = vmul.f32 %v2161, %v2165
  %vm2167 = vweird.f32 %v2139
  %vm2168 = vweird.f32 %v2161
  %vm2169 = vmor %vm2167, %vm2168
  %v2170 = vsel %vm2169, %v2161, %v2166
  %v2171 = vrsqrt.pop %v2140
  %v2172 = vmul.f32 %v2171, %v2140
  %v2173 = vmul.f32 %v2172, %v2171
  %v2174 = vmul.f32 0.5, %v2173
  %v2175 = vsub.f32 1.5, %v2174
  %v2176 = vmul.f32 %v2171, %v2175
  %vm2177 = vweird.f32 %v2140
  %vm2178 = vweird.f32 %v2171
  %vm2179 = vmor %vm2177, %vm2178
  %v2180 = vsel %vm2179, %v2171, %v2176
  %v2181 = vmul.f32 %v2133, %v2150
  %v2182 = vmul.f32 %v2134, %v2160
  %v2183 = vmul.f32 %v2135, %v2170
  %v2184 = vmul.f32 %v2136, %v2180
  %v2185 = vxor.u32 %v2183, 2147483648
  %v2186 = vxor.u32 %v2184, 2147483648
  %v2187 = vmul.f32 %v2185, 1.442695
  %v2188 = vpow.pop %v2187
  %v2189 = vmul.f32 %v2186, 1.442695
  %v2190 = vpow.pop %v2189
  %v2191 = vadd.f32 %v2188, 1.0
  %v2192 = vadd.f32 %v2190, 1.0
  %v2193 = vrcp.pop %v2191
  %v2194 = vmul.f32 %v2191, %v2193
  %v2195 = vsub.f32 1.0, %v2194
  %v2196 = vmul.f32 %v2193, %v2195
  %v2197 = vadd.f32 %v2193, %v2196
  %vm2198 = vweird.f32 %v2191
  %vm2199 = vweird.f32 %v2193
  %vm2200 = vmor %vm2198, %vm2199
  %v2201 = vsel %vm2200, %v2193, %v2197
  %v2202 = vand.u32 2147483647, %v2191
  %vm2203 = vcmp.eq.f32.partialorder %v2202, 8.507059e+37
  %v2204 = vand.u32 %v2191, 2147483648
  %v2205 = vor.u32 1.1754944e-38, %v2204
  %v2206 = vsel %vm2203, %v2205, %v2201
  %v2207 = vmul.f32 1.0, %v2206
  %v2208 = vrcp.pop %v2192
  %v2209 = vmul.f32 %v2192, %v2208
  %v2210 = vsub.f32 1.0, %v2209
  %v2211 = vmul.f32 %v2208, %v2210
  %v2212 = vadd.f32 %v2208, %v2211
  %vm2213 = vweird.f32 %v2192
  %vm2214 = vweird.f32 %v2208
  %vm2215 = vmor %vm2213, %vm2214
  %v2216 = vsel %vm2215, %v2208, %v2212
  %v2217 = vand.u32 2147483647, %v2192
  %vm2218 = vcmp.eq.f32.partialorder %v2217, 8.507059e+37
  %v2219 = vand.u32 %v2192, 2147483648
  %v2220 = vor.u32 1.1754944e-38, %v2219
  %v2221 = vsel %vm2218, %v2220, %v2216
  %v2222 = vmul.f32 1.0, %v2221
  %v2223 = vmul.f32 %v2181, %v2207
  %v2224 = vmul.f32 %v2182, %v2222
  %2225 = vmatpush.msra.mxu0 0.0
  %2226 = vmatpush.msra.mxu0 0.0
  %2227 = vmatpush.msra.mxu0 0.0
  %2228 = vmatpush.msra.mxu0 0.0
  %2229 = vmatpush.msra.mxu0 0.0
  %2230 = vmatpush.msra.mxu0 0.0
  %2231 = vmatpush.msra.mxu0 0.0
  %2232 = vmatpush.msra.mxu0 0.0
  %2233 = vmatpush.msra.mxu0 0.0
  %2234 = vmatpush.msra.mxu0 0.0
  %2235 = vmatpush.msra.mxu0 0.0
  %2236 = vmatpush.msra.mxu0 0.0
  %2237 = vmatpush.msra.mxu0 0.0
  %2238 = vmatpush.msra.mxu0 0.0
  %2239 = vmatpush.msra.mxu0 %v2224
  %2240 = vmatpush.msra.mxu0 %v2223
  %2241 = vmatmul.f32.gmra.mxu0 %v228
  %v2242 = vpop.f32.mrf.mxu0
  %v2243 = vadd.f32 0.0, %v2242
  %2244 = vmatmul.f32.gmra.mxu0 %v231
  %v2245 = vpop.f32.mrf.mxu0
  %v2246 = vadd.f32 0.0, %v2245
  %2247 = vmatmul.f32.gmra.mxu0 %v234
  %v2248 = vpop.f32.mrf.mxu0
  %v2249 = vadd.f32 0.0, %v2248
  %2250 = vmatmul.f32.gmra.mxu0 %v237
  %v2251 = vpop.f32.mrf.mxu0
  %v2252 = vadd.f32 0.0, %v2251
  %2253 = vdwg.mxu0
  %2254 = vadd.xlane.f32.xlu0 %v2243
  %v2255 = vpop.xlane.xlu0 %2254
  %2256 = vadd.xlane.f32.xlu0 %v2246
  %v2257 = vpop.xlane.xlu0 %2256
  %2258 = vadd.xlane.f32.xlu0 %v2249
  %v2259 = vpop.xlane.xlu0 %2258
  %2260 = vadd.xlane.f32.xlu0 %v2252
  %v2261 = vpop.xlane.xlu0 %2260
  %v2262 = vmul.f32 %v2243, %v2243
  %v2263 = vmul.f32 %v2246, %v2246
  %v2264 = vmul.f32 %v2249, %v2249
  %v2265 = vmul.f32 %v2252, %v2252
  %2266 = vadd.xlane.f32.xlu0 %v2262
  %v2267 = vpop.xlane.xlu0 %2266
  %2268 = vadd.xlane.f32.xlu0 %v2263
  %v2269 = vpop.xlane.xlu0 %2268
  %2270 = vadd.xlane.f32.xlu0 %v2264
  %v2271 = vpop.xlane.xlu0 %2270
  %2272 = vadd.xlane.f32.xlu0 %v2265
  %v2273 = vpop.xlane.xlu0 %2272
  %v2274 = vmul.f32 %v2255, 0.0078125
  %v2275 = vmul.f32 %v2257, 0.0078125
  %v2276 = vmul.f32 %v2259, 0.0078125
  %v2277 = vmul.f32 %v2261, 0.0078125
  %v2278 = vmul.f32 %v2267, 0.0078125
  %v2279 = vmul.f32 %v2269, 0.0078125
  %v2280 = vmul.f32 %v2271, 0.0078125
  %v2281 = vmul.f32 %v2273, 0.0078125
  %v2282 = vmul.f32 %v2274, %v2274
  %v2283 = vmul.f32 %v2275, %v2275
  %v2284 = vmul.f32 %v2276, %v2276
  %v2285 = vmul.f32 %v2277, %v2277
  %v2286 = vsub.f32 %v2278, %v2282
  %v2287 = vsub.f32 %v2279, %v2283
  %v2288 = vsub.f32 %v2280, %v2284
  %v2289 = vsub.f32 %v2281, %v2285
  %v2290 = vsub.f32 %v2243, %v2274
  %v2291 = vsub.f32 %v2246, %v2275
  %v2292 = vsub.f32 %v2249, %v2276
  %v2293 = vsub.f32 %v2252, %v2277
  %v2294 = vadd.f32 %v2286, 1e-05
  %v2295 = vadd.f32 %v2287, 1e-05
  %v2296 = vadd.f32 %v2288, 1e-05
  %v2297 = vadd.f32 %v2289, 1e-05
  %v2298 = vrsqrt.pop %v2294
  %v2299 = vmul.f32 %v2298, %v2294
  %v2300 = vmul.f32 %v2299, %v2298
  %v2301 = vmul.f32 0.5, %v2300
  %v2302 = vsub.f32 1.5, %v2301
  %v2303 = vmul.f32 %v2298, %v2302
  %vm2304 = vweird.f32 %v2294
  %vm2305 = vweird.f32 %v2298
  %vm2306 = vmor %vm2304, %vm2305
  %v2307 = vsel %vm2306, %v2298, %v2303
  %v2308 = vrsqrt.pop %v2295
  %v2309 = vmul.f32 %v2308, %v2295
  %v2310 = vmul.f32 %v2309, %v2308
  %v2311 = vmul.f32 0.5, %v2310
  %v2312 = vsub.f32 1.5, %v2311
  %v2313 = vmul.f32 %v2308, %v2312
  %vm2314 = vweird.f32 %v2295
  %vm2315 = vweird.f32 %v2308
  %vm2316 = vmor %vm2314, %vm2315
  %v2317 = vsel %vm2316, %v2308, %v2313
  %v2318 = vrsqrt.pop %v2296
  %v2319 = vmul.f32 %v2318, %v2296
  %v2320 = vmul.f32 %v2319, %v2318
  %v2321 = vmul.f32 0.5, %v2320
  %v2322 = vsub.f32 1.5, %v2321
  %v2323 = vmul.f32 %v2318, %v2322
  %vm2324 = vweird.f32 %v2296
  %vm2325 = vweird.f32 %v2318
  %vm2326 = vmor %vm2324, %vm2325
  %v2327 = vsel %vm2326, %v2318, %v2323
  %v2328 = vrsqrt.pop %v2297
  %v2329 = vmul.f32 %v2328, %v2297
  %v2330 = vmul.f32 %v2329, %v2328
  %v2331 = vmul.f32 0.5, %v2330
  %v2332 = vsub.f32 1.5, %v2331
  %v2333 = vmul.f32 %v2328, %v2332
  %vm2334 = vweird.f32 %v2297
  %vm2335 = vweird.f32 %v2328
  %vm2336 = vmor %vm2334, %vm2335
  %v2337 = vsel %vm2336, %v2328, %v2333
  %v2338 = vmul.f32 %v2290, %v2307
  %v2339 = vmul.f32 %v2291, %v2317
  %v2340 = vmul.f32 %v2292, %v2327
  %v2341 = vmul.f32 %v2293, %v2337
  %v2342 = vxor.u32 %v2340, 2147483648
  %v2343 = vxor.u32 %v2341, 2147483648
  %v2344 = vmul.f32 %v2342, 1.442695
  %v2345 = vpow.pop %v2344
  %v2346 = vmul.f32 %v2343, 1.442695
  %v2347 = vpow.pop %v2346
  %v2348 = vadd.f32 %v2345, 1.0
  %v2349 = vadd.f32 %v2347, 1.0
  %v2350 = vrcp.pop %v2348
  %v2351 = vmul.f32 %v2348, %v2350
  %v2352 = vsub.f32 1.0, %v2351
  %v2353 = vmul.f32 %v2350, %v2352
  %v2354 = vadd.f32 %v2350, %v2353
  %vm2355 = vweird.f32 %v2348
  %vm2356 = vweird.f32 %v2350
  %vm2357 = vmor %vm2355, %vm2356
  %v2358 = vsel %vm2357, %v2350, %v2354
  %v2359 = vand.u32 2147483647, %v2348
  %vm2360 = vcmp.eq.f32.partialorder %v2359, 8.507059e+37
  %v2361 = vand.u32 %v2348, 2147483648
  %v2362 = vor.u32 1.1754944e-38, %v2361
  %v2363 = vsel %vm2360, %v2362, %v2358
  %v2364 = vmul.f32 1.0, %v2363
  %v2365 = vrcp.pop %v2349
  %v2366 = vmul.f32 %v2349, %v2365
  %v2367 = vsub.f32 1.0, %v2366
  %v2368 = vmul.f32 %v2365, %v2367
  %v2369 = vadd.f32 %v2365, %v2368
  %vm2370 = vweird.f32 %v2349
  %vm2371 = vweird.f32 %v2365
  %vm2372 = vmor %vm2370, %vm2371
  %v2373 = vsel %vm2372, %v2365, %v2369
  %v2374 = vand.u32 2147483647, %v2349
  %vm2375 = vcmp.eq.f32.partialorder %v2374, 8.507059e+37
  %v2376 = vand.u32 %v2349, 2147483648
  %v2377 = vor.u32 1.1754944e-38, %v2376
  %v2378 = vsel %vm2375, %v2377, %v2373
  %v2379 = vmul.f32 1.0, %v2378
  %v2380 = vmul.f32 %v2338, %v2364
  %v2381 = vmul.f32 %v2339, %v2379
  %v2382 = vadd.f32 %v2223, %v2380
  %v2383 = vadd.f32 %v2224, %v2381
  %v2384 = vmul.f32 %v2382, 0.70710677
  %v2385 = vmul.f32 %v2383, 0.70710677
  %s2386 = scalar_lea.vmem %s3, 160
  %v2387 = vld [vmem:[%s2386] sm:$0xff]
  %v2388 = vld [vmem:[%s2386 + $0x8] sm:$0xff]
  %v2389 = vld [vmem:[%s2386 + $0x10] sm:$0xff]
  %v2390 = vld [vmem:[%s2386 + $0x18] sm:$0xff]
  %v2392 = vsel %vm53, %v2387, 0
  %v2395 = vsel %vm53, %v2388, 0
  %v2398 = vsel %vm53, %v2389, 0
  %v2401 = vsel %vm53, %v2390, 0
  %2403 = vmatpush.msra.mxu0 0.0
  %2404 = vmatpush.msra.mxu0 0.0
  %2405 = vmatpush.msra.mxu0 0.0
  %2406 = vmatpush.msra.mxu0 0.0
  %2407 = vmatpush.msra.mxu0 0.0
  %2408 = vmatpush.msra.mxu0 0.0
  %2409 = vmatpush.msra.mxu0 0.0
  %2410 = vmatpush.msra.mxu0 0.0
  %2411 = vmatpush.msra.mxu0 0.0
  %2412 = vmatpush.msra.mxu0 0.0
  %2413 = vmatpush.msra.mxu0 0.0
  %2414 = vmatpush.msra.mxu0 0.0
  %2415 = vmatpush.msra.mxu0 0.0
  %2416 = vmatpush.msra.mxu0 0.0
  %2417 = vmatpush.msra.mxu0 %v2385
  %2418 = vmatpush.msra.mxu0 %v2384
  %2419 = vmatmul.f32.gmra.mxu0 %v2392
  %v2420 = vpop.f32.mrf.mxu0
  %v2421 = vadd.f32 0.0, %v2420
  %2422 = vmatmul.f32.gmra.mxu0 %v2395
  %v2423 = vpop.f32.mrf.mxu0
  %v2424 = vadd.f32 0.0, %v2423
  %2425 = vmatmul.f32.gmra.mxu0 %v2398
  %v2426 = vpop.f32.mrf.mxu0
  %v2427 = vadd.f32 0.0, %v2426
  %2428 = vmatmul.f32.gmra.mxu0 %v2401
  %v2429 = vpop.f32.mrf.mxu0
  %v2430 = vadd.f32 0.0, %v2429
  %2431 = vdwg.mxu0
  %2432 = vadd.xlane.f32.xlu0 %v2421
  %v2433 = vpop.xlane.xlu0 %2432
  %2434 = vadd.xlane.f32.xlu0 %v2424
  %v2435 = vpop.xlane.xlu0 %2434
  %2436 = vadd.xlane.f32.xlu0 %v2427
  %v2437 = vpop.xlane.xlu0 %2436
  %2438 = vadd.xlane.f32.xlu0 %v2430
  %v2439 = vpop.xlane.xlu0 %2438
  %v2440 = vmul.f32 %v2421, %v2421
  %v2441 = vmul.f32 %v2424, %v2424
  %v2442 = vmul.f32 %v2427, %v2427
  %v2443 = vmul.f32 %v2430, %v2430
  %2444 = vadd.xlane.f32.xlu0 %v2440
  %v2445 = vpop.xlane.xlu0 %2444
  %2446 = vadd.xlane.f32.xlu0 %v2441
  %v2447 = vpop.xlane.xlu0 %2446
  %2448 = vadd.xlane.f32.xlu0 %v2442
  %v2449 = vpop.xlane.xlu0 %2448
  %2450 = vadd.xlane.f32.xlu0 %v2443
  %v2451 = vpop.xlane.xlu0 %2450
  %v2452 = vmul.f32 %v2433, 0.0078125
  %v2453 = vmul.f32 %v2435, 0.0078125
  %v2454 = vmul.f32 %v2437, 0.0078125
  %v2455 = vmul.f32 %v2439, 0.0078125
  %v2456 = vmul.f32 %v2445, 0.0078125
  %v2457 = vmul.f32 %v2447, 0.0078125
  %v2458 = vmul.f32 %v2449, 0.0078125
  %v2459 = vmul.f32 %v2451, 0.0078125
  %v2460 = vmul.f32 %v2452, %v2452
  %v2461 = vmul.f32 %v2453, %v2453
  %v2462 = vmul.f32 %v2454, %v2454
  %v2463 = vmul.f32 %v2455, %v2455
  %v2464 = vsub.f32 %v2456, %v2460
  %v2465 = vsub.f32 %v2457, %v2461
  %v2466 = vsub.f32 %v2458, %v2462
  %v2467 = vsub.f32 %v2459, %v2463
  %v2468 = vsub.f32 %v2421, %v2452
  %v2469 = vsub.f32 %v2424, %v2453
  %v2470 = vsub.f32 %v2427, %v2454
  %v2471 = vsub.f32 %v2430, %v2455
  %v2472 = vadd.f32 %v2464, 1e-05
  %v2473 = vadd.f32 %v2465, 1e-05
  %v2474 = vadd.f32 %v2466, 1e-05
  %v2475 = vadd.f32 %v2467, 1e-05
  %v2476 = vrsqrt.pop %v2472
  %v2477 = vmul.f32 %v2476, %v2472
  %v2478 = vmul.f32 %v2477, %v2476
  %v2479 = vmul.f32 0.5, %v2478
  %v2480 = vsub.f32 1.5, %v2479
  %v2481 = vmul.f32 %v2476, %v2480
  %vm2482 = vweird.f32 %v2472
  %vm2483 = vweird.f32 %v2476
  %vm2484 = vmor %vm2482, %vm2483
  %v2485 = vsel %vm2484, %v2476, %v2481
  %v2486 = vrsqrt.pop %v2473
  %v2487 = vmul.f32 %v2486, %v2473
  %v2488 = vmul.f32 %v2487, %v2486
  %v2489 = vmul.f32 0.5, %v2488
  %v2490 = vsub.f32 1.5, %v2489
  %v2491 = vmul.f32 %v2486, %v2490
  %vm2492 = vweird.f32 %v2473
  %vm2493 = vweird.f32 %v2486
  %vm2494 = vmor %vm2492, %vm2493
  %v2495 = vsel %vm2494, %v2486, %v2491
  %v2496 = vrsqrt.pop %v2474
  %v2497 = vmul.f32 %v2496, %v2474
  %v2498 = vmul.f32 %v2497, %v2496
  %v2499 = vmul.f32 0.5, %v2498
  %v2500 = vsub.f32 1.5, %v2499
  %v2501 = vmul.f32 %v2496, %v2500
  %vm2502 = vweird.f32 %v2474
  %vm2503 = vweird.f32 %v2496
  %vm2504 = vmor %vm2502, %vm2503
  %v2505 = vsel %vm2504, %v2496, %v2501
  %v2506 = vrsqrt.pop %v2475
  %v2507 = vmul.f32 %v2506, %v2475
  %v2508 = vmul.f32 %v2507, %v2506
  %v2509 = vmul.f32 0.5, %v2508
  %v2510 = vsub.f32 1.5, %v2509
  %v2511 = vmul.f32 %v2506, %v2510
  %vm2512 = vweird.f32 %v2475
  %vm2513 = vweird.f32 %v2506
  %vm2514 = vmor %vm2512, %vm2513
  %v2515 = vsel %vm2514, %v2506, %v2511
  %v2516 = vmul.f32 %v2468, %v2485
  %v2517 = vmul.f32 %v2469, %v2495
  %v2518 = vmul.f32 %v2470, %v2505
  %v2519 = vmul.f32 %v2471, %v2515
  %v2520 = vxor.u32 %v2518, 2147483648
  %v2521 = vxor.u32 %v2519, 2147483648
  %v2522 = vmul.f32 %v2520, 1.442695
  %v2523 = vpow.pop %v2522
  %v2524 = vmul.f32 %v2521, 1.442695
  %v2525 = vpow.pop %v2524
  %v2526 = vadd.f32 %v2523, 1.0
  %v2527 = vadd.f32 %v2525, 1.0
  %v2528 = vrcp.pop %v2526
  %v2529 = vmul.f32 %v2526, %v2528
  %v2530 = vsub.f32 1.0, %v2529
  %v2531 = vmul.f32 %v2528, %v2530
  %v2532 = vadd.f32 %v2528, %v2531
  %vm2533 = vweird.f32 %v2526
  %vm2534 = vweird.f32 %v2528
  %vm2535 = vmor %vm2533, %vm2534
  %v2536 = vsel %vm2535, %v2528, %v2532
  %v2537 = vand.u32 2147483647, %v2526
  %vm2538 = vcmp.eq.f32.partialorder %v2537, 8.507059e+37
  %v2539 = vand.u32 %v2526, 2147483648
  %v2540 = vor.u32 1.1754944e-38, %v2539
  %v2541 = vsel %vm2538, %v2540, %v2536
  %v2542 = vmul.f32 1.0, %v2541
  %v2543 = vrcp.pop %v2527
  %v2544 = vmul.f32 %v2527, %v2543
  %v2545 = vsub.f32 1.0, %v2544
  %v2546 = vmul.f32 %v2543, %v2545
  %v2547 = vadd.f32 %v2543, %v2546
  %vm2548 = vweird.f32 %v2527
  %vm2549 = vweird.f32 %v2543
  %vm2550 = vmor %vm2548, %vm2549
  %v2551 = vsel %vm2550, %v2543, %v2547
  %v2552 = vand.u32 2147483647, %v2527
  %vm2553 = vcmp.eq.f32.partialorder %v2552, 8.507059e+37
  %v2554 = vand.u32 %v2527, 2147483648
  %v2555 = vor.u32 1.1754944e-38, %v2554
  %v2556 = vsel %vm2553, %v2555, %v2551
  %v2557 = vmul.f32 1.0, %v2556
  %v2558 = vmul.f32 %v2516, %v2542
  %v2559 = vmul.f32 %v2517, %v2557
  %v2560 = vadd.f32 %v2384, %v2558
  %v2561 = vadd.f32 %v2385, %v2559
  %v2562 = vmul.f32 %v2560, 0.70710677
  %v2563 = vmul.f32 %v2561, 0.70710677
  %s2564 = scalar_lea.vmem %s3, 192
  %v2565 = vld [vmem:[%s2564] sm:$0xff]
  %v2566 = vld [vmem:[%s2564 + $0x8] sm:$0xff]
  %v2567 = vld [vmem:[%s2564 + $0x10] sm:$0xff]
  %v2568 = vld [vmem:[%s2564 + $0x18] sm:$0xff]
  %v2570 = vsel %vm53, %v2565, 0
  %v2573 = vsel %vm53, %v2566, 0
  %v2576 = vsel %vm53, %v2567, 0
  %v2579 = vsel %vm53, %v2568, 0
  %2581 = vmatpush.msra.mxu0 0.0
  %2582 = vmatpush.msra.mxu0 0.0
  %2583 = vmatpush.msra.mxu0 0.0
  %2584 = vmatpush.msra.mxu0 0.0
  %2585 = vmatpush.msra.mxu0 0.0
  %2586 = vmatpush.msra.mxu0 0.0
  %2587 = vmatpush.msra.mxu0 0.0
  %2588 = vmatpush.msra.mxu0 0.0
  %2589 = vmatpush.msra.mxu0 0.0
  %2590 = vmatpush.msra.mxu0 0.0
  %2591 = vmatpush.msra.mxu0 0.0
  %2592 = vmatpush.msra.mxu0 0.0
  %2593 = vmatpush.msra.mxu0 0.0
  %2594 = vmatpush.msra.mxu0 0.0
  %2595 = vmatpush.msra.mxu0 %v2563
  %2596 = vmatpush.msra.mxu0 %v2562
  %2597 = vmatmul.f32.gmra.mxu0 %v2570
  %v2598 = vpop.f32.mrf.mxu0
  %v2599 = vadd.f32 0.0, %v2598
  %2600 = vmatmul.f32.gmra.mxu0 %v2573
  %v2601 = vpop.f32.mrf.mxu0
  %v2602 = vadd.f32 0.0, %v2601
  %2603 = vmatmul.f32.gmra.mxu0 %v2576
  %v2604 = vpop.f32.mrf.mxu0
  %v2605 = vadd.f32 0.0, %v2604
  %2606 = vmatmul.f32.gmra.mxu0 %v2579
  %v2607 = vpop.f32.mrf.mxu0
  %v2608 = vadd.f32 0.0, %v2607
  %2609 = vdwg.mxu0
  %2610 = vadd.xlane.f32.xlu0 %v2599
  %v2611 = vpop.xlane.xlu0 %2610
  %2612 = vadd.xlane.f32.xlu0 %v2602
  %v2613 = vpop.xlane.xlu0 %2612
  %2614 = vadd.xlane.f32.xlu0 %v2605
  %v2615 = vpop.xlane.xlu0 %2614
  %2616 = vadd.xlane.f32.xlu0 %v2608
  %v2617 = vpop.xlane.xlu0 %2616
  %v2618 = vmul.f32 %v2599, %v2599
  %v2619 = vmul.f32 %v2602, %v2602
  %v2620 = vmul.f32 %v2605, %v2605
  %v2621 = vmul.f32 %v2608, %v2608
  %2622 = vadd.xlane.f32.xlu0 %v2618
  %v2623 = vpop.xlane.xlu0 %2622
  %2624 = vadd.xlane.f32.xlu0 %v2619
  %v2625 = vpop.xlane.xlu0 %2624
  %2626 = vadd.xlane.f32.xlu0 %v2620
  %v2627 = vpop.xlane.xlu0 %2626
  %2628 = vadd.xlane.f32.xlu0 %v2621
  %v2629 = vpop.xlane.xlu0 %2628
  %v2630 = vmul.f32 %v2611, 0.0078125
  %v2631 = vmul.f32 %v2613, 0.0078125
  %v2632 = vmul.f32 %v2615, 0.0078125
  %v2633 = vmul.f32 %v2617, 0.0078125
  %v2634 = vmul.f32 %v2623, 0.0078125
  %v2635 = vmul.f32 %v2625, 0.0078125
  %v2636 = vmul.f32 %v2627, 0.0078125
  %v2637 = vmul.f32 %v2629, 0.0078125
  %v2638 = vmul.f32 %v2630, %v2630
  %v2639 = vmul.f32 %v2631, %v2631
  %v2640 = vmul.f32 %v2632, %v2632
  %v2641 = vmul.f32 %v2633, %v2633
  %v2642 = vsub.f32 %v2634, %v2638
  %v2643 = vsub.f32 %v2635, %v2639
  %v2644 = vsub.f32 %v2636, %v2640
  %v2645 = vsub.f32 %v2637, %v2641
  %v2646 = vsub.f32 %v2599, %v2630
  %v2647 = vsub.f32 %v2602, %v2631
  %v2648 = vsub.f32 %v2605, %v2632
  %v2649 = vsub.f32 %v2608, %v2633
  %v2650 = vadd.f32 %v2642, 1e-05
  %v2651 = vadd.f32 %v2643, 1e-05
  %v2652 = vadd.f32 %v2644, 1e-05
  %v2653 = vadd.f32 %v2645, 1e-05
  %v2654 = vrsqrt.pop %v2650
  %v2655 = vmul.f32 %v2654, %v2650
  %v2656 = vmul.f32 %v2655, %v2654
  %v2657 = vmul.f32 0.5, %v2656
  %v2658 = vsub.f32 1.5, %v2657
  %v2659 = vmul.f32 %v2654, %v2658
  %vm2660 = vweird.f32 %v2650
  %vm2661 = vweird.f32 %v2654
  %vm2662 = vmor %vm2660, %vm2661
  %v2663 = vsel %vm2662, %v2654, %v2659
  %v2664 = vrsqrt.pop %v2651
  %v2665 = vmul.f32 %v2664, %v2651
  %v2666 = vmul.f32 %v2665, %v2664
  %v2667 = vmul.f32 0.5, %v2666
  %v2668 = vsub.f32 1.5, %v2667
  %v2669 = vmul.f32 %v2664, %v2668
  %vm2670 = vweird.f32 %v2651
  %vm2671 = vweird.f32 %v2664
  %vm2672 = vmor %vm2670, %vm2671
  %v2673 = vsel %vm2672, %v2664, %v2669
  %v2674 = vrsqrt.pop %v2652
  %v2675 = vmul.f32 %v2674, %v2652
  %v2676 = vmul.f32 %v2675, %v2674
  %v2677 = vmul.f32 0.5, %v2676
  %v2678 = vsub.f32 1.5, %v2677
  %v2679 = vmul.f32 %v2674, %v2678
  %vm2680 = vweird.f32 %v2652
  %vm2681 = vweird.f32 %v2674
  %vm2682 = vmor %vm2680, %vm2681
  %v2683 = vsel %vm2682, %v2674, %v2679
  %v2684 = vrsqrt.pop %v2653
  %v2685 = vmul.f32 %v2684, %v2653
  %v2686 = vmul.f32 %v2685, %v2684
  %v2687 = vmul.f32 0.5, %v2686
  %v2688 = vsub.f32 1.5, %v2687
  %v2689 = vmul.f32 %v2684, %v2688
  %vm2690 = vweird.f32 %v2653
  %vm2691 = vweird.f32 %v2684
  %vm2692 = vmor %vm2690, %vm2691
  %v2693 = vsel %vm2692, %v2684, %v2689
  %v2694 = vmul.f32 %v2646, %v2663
  %v2695 = vmul.f32 %v2647, %v2673
  %v2696 = vmul.f32 %v2648, %v2683
  %v2697 = vmul.f32 %v2649, %v2693
  %v2698 = vxor.u32 %v2696, 2147483648
  %v2699 = vxor.u32 %v2697, 2147483648
  %v2700 = vmul.f32 %v2698, 1.442695
  %v2701 = vpow.pop %v2700
  %v2702 = vmul.f32 %v2699, 1.442695
  %v2703 = vpow.pop %v2702
  %v2704 = vadd.f32 %v2701, 1.0
  %v2705 = vadd.f32 %v2703, 1.0
  %v2706 = vrcp.pop %v2704
  %v2707 = vmul.f32 %v2704, %v2706
  %v2708 = vsub.f32 1.0, %v2707
  %v2709 = vmul.f32 %v2706, %v2708
  %v2710 = vadd.f32 %v2706, %v2709
  %vm2711 = vweird.f32 %v2704
  %vm2712 = vweird.f32 %v2706
  %vm2713 = vmor %vm2711, %vm2712
  %v2714 = vsel %vm2713, %v2706, %v2710
  %v2715 = vand.u32 2147483647, %v2704
  %vm2716 = vcmp.eq.f32.partialorder %v2715, 8.507059e+37
  %v2717 = vand.u32 %v2704, 2147483648
  %v2718 = vor.u32 1.1754944e-38, %v2717
  %v2719 = vsel %vm2716, %v2718, %v2714
  %v2720 = vmul.f32 1.0, %v2719
  %v2721 = vrcp.pop %v2705
  %v2722 = vmul.f32 %v2705, %v2721
  %v2723 = vsub.f32 1.0, %v2722
  %v2724 = vmul.f32 %v2721, %v2723
  %v2725 = vadd.f32 %v2721, %v2724
  %vm2726 = vweird.f32 %v2705
  %vm2727 = vweird.f32 %v2721
  %vm2728 = vmor %vm2726, %vm2727
  %v2729 = vsel %vm2728, %v2721, %v2725
  %v2730 = vand.u32 2147483647, %v2705
  %vm2731 = vcmp.eq.f32.partialorder %v2730, 8.507059e+37
  %v2732 = vand.u32 %v2705, 2147483648
  %v2733 = vor.u32 1.1754944e-38, %v2732
  %v2734 = vsel %vm2731, %v2733, %v2729
  %v2735 = vmul.f32 1.0, %v2734
  %v2736 = vmul.f32 %v2694, %v2720
  %v2737 = vmul.f32 %v2695, %v2735
  %v2738 = vadd.f32 %v2562, %v2736
  %v2739 = vadd.f32 %v2563, %v2737
  %v2740 = vmul.f32 %v2738, 0.70710677
  %v2741 = vmul.f32 %v2739, 0.70710677
  %v2742 = vmax.f32 %v2740, 0.0
  %v2743 = vadd.f32 %v1713, %v2742
  %s2744 = scalar_lea.vmem %s4, 32
  %v2745 = vld [vmem:[%s2744] sm:$0xff]
  %v2746 = vld [vmem:[%s2744 + $0x8] sm:$0xff]
  %v2748 = vsel %vm690, %v2745, 0
  %v2751 = vsel %vm690, %v2746, 0
  %2753 = vmatpush.msra.mxu0 0.0
  %2754 = vmatpush.msra.mxu0 0.0
  %2755 = vmatpush.msra.mxu0 0.0
  %2756 = vmatpush.msra.mxu0 0.0
  %2757 = vmatpush.msra.mxu0 0.0
  %2758 = vmatpush.msra.mxu0 0.0
  %2759 = vmatpush.msra.mxu0 0.0
  %2760 = vmatpush.msra.mxu0 0.0
  %2761 = vmatpush.msra.mxu0 0.0
  %2762 = vmatpush.msra.mxu0 0.0
  %2763 = vmatpush.msra.mxu0 0.0
  %2764 = vmatpush.msra.mxu0 0.0
  %2765 = vmatpush.msra.mxu0 0.0
  %2766 = vmatpush.msra.mxu0 0.0
  %2767 = vmatpush.msra.mxu0 0.0
  %2768 = vmatpush.msra.mxu0 %v2741
  %2769 = vmatmul.f32.gmra.mxu0 %v2748
  %v2770 = vpop.f32.mrf.mxu0
  %v2771 = vadd.f32 0.0, %v2770
  %2772 = vmatmul.f32.gmra.mxu0 %v2751
  %v2773 = vpop.f32.mrf.mxu0
  %v2774 = vadd.f32 0.0, %v2773
  %2775 = vdwg.mxu0
  %2776 = vadd.xlane.f32.xlu0 %v2771
  %v2777 = vpop.xlane.xlu0 %2776
  %2778 = vadd.xlane.f32.xlu0 %v2774
  %v2779 = vpop.xlane.xlu0 %2778
  %v2780 = vmul.f32 %v2771, %v2771
  %v2781 = vmul.f32 %v2774, %v2774
  %2782 = vadd.xlane.f32.xlu0 %v2780
  %v2783 = vpop.xlane.xlu0 %2782
  %2784 = vadd.xlane.f32.xlu0 %v2781
  %v2785 = vpop.xlane.xlu0 %2784
  %v2786 = vmul.f32 %v2777, 0.0078125
  %v2787 = vmul.f32 %v2779, 0.0078125
  %v2788 = vmul.f32 %v2783, 0.0078125
  %v2789 = vmul.f32 %v2785, 0.0078125
  %v2790 = vmul.f32 %v2786, %v2786
  %v2791 = vmul.f32 %v2787, %v2787
  %v2792 = vsub.f32 %v2788, %v2790
  %v2793 = vsub.f32 %v2789, %v2791
  %v2794 = vsub.f32 %v2771, %v2786
  %v2795 = vsub.f32 %v2774, %v2787
  %v2796 = vadd.f32 %v2792, 1e-05
  %v2797 = vadd.f32 %v2793, 1e-05
  %v2798 = vrsqrt.pop %v2796
  %v2799 = vmul.f32 %v2798, %v2796
  %v2800 = vmul.f32 %v2799, %v2798
  %v2801 = vmul.f32 0.5, %v2800
  %v2802 = vsub.f32 1.5, %v2801
  %v2803 = vmul.f32 %v2798, %v2802
  %vm2804 = vweird.f32 %v2796
  %vm2805 = vweird.f32 %v2798
  %vm2806 = vmor %vm2804, %vm2805
  %v2807 = vsel %vm2806, %v2798, %v2803
  %v2808 = vrsqrt.pop %v2797
  %v2809 = vmul.f32 %v2808, %v2797
  %v2810 = vmul.f32 %v2809, %v2808
  %v2811 = vmul.f32 0.5, %v2810
  %v2812 = vsub.f32 1.5, %v2811
  %v2813 = vmul.f32 %v2808, %v2812
  %vm2814 = vweird.f32 %v2797
  %vm2815 = vweird.f32 %v2808
  %vm2816 = vmor %vm2814, %vm2815
  %v2817 = vsel %vm2816, %v2808, %v2813
  %v2818 = vmul.f32 %v2794, %v2807
  %v2819 = vmul.f32 %v2795, %v2817
  %v2820 = vmul.f32 %v2818, %v2064
  %v2821 = vmul.f32 %v2819, %v2065
  %v2822 = vperm.slane %v2820, 0
  %vm2823 = vcmp.ge.f32.partialorder %v2822, %v2820
  %vm2824 = vcmp.ge.f32.partialorder %v2822, %v2821
  %v2825 = vsel %vm2823, 1, 0
  %v2826 = vsel %vm2824, 1, 0
  %v2827 = vcvt.s32.f32 %v2825
  %v2828 = vcvt.s32.f32 %v2826
  %v2829 = vadd.f32 %v2827, 0.0
  %v2830 = vadd.f32 %v2828, 0.0
  %v2831 = vmul.f32 %v2827, %v2822
  %v2832 = vmul.f32 %v2828, %v2822
  %v2833 = vadd.f32 %v2831, 0.0
  %v2834 = vadd.f32 %v2832, 0.0
  %v2835 = vperm.slane %v2820, 1
  %vm2836 = vcmp.ge.f32.partialorder %v2835, %v2820
  %vm2837 = vcmp.ge.f32.partialorder %v2835, %v2821
  %v2838 = vsel %vm2836, 1, 0
  %v2839 = vsel %vm2837, 1, 0
  %v2840 = vcvt.s32.f32 %v2838
  %v2841 = vcvt.s32.f32 %v2839
  %v2842 = vadd.f32 %v2829, %v2840
  %v2843 = vadd.f32 %v2830, %v2841
  %v2844 = vmul.f32 %v2840, %v2835
  %v2845 = vmul.f32 %v2841, %v2835
  %v2846 = vadd.f32 %v2833, %v2844
  %v2847 = vadd.f32 %v2834, %v2845
  %v2848 = vperm.slane %v2820, 2
  %vm2849 = vcmp.ge.f32.partialorder %v2848, %v2820
  %vm2850 = vcmp.ge.f32.partialorder %v2848, %v2821
  %v2851 = vsel %vm2849, 1, 0
  %v2852 = vsel %vm2850, 1, 0
  %v2853 = vcvt.s32.f32 %v2851
  %v2854 = vcvt.s32.f32 %v2852
  %v2855 = vadd.f32 %v2842, %v2853
  %v2856 = vadd.f32 %v2843, %v2854
  %v2857 = vmul.f32 %v2853, %v2848
  %v2858 = vmul.f32 %v2854, %v2848
  %v2859 = vadd.f32 %v2846, %v2857
  %v2860 = vadd.f32 %v2847, %v2858
  %v2861 = vperm.slane %v2820, 3
  %vm2862 = vcmp.ge.f32.partialorder %v2861, %v2820
  %vm2863 = vcmp.ge.f32.partialorder %v2861, %v2821
  %v2864 = vsel %vm2862, 1, 0
  %v2865 = vsel %vm2863, 1, 0
  %v2866 = vcvt.s32.f32 %v2864
  %v2867 = vcvt.s32.f32 %v2865
  %v2868 = vadd.f32 %v2855, %v2866
  %v2869 = vadd.f32 %v2856, %v2867
  %v2870 = vmul.f32 %v2866, %v2861
  %v2871 = vmul.f32 %v2867, %v2861
  %v2872 = vadd.f32 %v2859, %v2870
  %v2873 = vadd.f32 %v2860, %v2871
  %v2874 = vperm.slane %v2820, 4
  %vm2875 = vcmp.ge.f32.partialorder %v2874, %v2820
  %vm2876 = vcmp.ge.f32.partialorder %v2874, %v2821
  %v2877 = vsel %vm2875, 1, 0
  %v2878 = vsel %vm2876, 1, 0
  %v2879 = vcvt.s32.f32 %v2877
  %v2880 = vcvt.s32.f32 %v2878
  %v2881 = vadd.f32 %v2868, %v2879
  %v2882 = vadd.f32 %v2869, %v2880
  %v2883 = vmul.f32 %v2879, %v2874
  %v2884 = vmul.f32 %v2880, %v2874
  %v2885 = vadd.f32 %v2872, %v2883
  %v2886 = vadd.f32 %v2873, %v2884
  %v2887 = vperm.slane %v2820, 5
  %vm2888 = vcmp.ge.f32.partialorder %v2887, %v2820
  %vm2889 = vcmp.ge.f32.partialorder %v2887, %v2821
  %v2890 = vsel %vm2888, 1, 0
  %v2891 = vsel %vm2889, 1, 0
  %v2892 = vcvt.s32.f32 %v2890
  %v2893 = vcvt.s32.f32 %v2891
  %v2894 = vadd.f32 %v2881, %v2892
  %v2895 = vadd.f32 %v2882, %v2893
  %v2896 = vmul.f32 %v2892, %v2887
  %v2897 = vmul.f32 %v2893, %v2887
  %v2898 = vadd.f32 %v2885, %v2896
  %v2899 = vadd.f32 %v2886, %v2897
  %v2900 = vperm.slane %v2820, 6
  %vm2901 = vcmp.ge.f32.partialorder %v2900, %v2820
  %vm2902 = vcmp.ge.f32.partialorder %v2900, %v2821
  %v2903 = vsel %vm2901, 1, 0
  %v2904 = vsel %vm2902, 1, 0
  %v2905 = vcvt.s32.f32 %v2903
  %v2906 = vcvt.s32.f32 %v2904
  %v2907 = vadd.f32 %v2894, %v2905
  %v2908 = vadd.f32 %v2895, %v2906
  %v2909 = vmul.f32 %v2905, %v2900
  %v2910 = vmul.f32 %v2906, %v2900
  %v2911 = vadd.f32 %v2898, %v2909
  %v2912 = vadd.f32 %v2899, %v2910
  %v2913 = vperm.slane %v2820, 7
  %vm2914 = vcmp.ge.f32.partialorder %v2913, %v2820
  %vm2915 = vcmp.ge.f32.partialorder %v2913, %v2821
  %v2916 = vsel %vm2914, 1, 0
  %v2917 = vsel %vm2915, 1, 0
  %v2918 = vcvt.s32.f32 %v2916
  %v2919 = vcvt.s32.f32 %v2917
  %v2920 = vadd.f32 %v2907, %v2918
  %v2921 = vadd.f32 %v2908, %v2919
  %v2922 = vmul.f32 %v2918, %v2913
  %v2923 = vmul.f32 %v2919, %v2913
  %v2924 = vadd.f32 %v2911, %v2922
  %v2925 = vadd.f32 %v2912, %v2923
  %v2926 = vperm.slane %v2821, 0
  %vm2927 = vcmp.ge.f32.partialorder %v2926, %v2820
  %vm2928 = vcmp.ge.f32.partialorder %v2926, %v2821
  %v2929 = vsel %vm2927, 1, 0
  %v2930 = vsel %vm2928, 1, 0
  %v2931 = vcvt.s32.f32 %v2929
  %v2932 = vcvt.s32.f32 %v2930
  %v2933 = vadd.f32 %v2920, %v2931
  %v2934 = vadd.f32 %v2921, %v2932
  %v2935 = vmul.f32 %v2931, %v2926
  %v2936 = vmul.f32 %v2932, %v2926
  %v2937 = vadd.f32 %v2924, %v2935
  %v2938 = vadd.f32 %v2925, %v2936
  %v2939 = vperm.slane %v2821, 1
  %vm2940 = vcmp.ge.f32.partialorder %v2939, %v2820
  %vm2941 = vcmp.ge.f32.partialorder %v2939, %v2821
  %v2942 = vsel %vm2940, 1, 0
  %v2943 = vsel %vm2941, 1, 0
  %v2944 = vcvt.s32.f32 %v2942
  %v2945 = vcvt.s32.f32 %v2943
  %v2946 = vadd.f32 %v2933, %v2944
  %v2947 = vadd.f32 %v2934, %v2945
  %v2948 = vmul.f32 %v2944, %v2939
  %v2949 = vmul.f32 %v2945, %v2939
  %v2950 = vadd.f32 %v2937, %v2948
  %v2951 = vadd.f32 %v2938, %v2949
  %v2952 = vperm.slane %v2821, 2
  %vm2953 = vcmp.ge.f32.partialorder %v2952, %v2820
  %vm2954 = vcmp.ge.f32.partialorder %v2952, %v2821
  %v2955 = vsel %vm2953, 1, 0
  %v2956 = vsel %vm2954, 1, 0
  %v2957 = vcvt.s32.f32 %v2955
  %v2958 = vcvt.s32.f32 %v2956
  %v2959 = vadd.f32 %v2946, %v2957
  %v2960 = vadd.f32 %v2947, %v2958
  %v2961 = vmul.f32 %v2957, %v2952
  %v2962 = vmul.f32 %v2958, %v2952
  %v2963 = vadd.f32 %v2950, %v2961
  %v2964 = vadd.f32 %v2951, %v2962
  %v2965 = vperm.slane %v2821, 3
  %vm2966 = vcmp.ge.f32.partialorder %v2965, %v2820
  %vm2967 = vcmp.ge.f32.partialorder %v2965, %v2821
  %v2968 = vsel %vm2966, 1, 0
  %v2969 = vsel %vm2967, 1, 0
  %v2970 = vcvt.s32.f32 %v2968
  %v2971 = vcvt.s32.f32 %v2969
  %v2972 = vadd.f32 %v2959, %v2970
  %v2973 = vadd.f32 %v2960, %v2971
  %v2974 = vmul.f32 %v2970, %v2965
  %v2975 = vmul.f32 %v2971, %v2965
  %v2976 = vadd.f32 %v2963, %v2974
  %v2977 = vadd.f32 %v2964, %v2975
  %v2978 = vperm.slane %v2821, 4
  %vm2979 = vcmp.ge.f32.partialorder %v2978, %v2820
  %vm2980 = vcmp.ge.f32.partialorder %v2978, %v2821
  %v2981 = vsel %vm2979, 1, 0
  %v2982 = vsel %vm2980, 1, 0
  %v2983 = vcvt.s32.f32 %v2981
  %v2984 = vcvt.s32.f32 %v2982
  %v2985 = vadd.f32 %v2972, %v2983
  %v2986 = vadd.f32 %v2973, %v2984
  %v2987 = vmul.f32 %v2983, %v2978
  %v2988 = vmul.f32 %v2984, %v2978
  %v2989 = vadd.f32 %v2976, %v2987
  %v2990 = vadd.f32 %v2977, %v2988
  %v2991 = vperm.slane %v2821, 5
  %vm2992 = vcmp.ge.f32.partialorder %v2991, %v2820
  %vm2993 = vcmp.ge.f32.partialorder %v2991, %v2821
  %v2994 = vsel %vm2992, 1, 0
  %v2995 = vsel %vm2993, 1, 0
  %v2996 = vcvt.s32.f32 %v2994
  %v2997 = vcvt.s32.f32 %v2995
  %v2998 = vadd.f32 %v2985, %v2996
  %v2999 = vadd.f32 %v2986, %v2997
  %v3000 = vmul.f32 %v2996, %v2991
  %v3001 = vmul.f32 %v2997, %v2991
  %v3002 = vadd.f32 %v2989, %v3000
  %v3003 = vadd.f32 %v2990, %v3001
  %v3004 = vperm.slane %v2821, 6
  %vm3005 = vcmp.ge.f32.partialorder %v3004, %v2820
  %vm3006 = vcmp.ge.f32.partialorder %v3004, %v2821
  %v3007 = vsel %vm3005, 1, 0
  %v3008 = vsel %vm3006, 1, 0
  %v3009 = vcvt.s32.f32 %v3007
  %v3010 = vcvt.s32.f32 %v3008
  %v3011 = vadd.f32 %v2998, %v3009
  %v3012 = vadd.f32 %v2999, %v3010
  %v3013 = vmul.f32 %v3009, %v3004
  %v3014 = vmul.f32 %v3010, %v3004
  %v3015 = vadd.f32 %v3002, %v3013
  %v3016 = vadd.f32 %v3003, %v3014
  %v3017 = vperm.slane %v2821, 7
  %vm3018 = vcmp.ge.f32.partialorder %v3017, %v2820
  %vm3019 = vcmp.ge.f32.partialorder %v3017, %v2821
  %v3020 = vsel %vm3018, 1, 0
  %v3021 = vsel %vm3019, 1, 0
  %v3022 = vcvt.s32.f32 %v3020
  %v3023 = vcvt.s32.f32 %v3021
  %v3024 = vadd.f32 %v3011, %v3022
  %v3025 = vadd.f32 %v3012, %v3023
  %v3026 = vmul.f32 %v3022, %v3017
  %v3027 = vmul.f32 %v3023, %v3017
  %v3028 = vadd.f32 %v3015, %v3026
  %v3029 = vadd.f32 %v3016, %v3027
  %v3030 = vmul.f32 %v3024, %v2820
  %v3031 = vmul.f32 %v3025, %v2821
  %v3032 = vadd.f32 %v3030, 1.0
  %v3033 = vadd.f32 %v3031, 1.0
  %vm3034 = vcmp.gt.f32.partialorder %v3032, %v3028
  %vm3035 = vcmp.gt.f32.partialorder %v3033, %v3029
  %v3036 = vsel %vm3034, 1, 0
  %v3037 = vsel %vm3035, 1, 0
  %v3038 = vcvt.s32.f32 %v3036
  %v3039 = vcvt.s32.f32 %v3037
  %v3040 = vadd.f32 %v3038, %v3039
  %v3041 = vrot.slane %v3040, 4
  %v3042 = vadd.f32 %v3040, %v3041
  %v3043 = vrot.slane %v3042, 2
  %v3044 = vadd.f32 %v3042, %v3043
  %v3045 = vrot.slane %v3044, 1
  %v3046 = vadd.f32 %v3044, %v3045
  %v3047 = vmul.f32 %v3038, %v2820
  %v3048 = vmul.f32 %v3039, %v2821
  %v3049 = vadd.f32 %v3047, %v3048
  %v3050 = vrot.slane %v3049, 4
  %v3051 = vadd.f32 %v3049, %v3050
  %v3052 = vrot.slane %v3051, 2
  %v3053 = vadd.f32 %v3051, %v3052
  %v3054 = vrot.slane %v3053, 1
  %v3055 = vadd.f32 %v3053, %v3054
  %v3056 = vsub.f32 %v3055, 1.0
  %v3057 = vrcp.pop %v3046
  %v3058 = vmul.f32 %v3046, %v3057
  %v3059 = vsub.f32 1.0, %v3058
  %v3060 = vmul.f32 %v3057, %v3059
  %v3061 = vadd.f32 %v3057, %v3060
  %vm3062 = vweird.f32 %v3046
  %vm3063 = vweird.f32 %v3057
  %vm3064 = vmor %vm3062, %vm3063
  %v3065 = vsel %vm3064, %v3057, %v3061
  %v3066 = vand.u32 2147483647, %v3046
  %vm3067 = vcmp.eq.f32.partialorder %v3066, 8.507059e+37
  %v3068 = vand.u32 %v3046, 2147483648
  %v3069 = vor.u32 1.1754944e-38, %v3068
  %v3070 = vsel %vm3067, %v3069, %v3065
  %v3071 = vmul.f32 %v3056, %v3070
  %v3072 = vsub.f32 %v2820, %v3071
  %v3073 = vsub.f32 %v2821, %v3071
  %v3074 = vmax.f32 %v3072, 0.0
  %v3075 = vmax.f32 %v3073, 0.0
  %v3076 = vadd.f32 %v3074, 1e-15
  %v3077 = vadd.f32 %v3075, 1e-15
  %v3078 = vlog2.pop %v3076
  %v3079 = vmul.f32 %v3078, 0.6931472
  %v3080 = vlog2.pop %v3077
  %v3081 = vmul.f32 %v3080, 0.6931472
  %v3082 = vmul.f32 %v3074, %v3079
  %v3083 = vmul.f32 %v3075, %v3081
  %v3084 = vadd.f32 %v3082, %v3083
  %v3085 = vrot.slane %v3084, 4
  %v3086 = vadd.f32 %v3084, %v3085
  %v3087 = vrot.slane %v3086, 2
  %v3088 = vadd.f32 %v3086, %v3087
  %v3089 = vrot.slane %v3088, 1
  %v3090 = vadd.f32 %v3088, %v3089
  %v3091 = vadd.f32 %v2061, %v3090
  %v3092 = vmul.f32 %v3074, %v47
  %v3093 = vmul.f32 %v3075, %v48
  %3094 = vmatpush.msra.mxu0 0.0
  %3095 = vmatpush.msra.mxu0 0.0
  %3096 = vmatpush.msra.mxu0 0.0
  %3097 = vmatpush.msra.mxu0 0.0
  %3098 = vmatpush.msra.mxu0 0.0
  %3099 = vmatpush.msra.mxu0 0.0
  %3100 = vmatpush.msra.mxu0 0.0
  %3101 = vmatpush.msra.mxu0 0.0
  %3102 = vmatpush.msra.mxu0 0.0
  %3103 = vmatpush.msra.mxu0 0.0
  %3104 = vmatpush.msra.mxu0 0.0
  %3105 = vmatpush.msra.mxu0 0.0
  %3106 = vmatpush.msra.mxu0 0.0
  %3107 = vmatpush.msra.mxu0 0.0
  %3108 = vmatpush.msra.mxu0 %v3093
  %3109 = vmatpush.msra.mxu0 %v3092
  %3110 = vmatmul.f32.gmra.mxu0 %v55
  %v3111 = vpop.f32.mrf.mxu0
  %v3112 = vadd.f32 0.0, %v3111
  %3113 = vmatmul.f32.gmra.mxu0 %v58
  %v3114 = vpop.f32.mrf.mxu0
  %v3115 = vadd.f32 0.0, %v3114
  %3116 = vmatmul.f32.gmra.mxu0 %v61
  %v3117 = vpop.f32.mrf.mxu0
  %v3118 = vadd.f32 0.0, %v3117
  %3119 = vmatmul.f32.gmra.mxu0 %v64
  %v3120 = vpop.f32.mrf.mxu0
  %v3121 = vadd.f32 0.0, %v3120
  %3122 = vdwg.mxu0
  %3123 = vadd.xlane.f32.xlu0 %v3112
  %v3124 = vpop.xlane.xlu0 %3123
  %3125 = vadd.xlane.f32.xlu0 %v3115
  %v3126 = vpop.xlane.xlu0 %3125
  %3127 = vadd.xlane.f32.xlu0 %v3118
  %v3128 = vpop.xlane.xlu0 %3127
  %3129 = vadd.xlane.f32.xlu0 %v3121
  %v3130 = vpop.xlane.xlu0 %3129
  %v3131 = vmul.f32 %v3112, %v3112
  %v3132 = vmul.f32 %v3115, %v3115
  %v3133 = vmul.f32 %v3118, %v3118
  %v3134 = vmul.f32 %v3121, %v3121
  %3135 = vadd.xlane.f32.xlu0 %v3131
  %v3136 = vpop.xlane.xlu0 %3135
  %3137 = vadd.xlane.f32.xlu0 %v3132
  %v3138 = vpop.xlane.xlu0 %3137
  %3139 = vadd.xlane.f32.xlu0 %v3133
  %v3140 = vpop.xlane.xlu0 %3139
  %3141 = vadd.xlane.f32.xlu0 %v3134
  %v3142 = vpop.xlane.xlu0 %3141
  %v3143 = vmul.f32 %v3124, 0.0078125
  %v3144 = vmul.f32 %v3126, 0.0078125
  %v3145 = vmul.f32 %v3128, 0.0078125
  %v3146 = vmul.f32 %v3130, 0.0078125
  %v3147 = vmul.f32 %v3136, 0.0078125
  %v3148 = vmul.f32 %v3138, 0.0078125
  %v3149 = vmul.f32 %v3140, 0.0078125
  %v3150 = vmul.f32 %v3142, 0.0078125
  %v3151 = vmul.f32 %v3143, %v3143
  %v3152 = vmul.f32 %v3144, %v3144
  %v3153 = vmul.f32 %v3145, %v3145
  %v3154 = vmul.f32 %v3146, %v3146
  %v3155 = vsub.f32 %v3147, %v3151
  %v3156 = vsub.f32 %v3148, %v3152
  %v3157 = vsub.f32 %v3149, %v3153
  %v3158 = vsub.f32 %v3150, %v3154
  %v3159 = vsub.f32 %v3112, %v3143
  %v3160 = vsub.f32 %v3115, %v3144
  %v3161 = vsub.f32 %v3118, %v3145
  %v3162 = vsub.f32 %v3121, %v3146
  %v3163 = vadd.f32 %v3155, 1e-05
  %v3164 = vadd.f32 %v3156, 1e-05
  %v3165 = vadd.f32 %v3157, 1e-05
  %v3166 = vadd.f32 %v3158, 1e-05
  %v3167 = vrsqrt.pop %v3163
  %v3168 = vmul.f32 %v3167, %v3163
  %v3169 = vmul.f32 %v3168, %v3167
  %v3170 = vmul.f32 0.5, %v3169
  %v3171 = vsub.f32 1.5, %v3170
  %v3172 = vmul.f32 %v3167, %v3171
  %vm3173 = vweird.f32 %v3163
  %vm3174 = vweird.f32 %v3167
  %vm3175 = vmor %vm3173, %vm3174
  %v3176 = vsel %vm3175, %v3167, %v3172
  %v3177 = vrsqrt.pop %v3164
  %v3178 = vmul.f32 %v3177, %v3164
  %v3179 = vmul.f32 %v3178, %v3177
  %v3180 = vmul.f32 0.5, %v3179
  %v3181 = vsub.f32 1.5, %v3180
  %v3182 = vmul.f32 %v3177, %v3181
  %vm3183 = vweird.f32 %v3164
  %vm3184 = vweird.f32 %v3177
  %vm3185 = vmor %vm3183, %vm3184
  %v3186 = vsel %vm3185, %v3177, %v3182
  %v3187 = vrsqrt.pop %v3165
  %v3188 = vmul.f32 %v3187, %v3165
  %v3189 = vmul.f32 %v3188, %v3187
  %v3190 = vmul.f32 0.5, %v3189
  %v3191 = vsub.f32 1.5, %v3190
  %v3192 = vmul.f32 %v3187, %v3191
  %vm3193 = vweird.f32 %v3165
  %vm3194 = vweird.f32 %v3187
  %vm3195 = vmor %vm3193, %vm3194
  %v3196 = vsel %vm3195, %v3187, %v3192
  %v3197 = vrsqrt.pop %v3166
  %v3198 = vmul.f32 %v3197, %v3166
  %v3199 = vmul.f32 %v3198, %v3197
  %v3200 = vmul.f32 0.5, %v3199
  %v3201 = vsub.f32 1.5, %v3200
  %v3202 = vmul.f32 %v3197, %v3201
  %vm3203 = vweird.f32 %v3166
  %vm3204 = vweird.f32 %v3197
  %vm3205 = vmor %vm3203, %vm3204
  %v3206 = vsel %vm3205, %v3197, %v3202
  %v3207 = vmul.f32 %v3159, %v3176
  %v3208 = vmul.f32 %v3160, %v3186
  %v3209 = vmul.f32 %v3161, %v3196
  %v3210 = vmul.f32 %v3162, %v3206
  %v3211 = vxor.u32 %v3209, 2147483648
  %v3212 = vxor.u32 %v3210, 2147483648
  %v3213 = vmul.f32 %v3211, 1.442695
  %v3214 = vpow.pop %v3213
  %v3215 = vmul.f32 %v3212, 1.442695
  %v3216 = vpow.pop %v3215
  %v3217 = vadd.f32 %v3214, 1.0
  %v3218 = vadd.f32 %v3216, 1.0
  %v3219 = vrcp.pop %v3217
  %v3220 = vmul.f32 %v3217, %v3219
  %v3221 = vsub.f32 1.0, %v3220
  %v3222 = vmul.f32 %v3219, %v3221
  %v3223 = vadd.f32 %v3219, %v3222
  %vm3224 = vweird.f32 %v3217
  %vm3225 = vweird.f32 %v3219
  %vm3226 = vmor %vm3224, %vm3225
  %v3227 = vsel %vm3226, %v3219, %v3223
  %v3228 = vand.u32 2147483647, %v3217
  %vm3229 = vcmp.eq.f32.partialorder %v3228, 8.507059e+37
  %v3230 = vand.u32 %v3217, 2147483648
  %v3231 = vor.u32 1.1754944e-38, %v3230
  %v3232 = vsel %vm3229, %v3231, %v3227
  %v3233 = vmul.f32 1.0, %v3232
  %v3234 = vrcp.pop %v3218
  %v3235 = vmul.f32 %v3218, %v3234
  %v3236 = vsub.f32 1.0, %v3235
  %v3237 = vmul.f32 %v3234, %v3236
  %v3238 = vadd.f32 %v3234, %v3237
  %vm3239 = vweird.f32 %v3218
  %vm3240 = vweird.f32 %v3234
  %vm3241 = vmor %vm3239, %vm3240
  %v3242 = vsel %vm3241, %v3234, %v3238
  %v3243 = vand.u32 2147483647, %v3218
  %vm3244 = vcmp.eq.f32.partialorder %v3243, 8.507059e+37
  %v3245 = vand.u32 %v3218, 2147483648
  %v3246 = vor.u32 1.1754944e-38, %v3245
  %v3247 = vsel %vm3244, %v3246, %v3242
  %v3248 = vmul.f32 1.0, %v3247
  %v3249 = vmul.f32 %v3207, %v3233
  %v3250 = vmul.f32 %v3208, %v3248
  %3251 = vmatpush.msra.mxu0 0.0
  %3252 = vmatpush.msra.mxu0 0.0
  %3253 = vmatpush.msra.mxu0 0.0
  %3254 = vmatpush.msra.mxu0 0.0
  %3255 = vmatpush.msra.mxu0 0.0
  %3256 = vmatpush.msra.mxu0 0.0
  %3257 = vmatpush.msra.mxu0 0.0
  %3258 = vmatpush.msra.mxu0 0.0
  %3259 = vmatpush.msra.mxu0 0.0
  %3260 = vmatpush.msra.mxu0 0.0
  %3261 = vmatpush.msra.mxu0 0.0
  %3262 = vmatpush.msra.mxu0 0.0
  %3263 = vmatpush.msra.mxu0 0.0
  %3264 = vmatpush.msra.mxu0 0.0
  %3265 = vmatpush.msra.mxu0 %v3250
  %3266 = vmatpush.msra.mxu0 %v3249
  %3267 = vmatmul.f32.gmra.mxu0 %v228
  %v3268 = vpop.f32.mrf.mxu0
  %v3269 = vadd.f32 0.0, %v3268
  %3270 = vmatmul.f32.gmra.mxu0 %v231
  %v3271 = vpop.f32.mrf.mxu0
  %v3272 = vadd.f32 0.0, %v3271
  %3273 = vmatmul.f32.gmra.mxu0 %v234
  %v3274 = vpop.f32.mrf.mxu0
  %v3275 = vadd.f32 0.0, %v3274
  %3276 = vmatmul.f32.gmra.mxu0 %v237
  %v3277 = vpop.f32.mrf.mxu0
  %v3278 = vadd.f32 0.0, %v3277
  %3279 = vdwg.mxu0
  %3280 = vadd.xlane.f32.xlu0 %v3269
  %v3281 = vpop.xlane.xlu0 %3280
  %3282 = vadd.xlane.f32.xlu0 %v3272
  %v3283 = vpop.xlane.xlu0 %3282
  %3284 = vadd.xlane.f32.xlu0 %v3275
  %v3285 = vpop.xlane.xlu0 %3284
  %3286 = vadd.xlane.f32.xlu0 %v3278
  %v3287 = vpop.xlane.xlu0 %3286
  %v3288 = vmul.f32 %v3269, %v3269
  %v3289 = vmul.f32 %v3272, %v3272
  %v3290 = vmul.f32 %v3275, %v3275
  %v3291 = vmul.f32 %v3278, %v3278
  %3292 = vadd.xlane.f32.xlu0 %v3288
  %v3293 = vpop.xlane.xlu0 %3292
  %3294 = vadd.xlane.f32.xlu0 %v3289
  %v3295 = vpop.xlane.xlu0 %3294
  %3296 = vadd.xlane.f32.xlu0 %v3290
  %v3297 = vpop.xlane.xlu0 %3296
  %3298 = vadd.xlane.f32.xlu0 %v3291
  %v3299 = vpop.xlane.xlu0 %3298
  %v3300 = vmul.f32 %v3281, 0.0078125
  %v3301 = vmul.f32 %v3283, 0.0078125
  %v3302 = vmul.f32 %v3285, 0.0078125
  %v3303 = vmul.f32 %v3287, 0.0078125
  %v3304 = vmul.f32 %v3293, 0.0078125
  %v3305 = vmul.f32 %v3295, 0.0078125
  %v3306 = vmul.f32 %v3297, 0.0078125
  %v3307 = vmul.f32 %v3299, 0.0078125
  %v3308 = vmul.f32 %v3300, %v3300
  %v3309 = vmul.f32 %v3301, %v3301
  %v3310 = vmul.f32 %v3302, %v3302
  %v3311 = vmul.f32 %v3303, %v3303
  %v3312 = vsub.f32 %v3304, %v3308
  %v3313 = vsub.f32 %v3305, %v3309
  %v3314 = vsub.f32 %v3306, %v3310
  %v3315 = vsub.f32 %v3307, %v3311
  %v3316 = vsub.f32 %v3269, %v3300
  %v3317 = vsub.f32 %v3272, %v3301
  %v3318 = vsub.f32 %v3275, %v3302
  %v3319 = vsub.f32 %v3278, %v3303
  %v3320 = vadd.f32 %v3312, 1e-05
  %v3321 = vadd.f32 %v3313, 1e-05
  %v3322 = vadd.f32 %v3314, 1e-05
  %v3323 = vadd.f32 %v3315, 1e-05
  %v3324 = vrsqrt.pop %v3320
  %v3325 = vmul.f32 %v3324, %v3320
  %v3326 = vmul.f32 %v3325, %v3324
  %v3327 = vmul.f32 0.5, %v3326
  %v3328 = vsub.f32 1.5, %v3327
  %v3329 = vmul.f32 %v3324, %v3328
  %vm3330 = vweird.f32 %v3320
  %vm3331 = vweird.f32 %v3324
  %vm3332 = vmor %vm3330, %vm3331
  %v3333 = vsel %vm3332, %v3324, %v3329
  %v3334 = vrsqrt.pop %v3321
  %v3335 = vmul.f32 %v3334, %v3321
  %v3336 = vmul.f32 %v3335, %v3334
  %v3337 = vmul.f32 0.5, %v3336
  %v3338 = vsub.f32 1.5, %v3337
  %v3339 = vmul.f32 %v3334, %v3338
  %vm3340 = vweird.f32 %v3321
  %vm3341 = vweird.f32 %v3334
  %vm3342 = vmor %vm3340, %vm3341
  %v3343 = vsel %vm3342, %v3334, %v3339
  %v3344 = vrsqrt.pop %v3322
  %v3345 = vmul.f32 %v3344, %v3322
  %v3346 = vmul.f32 %v3345, %v3344
  %v3347 = vmul.f32 0.5, %v3346
  %v3348 = vsub.f32 1.5, %v3347
  %v3349 = vmul.f32 %v3344, %v3348
  %vm3350 = vweird.f32 %v3322
  %vm3351 = vweird.f32 %v3344
  %vm3352 = vmor %vm3350, %vm3351
  %v3353 = vsel %vm3352, %v3344, %v3349
  %v3354 = vrsqrt.pop %v3323
  %v3355 = vmul.f32 %v3354, %v3323
  %v3356 = vmul.f32 %v3355, %v3354
  %v3357 = vmul.f32 0.5, %v3356
  %v3358 = vsub.f32 1.5, %v3357
  %v3359 = vmul.f32 %v3354, %v3358
  %vm3360 = vweird.f32 %v3323
  %vm3361 = vweird.f32 %v3354
  %vm3362 = vmor %vm3360, %vm3361
  %v3363 = vsel %vm3362, %v3354, %v3359
  %v3364 = vmul.f32 %v3316, %v3333
  %v3365 = vmul.f32 %v3317, %v3343
  %v3366 = vmul.f32 %v3318, %v3353
  %v3367 = vmul.f32 %v3319, %v3363
  %v3368 = vxor.u32 %v3366, 2147483648
  %v3369 = vxor.u32 %v3367, 2147483648
  %v3370 = vmul.f32 %v3368, 1.442695
  %v3371 = vpow.pop %v3370
  %v3372 = vmul.f32 %v3369, 1.442695
  %v3373 = vpow.pop %v3372
  %v3374 = vadd.f32 %v3371, 1.0
  %v3375 = vadd.f32 %v3373, 1.0
  %v3376 = vrcp.pop %v3374
  %v3377 = vmul.f32 %v3374, %v3376
  %v3378 = vsub.f32 1.0, %v3377
  %v3379 = vmul.f32 %v3376, %v3378
  %v3380 = vadd.f32 %v3376, %v3379
  %vm3381 = vweird.f32 %v3374
  %vm3382 = vweird.f32 %v3376
  %vm3383 = vmor %vm3381, %vm3382
  %v3384 = vsel %vm3383, %v3376, %v3380
  %v3385 = vand.u32 2147483647, %v3374
  %vm3386 = vcmp.eq.f32.partialorder %v3385, 8.507059e+37
  %v3387 = vand.u32 %v3374, 2147483648
  %v3388 = vor.u32 1.1754944e-38, %v3387
  %v3389 = vsel %vm3386, %v3388, %v3384
  %v3390 = vmul.f32 1.0, %v3389
  %v3391 = vrcp.pop %v3375
  %v3392 = vmul.f32 %v3375, %v3391
  %v3393 = vsub.f32 1.0, %v3392
  %v3394 = vmul.f32 %v3391, %v3393
  %v3395 = vadd.f32 %v3391, %v3394
  %vm3396 = vweird.f32 %v3375
  %vm3397 = vweird.f32 %v3391
  %vm3398 = vmor %vm3396, %vm3397
  %v3399 = vsel %vm3398, %v3391, %v3395
  %v3400 = vand.u32 2147483647, %v3375
  %vm3401 = vcmp.eq.f32.partialorder %v3400, 8.507059e+37
  %v3402 = vand.u32 %v3375, 2147483648
  %v3403 = vor.u32 1.1754944e-38, %v3402
  %v3404 = vsel %vm3401, %v3403, %v3399
  %v3405 = vmul.f32 1.0, %v3404
  %v3406 = vmul.f32 %v3364, %v3390
  %v3407 = vmul.f32 %v3365, %v3405
  %v3408 = vadd.f32 %v3249, %v3406
  %v3409 = vadd.f32 %v3250, %v3407
  %v3410 = vmul.f32 %v3408, 0.70710677
  %v3411 = vmul.f32 %v3409, 0.70710677
  %s3412 = scalar_lea.vmem %s3, 224
  %v3413 = vld [vmem:[%s3412] sm:$0xff]
  %v3414 = vld [vmem:[%s3412 + $0x8] sm:$0xff]
  %v3415 = vld [vmem:[%s3412 + $0x10] sm:$0xff]
  %v3416 = vld [vmem:[%s3412 + $0x18] sm:$0xff]
  %v3418 = vsel %vm53, %v3413, 0
  %v3421 = vsel %vm53, %v3414, 0
  %v3424 = vsel %vm53, %v3415, 0
  %v3427 = vsel %vm53, %v3416, 0
  %3429 = vmatpush.msra.mxu0 0.0
  %3430 = vmatpush.msra.mxu0 0.0
  %3431 = vmatpush.msra.mxu0 0.0
  %3432 = vmatpush.msra.mxu0 0.0
  %3433 = vmatpush.msra.mxu0 0.0
  %3434 = vmatpush.msra.mxu0 0.0
  %3435 = vmatpush.msra.mxu0 0.0
  %3436 = vmatpush.msra.mxu0 0.0
  %3437 = vmatpush.msra.mxu0 0.0
  %3438 = vmatpush.msra.mxu0 0.0
  %3439 = vmatpush.msra.mxu0 0.0
  %3440 = vmatpush.msra.mxu0 0.0
  %3441 = vmatpush.msra.mxu0 0.0
  %3442 = vmatpush.msra.mxu0 0.0
  %3443 = vmatpush.msra.mxu0 %v3411
  %3444 = vmatpush.msra.mxu0 %v3410
  %3445 = vmatmul.f32.gmra.mxu0 %v3418
  %v3446 = vpop.f32.mrf.mxu0
  %v3447 = vadd.f32 0.0, %v3446
  %3448 = vmatmul.f32.gmra.mxu0 %v3421
  %v3449 = vpop.f32.mrf.mxu0
  %v3450 = vadd.f32 0.0, %v3449
  %3451 = vmatmul.f32.gmra.mxu0 %v3424
  %v3452 = vpop.f32.mrf.mxu0
  %v3453 = vadd.f32 0.0, %v3452
  %3454 = vmatmul.f32.gmra.mxu0 %v3427
  %v3455 = vpop.f32.mrf.mxu0
  %v3456 = vadd.f32 0.0, %v3455
  %3457 = vdwg.mxu0
  %3458 = vadd.xlane.f32.xlu0 %v3447
  %v3459 = vpop.xlane.xlu0 %3458
  %3460 = vadd.xlane.f32.xlu0 %v3450
  %v3461 = vpop.xlane.xlu0 %3460
  %3462 = vadd.xlane.f32.xlu0 %v3453
  %v3463 = vpop.xlane.xlu0 %3462
  %3464 = vadd.xlane.f32.xlu0 %v3456
  %v3465 = vpop.xlane.xlu0 %3464
  %v3466 = vmul.f32 %v3447, %v3447
  %v3467 = vmul.f32 %v3450, %v3450
  %v3468 = vmul.f32 %v3453, %v3453
  %v3469 = vmul.f32 %v3456, %v3456
  %3470 = vadd.xlane.f32.xlu0 %v3466
  %v3471 = vpop.xlane.xlu0 %3470
  %3472 = vadd.xlane.f32.xlu0 %v3467
  %v3473 = vpop.xlane.xlu0 %3472
  %3474 = vadd.xlane.f32.xlu0 %v3468
  %v3475 = vpop.xlane.xlu0 %3474
  %3476 = vadd.xlane.f32.xlu0 %v3469
  %v3477 = vpop.xlane.xlu0 %3476
  %v3478 = vmul.f32 %v3459, 0.0078125
  %v3479 = vmul.f32 %v3461, 0.0078125
  %v3480 = vmul.f32 %v3463, 0.0078125
  %v3481 = vmul.f32 %v3465, 0.0078125
  %v3482 = vmul.f32 %v3471, 0.0078125
  %v3483 = vmul.f32 %v3473, 0.0078125
  %v3484 = vmul.f32 %v3475, 0.0078125
  %v3485 = vmul.f32 %v3477, 0.0078125
  %v3486 = vmul.f32 %v3478, %v3478
  %v3487 = vmul.f32 %v3479, %v3479
  %v3488 = vmul.f32 %v3480, %v3480
  %v3489 = vmul.f32 %v3481, %v3481
  %v3490 = vsub.f32 %v3482, %v3486
  %v3491 = vsub.f32 %v3483, %v3487
  %v3492 = vsub.f32 %v3484, %v3488
  %v3493 = vsub.f32 %v3485, %v3489
  %v3494 = vsub.f32 %v3447, %v3478
  %v3495 = vsub.f32 %v3450, %v3479
  %v3496 = vsub.f32 %v3453, %v3480
  %v3497 = vsub.f32 %v3456, %v3481
  %v3498 = vadd.f32 %v3490, 1e-05
  %v3499 = vadd.f32 %v3491, 1e-05
  %v3500 = vadd.f32 %v3492, 1e-05
  %v3501 = vadd.f32 %v3493, 1e-05
  %v3502 = vrsqrt.pop %v3498
  %v3503 = vmul.f32 %v3502, %v3498
  %v3504 = vmul.f32 %v3503, %v3502
  %v3505 = vmul.f32 0.5, %v3504
  %v3506 = vsub.f32 1.5, %v3505
  %v3507 = vmul.f32 %v3502, %v3506
  %vm3508 = vweird.f32 %v3498
  %vm3509 = vweird.f32 %v3502
  %vm3510 = vmor %vm3508, %vm3509
  %v3511 = vsel %vm3510, %v3502, %v3507
  %v3512 = vrsqrt.pop %v3499
  %v3513 = vmul.f32 %v3512, %v3499
  %v3514 = vmul.f32 %v3513, %v3512
  %v3515 = vmul.f32 0.5, %v3514
  %v3516 = vsub.f32 1.5, %v3515
  %v3517 = vmul.f32 %v3512, %v3516
  %vm3518 = vweird.f32 %v3499
  %vm3519 = vweird.f32 %v3512
  %vm3520 = vmor %vm3518, %vm3519
  %v3521 = vsel %vm3520, %v3512, %v3517
  %v3522 = vrsqrt.pop %v3500
  %v3523 = vmul.f32 %v3522, %v3500
  %v3524 = vmul.f32 %v3523, %v3522
  %v3525 = vmul.f32 0.5, %v3524
  %v3526 = vsub.f32 1.5, %v3525
  %v3527 = vmul.f32 %v3522, %v3526
  %vm3528 = vweird.f32 %v3500
  %vm3529 = vweird.f32 %v3522
  %vm3530 = vmor %vm3528, %vm3529
  %v3531 = vsel %vm3530, %v3522, %v3527
  %v3532 = vrsqrt.pop %v3501
  %v3533 = vmul.f32 %v3532, %v3501
  %v3534 = vmul.f32 %v3533, %v3532
  %v3535 = vmul.f32 0.5, %v3534
  %v3536 = vsub.f32 1.5, %v3535
  %v3537 = vmul.f32 %v3532, %v3536
  %vm3538 = vweird.f32 %v3501
  %vm3539 = vweird.f32 %v3532
  %vm3540 = vmor %vm3538, %vm3539
  %v3541 = vsel %vm3540, %v3532, %v3537
  %v3542 = vmul.f32 %v3494, %v3511
  %v3543 = vmul.f32 %v3495, %v3521
  %v3544 = vmul.f32 %v3496, %v3531
  %v3545 = vmul.f32 %v3497, %v3541
  %v3546 = vxor.u32 %v3544, 2147483648
  %v3547 = vxor.u32 %v3545, 2147483648
  %v3548 = vmul.f32 %v3546, 1.442695
  %v3549 = vpow.pop %v3548
  %v3550 = vmul.f32 %v3547, 1.442695
  %v3551 = vpow.pop %v3550
  %v3552 = vadd.f32 %v3549, 1.0
  %v3553 = vadd.f32 %v3551, 1.0
  %v3554 = vrcp.pop %v3552
  %v3555 = vmul.f32 %v3552, %v3554
  %v3556 = vsub.f32 1.0, %v3555
  %v3557 = vmul.f32 %v3554, %v3556
  %v3558 = vadd.f32 %v3554, %v3557
  %vm3559 = vweird.f32 %v3552
  %vm3560 = vweird.f32 %v3554
  %vm3561 = vmor %vm3559, %vm3560
  %v3562 = vsel %vm3561, %v3554, %v3558
  %v3563 = vand.u32 2147483647, %v3552
  %vm3564 = vcmp.eq.f32.partialorder %v3563, 8.507059e+37
  %v3565 = vand.u32 %v3552, 2147483648
  %v3566 = vor.u32 1.1754944e-38, %v3565
  %v3567 = vsel %vm3564, %v3566, %v3562
  %v3568 = vmul.f32 1.0, %v3567
  %v3569 = vrcp.pop %v3553
  %v3570 = vmul.f32 %v3553, %v3569
  %v3571 = vsub.f32 1.0, %v3570
  %v3572 = vmul.f32 %v3569, %v3571
  %v3573 = vadd.f32 %v3569, %v3572
  %vm3574 = vweird.f32 %v3553
  %vm3575 = vweird.f32 %v3569
  %vm3576 = vmor %vm3574, %vm3575
  %v3577 = vsel %vm3576, %v3569, %v3573
  %v3578 = vand.u32 2147483647, %v3553
  %vm3579 = vcmp.eq.f32.partialorder %v3578, 8.507059e+37
  %v3580 = vand.u32 %v3553, 2147483648
  %v3581 = vor.u32 1.1754944e-38, %v3580
  %v3582 = vsel %vm3579, %v3581, %v3577
  %v3583 = vmul.f32 1.0, %v3582
  %v3584 = vmul.f32 %v3542, %v3568
  %v3585 = vmul.f32 %v3543, %v3583
  %v3586 = vadd.f32 %v3410, %v3584
  %v3587 = vadd.f32 %v3411, %v3585
  %v3588 = vmul.f32 %v3586, 0.70710677
  %v3589 = vmul.f32 %v3587, 0.70710677
  %s3590 = scalar_lea.vmem %s3, 256
  %v3591 = vld [vmem:[%s3590] sm:$0xff]
  %v3592 = vld [vmem:[%s3590 + $0x8] sm:$0xff]
  %v3593 = vld [vmem:[%s3590 + $0x10] sm:$0xff]
  %v3594 = vld [vmem:[%s3590 + $0x18] sm:$0xff]
  %v3596 = vsel %vm53, %v3591, 0
  %v3599 = vsel %vm53, %v3592, 0
  %v3602 = vsel %vm53, %v3593, 0
  %v3605 = vsel %vm53, %v3594, 0
  %3607 = vmatpush.msra.mxu0 0.0
  %3608 = vmatpush.msra.mxu0 0.0
  %3609 = vmatpush.msra.mxu0 0.0
  %3610 = vmatpush.msra.mxu0 0.0
  %3611 = vmatpush.msra.mxu0 0.0
  %3612 = vmatpush.msra.mxu0 0.0
  %3613 = vmatpush.msra.mxu0 0.0
  %3614 = vmatpush.msra.mxu0 0.0
  %3615 = vmatpush.msra.mxu0 0.0
  %3616 = vmatpush.msra.mxu0 0.0
  %3617 = vmatpush.msra.mxu0 0.0
  %3618 = vmatpush.msra.mxu0 0.0
  %3619 = vmatpush.msra.mxu0 0.0
  %3620 = vmatpush.msra.mxu0 0.0
  %3621 = vmatpush.msra.mxu0 %v3589
  %3622 = vmatpush.msra.mxu0 %v3588
  %3623 = vmatmul.f32.gmra.mxu0 %v3596
  %v3624 = vpop.f32.mrf.mxu0
  %v3625 = vadd.f32 0.0, %v3624
  %3626 = vmatmul.f32.gmra.mxu0 %v3599
  %v3627 = vpop.f32.mrf.mxu0
  %3628 = vmatmul.f32.gmra.mxu0 %v3602
  %v3629 = vpop.f32.mrf.mxu0
  %v3630 = vadd.f32 0.0, %v3629
  %3631 = vmatmul.f32.gmra.mxu0 %v3605
  %v3632 = vpop.f32.mrf.mxu0
  %3633 = vdwg.mxu0
  %3634 = vadd.xlane.f32.xlu0 %v3625
  %v3635 = vpop.xlane.xlu0 %3634
  %3636 = vadd.xlane.f32.xlu0 %v3630
  %v3637 = vpop.xlane.xlu0 %3636
  %v3638 = vmul.f32 %v3625, %v3625
  %v3639 = vmul.f32 %v3630, %v3630
  %3640 = vadd.xlane.f32.xlu0 %v3638
  %v3641 = vpop.xlane.xlu0 %3640
  %3642 = vadd.xlane.f32.xlu0 %v3639
  %v3643 = vpop.xlane.xlu0 %3642
  %v3644 = vmul.f32 %v3635, 0.0078125
  %v3645 = vmul.f32 %v3637, 0.0078125
  %v3646 = vmul.f32 %v3641, 0.0078125
  %v3647 = vmul.f32 %v3643, 0.0078125
  %v3648 = vmul.f32 %v3644, %v3644
  %v3649 = vmul.f32 %v3645, %v3645
  %v3650 = vsub.f32 %v3646, %v3648
  %v3651 = vsub.f32 %v3647, %v3649
  %v3652 = vsub.f32 %v3625, %v3644
  %v3653 = vsub.f32 %v3630, %v3645
  %v3654 = vadd.f32 %v3650, 1e-05
  %v3655 = vadd.f32 %v3651, 1e-05
  %v3656 = vrsqrt.pop %v3654
  %v3657 = vmul.f32 %v3656, %v3654
  %v3658 = vmul.f32 %v3657, %v3656
  %v3659 = vmul.f32 0.5, %v3658
  %v3660 = vsub.f32 1.5, %v3659
  %v3661 = vmul.f32 %v3656, %v3660
  %vm3662 = vweird.f32 %v3654
  %vm3663 = vweird.f32 %v3656
  %vm3664 = vmor %vm3662, %vm3663
  %v3665 = vsel %vm3664, %v3656, %v3661
  %v3666 = vrsqrt.pop %v3655
  %v3667 = vmul.f32 %v3666, %v3655
  %v3668 = vmul.f32 %v3667, %v3666
  %v3669 = vmul.f32 0.5, %v3668
  %v3670 = vsub.f32 1.5, %v3669
  %v3671 = vmul.f32 %v3666, %v3670
  %vm3672 = vweird.f32 %v3655
  %vm3673 = vweird.f32 %v3666
  %vm3674 = vmor %vm3672, %vm3673
  %v3675 = vsel %vm3674, %v3666, %v3671
  %v3676 = vmul.f32 %v3652, %v3665
  %v3677 = vmul.f32 %v3653, %v3675
  %v3678 = vxor.u32 %v3677, 2147483648
  %v3679 = vmul.f32 %v3678, 1.442695
  %v3680 = vpow.pop %v3679
  %v3681 = vadd.f32 %v3680, 1.0
  %v3682 = vrcp.pop %v3681
  %v3683 = vmul.f32 %v3681, %v3682
  %v3684 = vsub.f32 1.0, %v3683
  %v3685 = vmul.f32 %v3682, %v3684
  %v3686 = vadd.f32 %v3682, %v3685
  %vm3687 = vweird.f32 %v3681
  %vm3688 = vweird.f32 %v3682
  %vm3689 = vmor %vm3687, %vm3688
  %v3690 = vsel %vm3689, %v3682, %v3686
  %v3691 = vand.u32 2147483647, %v3681
  %vm3692 = vcmp.eq.f32.partialorder %v3691, 8.507059e+37
  %v3693 = vand.u32 %v3681, 2147483648
  %v3694 = vor.u32 1.1754944e-38, %v3693
  %v3695 = vsel %vm3692, %v3694, %v3690
  %v3696 = vmul.f32 1.0, %v3695
  %v3697 = vmul.f32 %v3676, %v3696
  %v3698 = vadd.f32 %v3588, %v3697
  %v3699 = vmul.f32 %v3698, 0.70710677
  %v3700 = vmax.f32 %v3699, 0.0
  %v3701 = vadd.f32 %v2743, %v3700
  %v3702 = vld [vmem:[%s5] sm:$0xff]
  %vm3703 = vcmask 72704
  %v3705 = vsel %vm3703, %v3702, 0
  %vm3707 = vcmask 1040384
  %v3709 = vsel %vm3707, %v3091, 0
  %3711 = vmatpush.msra.mxu0 0.0
  %3712 = vmatpush.msra.mxu0 0.0
  %3713 = vmatpush.msra.mxu0 0.0
  %3714 = vmatpush.msra.mxu0 0.0
  %3715 = vmatpush.msra.mxu0 0.0
  %3716 = vmatpush.msra.mxu0 0.0
  %3717 = vmatpush.msra.mxu0 0.0
  %3718 = vmatpush.msra.mxu0 0.0
  %3719 = vmatpush.msra.mxu0 0.0
  %3720 = vmatpush.msra.mxu0 0.0
  %3721 = vmatpush.msra.mxu0 0.0
  %3722 = vmatpush.msra.mxu0 0.0
  %3723 = vmatpush.msra.mxu0 0.0
  %3724 = vmatpush.msra.mxu0 0.0
  %3725 = vmatpush.msra.mxu0 %v3709
  %3726 = vmatpush.msra.mxu0 %v3701
  %3727 = vmatmul.f32.gmra.mxu0 %v3705
  %v3728 = vpop.f32.mrf.mxu0
  %v3729 = vadd.f32 0.0, %v3728
  %3730 = vdwg.mxu0
  %3731 = vst [vmem:[%s6] sm:$0xff] %v3729
  // Predicated region
  $region26: #{tabnet_forward.1} parent=0 // pred_check
    _
  $region27: #{tabnet_forward.1} parent=0 // pred_check_branch
    %3733 = sbr.rel (0) target = $region29
  $region28: #{tabnet_forward.1} parent=0 // pred_region
    _
  $region29: #{tabnet_forward.1} parent=0 // pred_fallthru
    _
  // Predicated region
  $region30: #{tabnet_forward.1} parent=0 // pred_check
    _
  $region31: #{tabnet_forward.1} parent=0 // pred_check_branch
    %3735 = sbr.rel (0) target = $region33
  $region32: #{tabnet_forward.1} parent=0 // pred_region
    _
  $region33: #{tabnet_forward.1} parent=0 // pred_fallthru
    _

</llo_original>
